<compile_context>
chip_gen: v7x
topology: tpu7x:2x2x1
jax: 0.10.0
libtpu: 0.0.40
codegen_flags: <defaults>
</compile_context>

<pallas_src>
import functools

import jax
import jax.numpy as jnp
from jax.experimental import pallas as pl
from jax.experimental.pallas import tpu as pltpu

EPS = 1e-5
LANE = 128

_CPARAMS = pltpu.CompilerParams(
    dimension_semantics=("parallel",),      # batch grid axis -> megacore on v7x
    vmem_limit_bytes=32 * 1024 * 1024,      # safe on v5e/v6e/v7x; raise for big slabs
)

_TAPS3 = tuple((dy, dx) for dy in range(3) for dx in range(3))


def _round_up(x, m):
    return (x + m - 1) // m * m


# ----------------------------- in-kernel helpers -----------------------------

def _pad_ring(a):
    """Zero-pad a (H, W, C) VMEM value by 1 on both spatial dims (VMEM-only)."""
    h, w, c = a.shape
    zr = jnp.zeros((1, w, c), a.dtype)
    a = jnp.concatenate([zr, a, zr], axis=0)
    zc = jnp.zeros((h + 2, 1, c), a.dtype)
    return jnp.concatenate([zc, a, zc], axis=1)


def _conv_taps(a, w_ref, taps, ho, wo, ck):
    """sum_t  a[dy_t:dy_t+ho, dx_t:dx_t+wo, :] @ w[t]  accumulated on the MXU.

    a:     (hs, ws, ck) bf16 slab resident in VMEM.
    w_ref: (len(taps)*ck, cp) bf16 weights (same block every grid step).
    Returns (ho*wo, cp) f32 accumulator.
    """
    acc = None
    for t, (dy, dx) in enumerate(taps):
        win = a[dy:dy + ho, dx:dx + wo, :].reshape(ho * wo, ck)
        part = jnp.dot(win, w_ref[t * ck:(t + 1) * ck, :],
                       preferred_element_type=jnp.float32)
        acc = part if acc is None else acc + part
    return acc


def _write_stats(st_ref, y2d):
    """BN partials for one grid step: row0 = sum(y), row1 = sum((y - mean)^2).

    Centered second moment -> the cross-step combine is Chan's numerically
    stable parallel-variance formula (hardens the E[y^2]-E[y]^2 concern).
    """
    m, c = y2d.shape
    s = jnp.sum(y2d, axis=0, keepdims=True)
    mu = s * (1.0 / m)
    m2 = jnp.sum(jnp.square(y2d - mu), axis=0, keepdims=True)
    st_ref[...] = jnp.concatenate([s, m2, jnp.zeros((6, c), jnp.float32)], axis=0)


# -------------------------------- kernels ------------------------------------

def _make_conv1_kernel(taps, ho, wo, ck, pad_input):
    def kernel(x_ref, w_ref, y_ref, st_ref):
        a = x_ref[...]                                     # (hs, ws, ck) bf16
        if pad_input:
            a = _pad_ring(a)
        acc = _conv_taps(a, w_ref, taps, ho, wo, ck)       # (ho*wo, cp) f32
        yb = acc.astype(jnp.bfloat16)
        y_ref[...] = yb.reshape(ho, wo, acc.shape[-1])
        _write_stats(st_ref, yb.astype(jnp.float32))
    return kernel


def _make_conv1_proj_kernel(taps, sc_tap, ho, wo, ck, pad_input):
    def kernel(x_ref, w_ref, wsc_ref, y_ref, ysc_ref, st_ref, stsc_ref):
        a = x_ref[...]
        if pad_input:
            a = _pad_ring(a)
        acc = _conv_taps(a, w_ref, taps, ho, wo, ck)
        yb = acc.astype(jnp.bfloat16)
        y_ref[...] = yb.reshape(ho, wo, acc.shape[-1])
        _write_stats(st_ref, yb.astype(jnp.float32))
        # fused 1x1 projection shortcut (rides in MXU slack of conv1)
        sy, sx = sc_tap
        win = a[sy:sy + ho, sx:sx + wo, :].reshape(ho * wo, ck)
        acs = jnp.dot(win, wsc_ref[...], preferred_element_type=jnp.float32)
        ysb = acs.astype(jnp.bfloat16)
        ysc_ref[...] = ysb.reshape(ho, wo, acs.shape[-1])
        _write_stats(stsc_ref, ysb.astype(jnp.float32))
    return kernel


def _make_conv2_kernel(ho, wo, cp):
    def kernel(y1_ref, w_ref, scale_ref, shift_ref, y_ref, st_ref):
        # fused BN1-apply + ReLU on the resident slab (no extra HBM pass)
        a = y1_ref[...].astype(jnp.float32)                # (ho, wo, cp)
        a = jnp.maximum(a * scale_ref[...] + shift_ref[...], 0.0)
        ab = _pad_ring(a).astype(jnp.bfloat16)             # zero ring for 3x3 conv
        acc = _conv_taps(ab, w_ref, _TAPS3, ho, wo, cp)
        yb = acc.astype(jnp.bfloat16)
        y_ref[...] = yb.reshape(ho, wo, cp)
        _write_stats(st_ref, yb.astype(jnp.float32))
    return kernel


def _epi_id_kernel(y2_ref, xsc_ref, s2_ref, b2_ref, o_ref):
    # out = relu(bn2(conv2) + identity shortcut), all bf16 in / bf16 out
    y = y2_ref[...].astype(jnp.float32)
    sc = xsc_ref[...].astype(jnp.float32)
    o_ref[...] = jnp.maximum(y * s2_ref[...] + b2_ref[...] + sc, 0.0).astype(o_ref.dtype)


def _epi_proj_kernel(y2_ref, ysc_ref, s2_ref, b2_ref, ss_ref, bs_ref, o_ref):
    # out = relu(bn2(conv2) + bn_s(conv1x1 shortcut))
    y = y2_ref[...].astype(jnp.float32)
    ysc = ysc_ref[...].astype(jnp.float32)
    sc = ysc * ss_ref[...] + bs_ref[...]
    o_ref[...] = jnp.maximum(y * s2_ref[...] + b2_ref[...] + sc, 0.0).astype(o_ref.dtype)


# --------------------------- pallas_call wrappers ----------------------------

def _conv1_call(xs, w1m, taps, ho, wo, cp, pad_input):
    n, hs, ws_, ck = xs.shape
    kernel = _make_conv1_kernel(taps, ho, wo, ck, pad_input)
    return pl.pallas_call(
        kernel,
        grid=(n,),
        in_specs=[pl.BlockSpec((None, hs, ws_, ck), lambda i: (i, 0, 0, 0)),
                  pl.BlockSpec(w1m.shape, lambda i: (0, 0))],
        out_specs=(pl.BlockSpec((None, ho, wo, cp), lambda i: (i, 0, 0, 0)),
                   pl.BlockSpec((8, cp), lambda i: (i, 0))),
        out_shape=(jax.ShapeDtypeStruct((n, ho, wo, cp), jnp.bfloat16),
                   jax.ShapeDtypeStruct((n * 8, cp), jnp.float32)),
        compiler_params=_CPARAMS,
    )(xs, w1m)


def _conv1_proj_call(xs, w1m, wsm, taps, sc_tap, ho, wo, cp, pad_input):
    n, hs, ws_, ck = xs.shape
    kernel = _make_conv1_proj_kernel(taps, sc_tap, ho, wo, ck, pad_input)
    return pl.pallas_call(
        kernel,
        grid=(n,),
        in_specs=[pl.BlockSpec((None, hs, ws_, ck), lambda i: (i, 0, 0, 0)),
                  pl.BlockSpec(w1m.shape, lambda i: (0, 0)),
                  pl.BlockSpec(wsm.shape, lambda i: (0, 0))],
        out_specs=(pl.BlockSpec((None, ho, wo, cp), lambda i: (i, 0, 0, 0)),
                   pl.BlockSpec((None, ho, wo, cp), lambda i: (i, 0, 0, 0)),
                   pl.BlockSpec((8, cp), lambda i: (i, 0)),
                   pl.BlockSpec((8, cp), lambda i: (i, 0))),
        out_shape=(jax.ShapeDtypeStruct((n, ho, wo, cp), jnp.bfloat16),
                   jax.ShapeDtypeStruct((n, ho, wo, cp), jnp.bfloat16),
                   jax.ShapeDtypeStruct((n * 8, cp), jnp.float32),
                   jax.ShapeDtypeStruct((n * 8, cp), jnp.float32)),
        compiler_params=_CPARAMS,
    )(xs, w1m, wsm)


def _conv2_call(y1, w2m, scale1, shift1):
    n, ho, wo, cp = y1.shape
    kernel = _make_conv2_kernel(ho, wo, cp)
    return pl.pallas_call(
        kernel,
        grid=(n,),
        in_specs=[pl.BlockSpec((None, ho, wo, cp), lambda i: (i, 0, 0, 0)),
                  pl.BlockSpec(w2m.shape, lambda i: (0, 0)),
                  pl.BlockSpec((1, cp), lambda i: (0, 0)),
                  pl.BlockSpec((1, cp), lambda i: (0, 0))],
        out_specs=(pl.BlockSpec((None, ho, wo, cp), lambda i: (i, 0, 0, 0)),
                   pl.BlockSpec((8, cp), lambda i: (i, 0))),
        out_shape=(jax.ShapeDtypeStruct((n, ho, wo, cp), jnp.bfloat16),
                   jax.ShapeDtypeStruct((n * 8, cp), jnp.float32)),
        compiler_params=_CPARAMS,
    )(y1, w2m, scale1, shift1)


def _epi_id_call(y2, xsc, s2, b2):
    n, ho, wo, cp = y2.shape
    return pl.pallas_call(
        _epi_id_kernel,
        grid=(n,),
        in_specs=[pl.BlockSpec((None, ho, wo, cp), lambda i: (i, 0, 0, 0)),
                  pl.BlockSpec((None, ho, wo, cp), lambda i: (i, 0, 0, 0)),
                  pl.BlockSpec((1, cp), lambda i: (0, 0)),
                  pl.BlockSpec((1, cp), lambda i: (0, 0))],
        out_specs=pl.BlockSpec((None, ho, wo, cp), lambda i: (i, 0, 0, 0)),
        out_shape=jax.ShapeDtypeStruct((n, ho, wo, cp), jnp.bfloat16),
        compiler_params=_CPARAMS,
    )(y2, xsc, s2, b2)


def _epi_proj_call(y2, ysc, s2, b2, ss, bs):
    n, ho, wo, cp = y2.shape
    return pl.pallas_call(
        _epi_proj_kernel,
        grid=(n,),
        in_specs=[pl.BlockSpec((None, ho, wo, cp), lambda i: (i, 0, 0, 0)),
                  pl.BlockSpec((None, ho, wo, cp), lambda i: (i, 0, 0, 0)),
                  pl.BlockSpec((1, cp), lambda i: (0, 0)),
                  pl.BlockSpec((1, cp), lambda i: (0, 0)),
                  pl.BlockSpec((1, cp), lambda i: (0, 0)),
                  pl.BlockSpec((1, cp), lambda i: (0, 0))],
        out_specs=pl.BlockSpec((None, ho, wo, cp), lambda i: (i, 0, 0, 0)),
        out_shape=jax.ShapeDtypeStruct((n, ho, wo, cp), jnp.bfloat16),
        compiler_params=_CPARAMS,
    )(y2, ysc, s2, b2, ss, bs)


# ------------------------------- JAX glue ------------------------------------

def _finalize_bn(st, m_per, gamma_p, beta_p):
    """Combine per-step (sum, centered-M2) partials -> per-channel scale/shift."""
    cpad = st.shape[-1]
    stv = st.reshape(-1, 8, cpad)
    sums = stv[:, 0, :]                              # (steps, cp)
    m2s = stv[:, 1, :]
    count = stv.shape[0] * m_per
    mean = jnp.sum(sums, axis=0) / count
    means_i = sums / m_per
    var = (jnp.sum(m2s, axis=0)
           + m_per * jnp.sum(jnp.square(means_i - mean), axis=0)) / count
    var = jnp.maximum(var, 0.0)
    scale = gamma_p * jax.lax.rsqrt(var + EPS)
    shift = beta_p - mean * scale
    return scale.reshape(1, cpad), shift.reshape(1, cpad)


def _pad1d(v, cpad):
    return jnp.pad(v.astype(jnp.float32), (0, cpad - v.shape[0]))


@functools.partial(jax.jit, static_argnames=("stride",))
def basic_block_forward(x_nchw, params, stride):
    """ResNet BasicBlock forward. x: (N, Cin, H, W) f32 -> (N, planes, Ho, Wo) f32."""
    assert stride in (1, 2)
    x = jnp.transpose(x_nchw, (0, 2, 3, 1)).astype(jnp.float32)   # NHWC
    n, h, w, cin = x.shape
    planes = params["w1"].shape[0]
    # 256-wide alignment feeds the 2x256 MXU on v6e/v7x when channels allow.
    align = 256 if planes >= 256 else LANE
    cp = _round_up(planes, align)
    proj = (stride != 1) or (cin != planes)

    w1t = jnp.transpose(params["w1"], (2, 3, 1, 0)).astype(jnp.float32)  # (3,3,ci,o)

    if stride == 1:
        ho, wo = h, w
        ck1 = _round_up(cin, LANE)
        # channel-pad only; the zero ring for the 3x3 conv is added in-kernel
        xs = jnp.pad(x, ((0, 0), (0, 0), (0, 0), (0, ck1 - cin))).astype(jnp.bfloat16)
        taps1 = [(dy, dx) for dy in range(3) for dx in range(3)]
        w1m = jnp.pad(w1t, ((0, 0), (0, 0), (0, ck1 - cin), (0, cp - planes)))
        w1m = w1m.reshape(9 * ck1, cp).astype(jnp.bfloat16)
        pad_input = True
        sc_tap = (1, 1)                         # center tap == x[oy, ox]
        if proj:
            wsc_t = params["ws"].reshape(planes, cin).T.astype(jnp.float32)
            wsm = jnp.pad(wsc_t, ((0, ck1 - cin), (0, cp - planes))).astype(jnp.bfloat16)
    else:
        # stride-2 3x3 conv == stride-1 2x2 conv on the space-to-depth input.
        ho, wo = (h - 1) // 2 + 1, (w - 1) // 2 + 1
        hp2, wp2 = _round_up(h + 2, 2), _round_up(w + 2, 2)
        xp = jnp.pad(x, ((0, 0), (1, hp2 - h - 1), (1, wp2 - w - 1), (0, 0)))
        hs, ws_ = hp2 // 2, wp2 // 2
        xs4 = xp.reshape(n, hs, 2, ws_, 2, cin).transpose(0, 1, 3, 2, 4, 5)
        xs4 = xs4.reshape(n, hs, ws_, 4 * cin)                  # phase order (py,px)
        ck1 = _round_up(4 * cin, LANE)
        xs = jnp.pad(xs4, ((0, 0), (0, 0), (0, 0), (0, ck1 - 4 * cin))).astype(jnp.bfloat16)
        taps1 = [(ry, rx) for ry in range(2) for rx in range(2)]
        w1p = jnp.pad(w1t, ((0, 1), (0, 1), (0, 0), (0, 0)))    # (4,4,ci,o)
        w1s = w1p.reshape(2, 2, 2, 2, cin, planes).transpose(0, 2, 1, 3, 4, 5)
        w1s = w1s.reshape(2, 2, 4 * cin, planes)
        w1m = jnp.pad(w1s, ((0, 0), (0, 0), (0, ck1 - 4 * cin), (0, cp - planes)))
        w1m = w1m.reshape(4 * ck1, cp).astype(jnp.bfloat16)
        pad_input = False
        sc_tap = (0, 0)                         # x[2oy, 2ox] == phase (1,1) channels
        wsc_t = params["ws"].reshape(planes, cin).T.astype(jnp.float32)
        wsm = jnp.pad(wsc_t, ((3 * cin, ck1 - 4 * cin), (0, cp - planes))).astype(jnp.bfloat16)

    m_per = ho * wo
    g1, b1 = _pad1d(params["g1"], cp), _pad1d(params["b1"], cp)
    g2, b2 = _pad1d(params["g2"], cp), _pad1d(params["b2"], cp)

    # ---- conv1 (direct conv, + fused 1x1 projection) + BN1 partials ----
    if proj:
        y1, ysc, st1, stsc = _conv1_proj_call(xs, w1m, wsm, taps1, sc_tap, ho, wo, cp,
                                              pad_input)
        gs, bs = _pad1d(params["gs"], cp), _pad1d(params["bs"], cp)
        ss, bsh = _finalize_bn(stsc, m_per, gs, bs)
    else:
        y1, st1 = _conv1_call(xs, w1m, taps1, ho, wo, cp, pad_input)
    s1, sh1 = _finalize_bn(st1, m_per, g1, b1)

    # ---- conv2 with fused BN1-apply + ReLU on the resident slab ----
    w2t = jnp.transpose(params["w2"], (2, 3, 1, 0)).astype(jnp.float32)
    w2m = jnp.pad(w2t, ((0, 0), (0, 0), (0, cp - planes), (0, cp - planes)))
    w2m = w2m.reshape(9 * cp, cp).astype(jnp.bfloat16)
    y2, st2 = _conv2_call(y1, w2m, s1, sh1)
    s2, sh2 = _finalize_bn(st2, m_per, g2, b2)

    # ---- fused BN2 + shortcut add + ReLU epilogue ----
    if proj:
        out = _epi_proj_call(y2, ysc, s2, sh2, ss, bsh)
    else:
        out = _epi_id_call(y2, xs, s2, sh2)     # identity shortcut read as bf16

    out = out[..., :planes].astype(jnp.float32)
    return jnp.transpose(out, (0, 3, 1, 2))     # back to NCHW


# -------------------------- params & reference -------------------------------

def make_params(key, in_planes, planes, stride):
    ks = jax.random.split(key, 12)
    p = {
        "w1": 0.2 * jax.random.normal(ks[0], (planes, in_planes, 3, 3), jnp.float32),
        "g1": 1.0 + 0.1 * jax.random.normal(ks[1], (planes,), jnp.float32),
        "b1": 0.1 * jax.random.normal(ks[2], (planes,), jnp.float32),
        "w2": 0.2 * jax.random.normal(ks[3], (planes, planes, 3, 3), jnp.float32),
        "g2": 1.0 + 0.1 * jax.random.normal(ks[4], (planes,), jnp.float32),
        "b2": 0.1 * jax.random.normal(ks[5], (planes,), jnp.float32),
    }
    if stride != 1 or in_planes != planes:
        p["ws"] = 0.2 * jax.random.normal(ks[6], (planes, in_planes, 1, 1), jnp.float32)
        p["gs"] = 1.0 + 0.1 * jax.random.normal(ks[7], (planes,), jnp.float32)
        p["bs"] = 0.1 * jax.random.normal(ks[8], (planes,), jnp.float32)
    return p


def ref_forward(x, params, stride):
    """Pure-JAX f32 reference (mirrors the PyTorch module, training-mode BN)."""
    def bn(y, g, b):
        mean = jnp.mean(y, axis=(0, 2, 3), keepdims=True)
        var = jnp.mean(jnp.square(y - mean), axis=(0, 2, 3), keepdims=True)
        return (y - mean) * jax.lax.rsqrt(var + EPS) * g.reshape(1, -1, 1, 1) \
            + b.reshape(1, -1, 1, 1)

    def conv(x_, w_, s, pad):
        return jax.lax.conv_general_dilated(
            x_, w_, (s, s), ((pad, pad), (pad, pad)),
            dimension_numbers=("NCHW", "OIHW", "NCHW"),
            precision=jax.lax.Precision.HIGHEST)

    out = jax.nn.relu(bn(conv(x, params["w1"], stride, 1), params["g1"], params["b1"]))
    out = bn(conv(out, params["w2"], 1, 1), params["g2"], params["b2"])
    if "ws" in params:
        sc = bn(conv(x, params["ws"], stride, 0), params["gs"], params["bs"])
    else:
        sc = x
    return jax.nn.relu(out + sc)


# ---------------------------------- main --------------------------------------

if __name__ == "__main__":
    key = jax.random.PRNGKey(0)
    kx, kp1, kp2 = jax.random.split(key, 3)
    x = jax.random.normal(kx, (2, 4, 16, 16), jnp.float32)  # NCHW, like PyTorch

    # bf16 MXU operands / bf16 activations vs an f32 HIGHEST-precision
    # reference -> tolerance a few e-2 at these O(1) post-BN magnitudes.
    ATOL = RTOL = 3e-2

    # Case 1: projection shortcut (stride=2, channels 4 -> 8), s2d conv1 path.
    params_a = make_params(kp1, in_planes=4, planes=8, stride=2)
    out_a = jax.block_until_ready(basic_block_forward(x, params_a, stride=2))
    ref_a = ref_forward(x, params_a, 2)
    assert out_a.shape == (2, 8, 8, 8), out_a.shape
    assert jnp.allclose(out_a, ref_a, atol=ATOL, rtol=RTOL), \
        float(jnp.max(jnp.abs(out_a - ref_a)))

    # Case 2: identity shortcut (stride=1, in_planes == planes).
    params_b = make_params(kp2, in_planes=4, planes=4, stride=1)
    out_b = jax.block_until_ready(basic_block_forward(x, params_b, stride=1))
    ref_b = ref_forward(x, params_b, 1)
    assert out_b.shape == (2, 4, 16, 16), out_b.shape
    assert jnp.allclose(out_b, ref_b, atol=ATOL, rtol=RTOL), \
        float(jnp.max(jnp.abs(out_b - ref_b)))

    print("KERNEL_OK")
</pallas_src>

<mosaic_0001>
module attributes {stable_mosaic.version = 11 : i64} {
  func.func @kernel(%arg0: i32, %arg1: memref<1x9x9x128xbf16, #tpu.memory_space<vmem>>, %arg2: memref<512x128xbf16, #tpu.memory_space<vmem>>, %arg3: memref<128x128xbf16, #tpu.memory_space<vmem>>, %arg4: memref<1x8x8x128xbf16, #tpu.memory_space<vmem>>, %arg5: memref<1x8x8x128xbf16, #tpu.memory_space<vmem>>, %arg6: memref<8x128xf32, #tpu.memory_space<vmem>>, %arg7: memref<8x128xf32, #tpu.memory_space<vmem>>) attributes {dimension_semantics = [#tpu.dimension_semantics<parallel>], iteration_bounds = array<i64: 2>, scalar_prefetch = 0 : i64, scratch_operands = 0 : i64, tpu.core_type = #tpu.core_type<tc>, window_params = [{transform_indices = @transform_0, window_bounds = array<i64: 1, 9, 9, 128>}, {pipeline_mode = #tpu.pipeline_mode<synchronous>, transform_indices = @transform_1, window_bounds = array<i64: 512, 128>}, {pipeline_mode = #tpu.pipeline_mode<synchronous>, transform_indices = @transform_2, window_bounds = array<i64: 128, 128>}, {transform_indices = @transform_3, window_bounds = array<i64: 1, 8, 8, 128>}, {transform_indices = @transform_4, window_bounds = array<i64: 1, 8, 8, 128>}, {transform_indices = @transform_5, window_bounds = array<i64: 8, 128>}, {transform_indices = @transform_6, window_bounds = array<i64: 8, 128>}]} {
    %c0 = arith.constant 0 : index
    %c0_0 = arith.constant 0 : index
    %c0_1 = arith.constant 0 : index
    %c0_2 = arith.constant 0 : index
    %0 = vector.load %arg1[%c0, %c0_0, %c0_1, %c0_2] : memref<1x9x9x128xbf16, #tpu.memory_space<vmem>>, vector<1x9x9x128xbf16>
    %1 = vector.shape_cast %0 : vector<1x9x9x128xbf16> to vector<9x9x128xbf16>
    %2 = vector.extract_strided_slice %1 {offsets = [0, 0, 0], sizes = [8, 8, 128], strides = [1, 1, 1]} : vector<9x9x128xbf16> to vector<8x8x128xbf16>
    %3 = vector.shape_cast %2 : vector<8x8x128xbf16> to vector<64x128xbf16>
    %c0_3 = arith.constant 0 : index
    %c0_4 = arith.constant 0 : index
    %4 = vector.load %arg2[%c0_3, %c0_4] : memref<512x128xbf16, #tpu.memory_space<vmem>>, vector<128x128xbf16>
    %cst = arith.constant dense<0.000000e+00> : vector<64x128xf32>
    %5 = tpu.matmul %3, %4, %cst {dimension_numbers = #tpu.dot_dimension_numbers<[1], [0], [0], [1], [0, 0, 1, 1], [], []>} : vector<64x128xbf16>, vector<128x128xbf16>, vector<64x128xf32> -> vector<64x128xf32>
    %6 = vector.extract_strided_slice %1 {offsets = [0, 1, 0], sizes = [8, 8, 128], strides = [1, 1, 1]} : vector<9x9x128xbf16> to vector<8x8x128xbf16>
    %7 = vector.shape_cast %6 : vector<8x8x128xbf16> to vector<64x128xbf16>
    %c128 = arith.constant 128 : index
    %c0_5 = arith.constant 0 : index
    %8 = vector.load %arg2[%c128, %c0_5] : memref<512x128xbf16, #tpu.memory_space<vmem>>, vector<128x128xbf16>
    %cst_6 = arith.constant dense<0.000000e+00> : vector<64x128xf32>
    %9 = tpu.matmul %7, %8, %cst_6 {dimension_numbers = #tpu.dot_dimension_numbers<[1], [0], [0], [1], [0, 0, 1, 1], [], []>} : vector<64x128xbf16>, vector<128x128xbf16>, vector<64x128xf32> -> vector<64x128xf32>
    %10 = arith.addf %5, %9 : vector<64x128xf32>
    %11 = vector.extract_strided_slice %1 {offsets = [1, 0, 0], sizes = [8, 8, 128], strides = [1, 1, 1]} : vector<9x9x128xbf16> to vector<8x8x128xbf16>
    %12 = vector.shape_cast %11 : vector<8x8x128xbf16> to vector<64x128xbf16>
    %c256 = arith.constant 256 : index
    %c0_7 = arith.constant 0 : index
    %13 = vector.load %arg2[%c256, %c0_7] : memref<512x128xbf16, #tpu.memory_space<vmem>>, vector<128x128xbf16>
    %cst_8 = arith.constant dense<0.000000e+00> : vector<64x128xf32>
    %14 = tpu.matmul %12, %13, %cst_8 {dimension_numbers = #tpu.dot_dimension_numbers<[1], [0], [0], [1], [0, 0, 1, 1], [], []>} : vector<64x128xbf16>, vector<128x128xbf16>, vector<64x128xf32> -> vector<64x128xf32>
    %15 = arith.addf %10, %14 : vector<64x128xf32>
    %16 = vector.extract_strided_slice %1 {offsets = [1, 1, 0], sizes = [8, 8, 128], strides = [1, 1, 1]} : vector<9x9x128xbf16> to vector<8x8x128xbf16>
    %17 = vector.shape_cast %16 : vector<8x8x128xbf16> to vector<64x128xbf16>
    %c384 = arith.constant 384 : index
    %c0_9 = arith.constant 0 : index
    %18 = vector.load %arg2[%c384, %c0_9] : memref<512x128xbf16, #tpu.memory_space<vmem>>, vector<128x128xbf16>
    %cst_10 = arith.constant dense<0.000000e+00> : vector<64x128xf32>
    %19 = tpu.matmul %17, %18, %cst_10 {dimension_numbers = #tpu.dot_dimension_numbers<[1], [0], [0], [1], [0, 0, 1, 1], [], []>} : vector<64x128xbf16>, vector<128x128xbf16>, vector<64x128xf32> -> vector<64x128xf32>
    %20 = arith.addf %15, %19 : vector<64x128xf32>
    %21 = arith.truncf %20 : vector<64x128xf32> to vector<64x128xbf16>
    %22 = vector.shape_cast %21 : vector<64x128xbf16> to vector<8x8x128xbf16>
    %c0_11 = arith.constant 0 : index
    %c0_12 = arith.constant 0 : index
    %c0_13 = arith.constant 0 : index
    %c0_14 = arith.constant 0 : index
    %23 = vector.load %arg4[%c0_11, %c0_12, %c0_13, %c0_14] : memref<1x8x8x128xbf16, #tpu.memory_space<vmem>>, vector<1x8x8x128xbf16>
    %24 = vector.shape_cast %23 : vector<1x8x8x128xbf16> to vector<8x8x128xbf16>
    %25 = vector.shape_cast %22 : vector<8x8x128xbf16> to vector<1x8x8x128xbf16>
    tpu.vector_store %arg4[%c0_11, %c0_12, %c0_13, %c0_14], %25 {strides = array<i32>} : memref<1x8x8x128xbf16, #tpu.memory_space<vmem>>, vector<1x8x8x128xbf16>,
    %26 = arith.extf %21 : vector<64x128xbf16> to vector<64x128xf32>
    %cst_15 = arith.constant dense<0.000000e+00> : vector<128xf32>
    %27 = vector.multi_reduction <add>, %26, %cst_15 [0] : vector<64x128xf32> to vector<128xf32>
    %28 = vector.shape_cast %27 : vector<128xf32> to vector<1x128xf32>
    %cst_16 = arith.constant 1.562500e-02 : f32
    %29 = vector.broadcast %cst_16 : f32 to vector<1x128xf32>
    %30 = arith.mulf %28, %29 : vector<1x128xf32>
    %31 = vector.broadcast %30 : vector<1x128xf32> to vector<64x128xf32>
    %32 = arith.subf %26, %31 : vector<64x128xf32>
    %33 = arith.mulf %32, %32 : vector<64x128xf32>
    %cst_17 = arith.constant dense<0.000000e+00> : vector<128xf32>
    %34 = vector.multi_reduction <add>, %33, %cst_17 [0] : vector<64x128xf32> to vector<128xf32>
    %35 = vector.shape_cast %34 : vector<128xf32> to vector<1x128xf32>
    %cst_18 = arith.constant 0.000000e+00 : f32
    %36 = vector.broadcast %cst_18 : f32 to vector<6x128xf32>
    %37 = tpu.concatenate %28, %35, %36 in 0 : vector<1x128xf32>, vector<1x128xf32>, vector<6x128xf32> -> vector<8x128xf32>
    %c0_19 = arith.constant 0 : index
    %c0_20 = arith.constant 0 : index
    %38 = vector.load %arg6[%c0_19, %c0_20] : memref<8x128xf32, #tpu.memory_space<vmem>>, vector<8x128xf32>
    tpu.vector_store %arg6[%c0_19, %c0_20], %37 {strides = array<i32>} : memref<8x128xf32, #tpu.memory_space<vmem>>, vector<8x128xf32>,
    %39 = vector.extract_strided_slice %1 {offsets = [0, 0, 0], sizes = [8, 8, 128], strides = [1, 1, 1]} : vector<9x9x128xbf16> to vector<8x8x128xbf16>
    %40 = vector.shape_cast %39 : vector<8x8x128xbf16> to vector<64x128xbf16>
    %c0_21 = arith.constant 0 : index
    %c0_22 = arith.constant 0 : index
    %41 = vector.load %arg3[%c0_21, %c0_22] : memref<128x128xbf16, #tpu.memory_space<vmem>>, vector<128x128xbf16>
    %cst_23 = arith.constant dense<0.000000e+00> : vector<64x128xf32>
    %42 = tpu.matmul %40, %41, %cst_23 {dimension_numbers = #tpu.dot_dimension_numbers<[1], [0], [0], [1], [0, 0, 1, 1], [], []>} : vector<64x128xbf16>, vector<128x128xbf16>, vector<64x128xf32> -> vector<64x128xf32>
    %43 = arith.truncf %42 : vector<64x128xf32> to vector<64x128xbf16>
    %44 = vector.shape_cast %43 : vector<64x128xbf16> to vector<8x8x128xbf16>
    %c0_24 = arith.constant 0 : index
    %c0_25 = arith.constant 0 : index
    %c0_26 = arith.constant 0 : index
    %c0_27 = arith.constant 0 : index
    %45 = vector.load %arg5[%c0_24, %c0_25, %c0_26, %c0_27] : memref<1x8x8x128xbf16, #tpu.memory_space<vmem>>, vector<1x8x8x128xbf16>
    %46 = vector.shape_cast %45 : vector<1x8x8x128xbf16> to vector<8x8x128xbf16>
    %47 = vector.shape_cast %44 : vector<8x8x128xbf16> to vector<1x8x8x128xbf16>
    tpu.vector_store %arg5[%c0_24, %c0_25, %c0_26, %c0_27], %47 {strides = array<i32>} : memref<1x8x8x128xbf16, #tpu.memory_space<vmem>>, vector<1x8x8x128xbf16>,
    %48 = arith.extf %43 : vector<64x128xbf16> to vector<64x128xf32>
    %cst_28 = arith.constant dense<0.000000e+00> : vector<128xf32>
    %49 = vector.multi_reduction <add>, %48, %cst_28 [0] : vector<64x128xf32> to vector<128xf32>
    %50 = vector.shape_cast %49 : vector<128xf32> to vector<1x128xf32>
    %cst_29 = arith.constant 1.562500e-02 : f32
    %51 = vector.broadcast %cst_29 : f32 to vector<1x128xf32>
    %52 = arith.mulf %50, %51 : vector<1x128xf32>
    %53 = vector.broadcast %52 : vector<1x128xf32> to vector<64x128xf32>
    %54 = arith.subf %48, %53 : vector<64x128xf32>
    %55 = arith.mulf %54, %54 : vector<64x128xf32>
    %cst_30 = arith.constant dense<0.000000e+00> : vector<128xf32>
    %56 = vector.multi_reduction <add>, %55, %cst_30 [0] : vector<64x128xf32> to vector<128xf32>
    %57 = vector.shape_cast %56 : vector<128xf32> to vector<1x128xf32>
    %cst_31 = arith.constant 0.000000e+00 : f32
    %58 = vector.broadcast %cst_31 : f32 to vector<6x128xf32>
    %59 = tpu.concatenate %50, %57, %58 in 0 : vector<1x128xf32>, vector<1x128xf32>, vector<6x128xf32> -> vector<8x128xf32>
    %c0_32 = arith.constant 0 : index
    %c0_33 = arith.constant 0 : index
    %60 = vector.load %arg7[%c0_32, %c0_33] : memref<8x128xf32, #tpu.memory_space<vmem>>, vector<8x128xf32>
    tpu.vector_store %arg7[%c0_32, %c0_33], %59 {strides = array<i32>} : memref<8x128xf32, #tpu.memory_space<vmem>>, vector<8x128xf32>,
    return
  }
  func.func @transform_0(%arg0: i32) -> (i32, i32, i32, i32) {
    %c0_i32 = arith.constant 0 : i32
    %c0_i32_0 = arith.constant 0 : i32
    %c0_i32_1 = arith.constant 0 : i32
    %c0_i32_2 = arith.constant 0 : i32
    return %arg0, %c0_i32, %c0_i32_0, %c0_i32_1 : i32, i32, i32, i32
  }
  func.func @transform_1(%arg0: i32) -> (i32, i32) {
    %c0_i32 = arith.constant 0 : i32
    %c0_i32_0 = arith.constant 0 : i32
    %c0_i32_1 = arith.constant 0 : i32
    return %c0_i32, %c0_i32_0 : i32, i32
  }
  func.func @transform_2(%arg0: i32) -> (i32, i32) {
    %c0_i32 = arith.constant 0 : i32
    %c0_i32_0 = arith.constant 0 : i32
    %c0_i32_1 = arith.constant 0 : i32
    return %c0_i32, %c0_i32_0 : i32, i32
  }
  func.func @transform_3(%arg0: i32) -> (i32, i32, i32, i32) {
    %c0_i32 = arith.constant 0 : i32
    %c0_i32_0 = arith.constant 0 : i32
    %c0_i32_1 = arith.constant 0 : i32
    %c0_i32_2 = arith.constant 0 : i32
    return %arg0, %c0_i32, %c0_i32_0, %c0_i32_1 : i32, i32, i32, i32
  }
  func.func @transform_4(%arg0: i32) -> (i32, i32, i32, i32) {
    %c0_i32 = arith.constant 0 : i32
    %c0_i32_0 = arith.constant 0 : i32
    %c0_i32_1 = arith.constant 0 : i32
    %c0_i32_2 = arith.constant 0 : i32
    return %arg0, %c0_i32, %c0_i32_0, %c0_i32_1 : i32, i32, i32, i32
  }
  func.func @transform_5(%arg0: i32) -> (i32, i32) {
    %c0_i32 = arith.constant 0 : i32
    %c0_i32_0 = arith.constant 0 : i32
    return %arg0, %c0_i32 : i32, i32
  }
  func.func @transform_6(%arg0: i32) -> (i32, i32) {
    %c0_i32 = arith.constant 0 : i32
    %c0_i32_0 = arith.constant 0 : i32
    return %arg0, %c0_i32 : i32, i32
  }
}

module attributes {stable_mosaic.version = 11 : i64} {
  func.func @kernel(%arg0: i32, %arg1: memref<1x8x8x128xbf16, #tpu.memory_space<vmem>>, %arg2: memref<1152x128xbf16, #tpu.memory_space<vmem>>, %arg3: memref<1x128xf32, #tpu.memory_space<vmem>>, %arg4: memref<1x128xf32, #tpu.memory_space<vmem>>, %arg5: memref<1x8x8x128xbf16, #tpu.memory_space<vmem>>, %arg6: memref<8x128xf32, #tpu.memory_space<vmem>>) attributes {dimension_semantics = [#tpu.dimension_semantics<parallel>], iteration_bounds = array<i64: 2>, scalar_prefetch = 0 : i64, scratch_operands = 0 : i64, tpu.core_type = #tpu.core_type<tc>, window_params = [{transform_indices = @transform_0, window_bounds = array<i64: 1, 8, 8, 128>}, {pipeline_mode = #tpu.pipeline_mode<synchronous>, transform_indices = @transform_1, window_bounds = array<i64: 1152, 128>}, {pipeline_mode = #tpu.pipeline_mode<synchronous>, transform_indices = @transform_2, window_bounds = array<i64: 1, 128>}, {pipeline_mode = #tpu.pipeline_mode<synchronous>, transform_indices = @transform_3, window_bounds = array<i64: 1, 128>}, {transform_indices = @transform_4, window_bounds = array<i64: 1, 8, 8, 128>}, {transform_indices = @transform_5, window_bounds = array<i64: 8, 128>}]} {
    %c0 = arith.constant 0 : index
    %c0_0 = arith.constant 0 : index
    %c0_1 = arith.constant 0 : index
    %c0_2 = arith.constant 0 : index
    %0 = vector.load %arg1[%c0, %c0_0, %c0_1, %c0_2] : memref<1x8x8x128xbf16, #tpu.memory_space<vmem>>, vector<1x8x8x128xbf16>
    %1 = vector.shape_cast %0 : vector<1x8x8x128xbf16> to vector<8x8x128xbf16>
    %2 = arith.extf %1 : vector<8x8x128xbf16> to vector<8x8x128xf32>
    %c0_3 = arith.constant 0 : index
    %c0_4 = arith.constant 0 : index
    %3 = vector.load %arg3[%c0_3, %c0_4] : memref<1x128xf32, #tpu.memory_space<vmem>>, vector<1x128xf32>
    %4 = vector.shape_cast %3 : vector<1x128xf32> to vector<1x1x128xf32>
    %5 = vector.broadcast %4 : vector<1x1x128xf32> to vector<8x8x128xf32>
    %6 = arith.mulf %2, %5 : vector<8x8x128xf32>
    %c0_5 = arith.constant 0 : index
    %c0_6 = arith.constant 0 : index
    %7 = vector.load %arg4[%c0_5, %c0_6] : memref<1x128xf32, #tpu.memory_space<vmem>>, vector<1x128xf32>
    %8 = vector.shape_cast %7 : vector<1x128xf32> to vector<1x1x128xf32>
    %9 = vector.broadcast %8 : vector<1x1x128xf32> to vector<8x8x128xf32>
    %10 = arith.addf %6, %9 : vector<8x8x128xf32>
    %cst = arith.constant 0.000000e+00 : f32
    %11 = vector.broadcast %cst : f32 to vector<8x8x128xf32>
    %12 = arith.maximumf %10, %11 : vector<8x8x128xf32>
    %cst_7 = arith.constant 0.000000e+00 : f32
    %13 = vector.broadcast %cst_7 : f32 to vector<1x8x128xf32>
    %14 = tpu.concatenate %13, %12, %13 in 0 : vector<1x8x128xf32>, vector<8x8x128xf32>, vector<1x8x128xf32> -> vector<10x8x128xf32>
    %cst_8 = arith.constant 0.000000e+00 : f32
    %15 = vector.broadcast %cst_8 : f32 to vector<10x1x128xf32>
    %16 = tpu.concatenate %15, %14, %15 in 1 : vector<10x1x128xf32>, vector<10x8x128xf32>, vector<10x1x128xf32> -> vector<10x10x128xf32>
    %17 = arith.truncf %16 : vector<10x10x128xf32> to vector<10x10x128xbf16>
    %18 = vector.extract_strided_slice %17 {offsets = [0, 0, 0], sizes = [8, 8, 128], strides = [1, 1, 1]} : vector<10x10x128xbf16> to vector<8x8x128xbf16>
    %19 = vector.shape_cast %18 : vector<8x8x128xbf16> to vector<64x128xbf16>
    %c0_9 = arith.constant 0 : index
    %c0_10 = arith.constant 0 : index
    %20 = vector.load %arg2[%c0_9, %c0_10] : memref<1152x128xbf16, #tpu.memory_space<vmem>>, vector<128x128xbf16>
    %cst_11 = arith.constant dense<0.000000e+00> : vector<64x128xf32>
    %21 = tpu.matmul %19, %20, %cst_11 {dimension_numbers = #tpu.dot_dimension_numbers<[1], [0], [0], [1], [0, 0, 1, 1], [], []>} : vector<64x128xbf16>, vector<128x128xbf16>, vector<64x128xf32> -> vector<64x128xf32>
    %22 = vector.extract_strided_slice %17 {offsets = [0, 1, 0], sizes = [8, 8, 128], strides = [1, 1, 1]} : vector<10x10x128xbf16> to vector<8x8x128xbf16>
    %23 = vector.shape_cast %22 : vector<8x8x128xbf16> to vector<64x128xbf16>
    %c128 = arith.constant 128 : index
    %c0_12 = arith.constant 0 : index
    %24 = vector.load %arg2[%c128, %c0_12] : memref<1152x128xbf16, #tpu.memory_space<vmem>>, vector<128x128xbf16>
    %cst_13 = arith.constant dense<0.000000e+00> : vector<64x128xf32>
    %25 = tpu.matmul %23, %24, %cst_13 {dimension_numbers = #tpu.dot_dimension_numbers<[1], [0], [0], [1], [0, 0, 1, 1], [], []>} : vector<64x128xbf16>, vector<128x128xbf16>, vector<64x128xf32> -> vector<64x128xf32>
    %26 = arith.addf %21, %25 : vector<64x128xf32>
    %27 = vector.extract_strided_slice %17 {offsets = [0, 2, 0], sizes = [8, 8, 128], strides = [1, 1, 1]} : vector<10x10x128xbf16> to vector<8x8x128xbf16>
    %28 = vector.shape_cast %27 : vector<8x8x128xbf16> to vector<64x128xbf16>
    %c256 = arith.constant 256 : index
    %c0_14 = arith.constant 0 : index
    %29 = vector.load %arg2[%c256, %c0_14] : memref<1152x128xbf16, #tpu.memory_space<vmem>>, vector<128x128xbf16>
    %cst_15 = arith.constant dense<0.000000e+00> : vector<64x128xf32>
    %30 = tpu.matmul %28, %29, %cst_15 {dimension_numbers = #tpu.dot_dimension_numbers<[1], [0], [0], [1], [0, 0, 1, 1], [], []>} : vector<64x128xbf16>, vector<128x128xbf16>, vector<64x128xf32> -> vector<64x128xf32>
    %31 = arith.addf %26, %30 : vector<64x128xf32>
    %32 = vector.extract_strided_slice %17 {offsets = [1, 0, 0], sizes = [8, 8, 128], strides = [1, 1, 1]} : vector<10x10x128xbf16> to vector<8x8x128xbf16>
    %33 = vector.shape_cast %32 : vector<8x8x128xbf16> to vector<64x128xbf16>
    %c384 = arith.constant 384 : index
    %c0_16 = arith.constant 0 : index
    %34 = vector.load %arg2[%c384, %c0_16] : memref<1152x128xbf16, #tpu.memory_space<vmem>>, vector<128x128xbf16>
    %cst_17 = arith.constant dense<0.000000e+00> : vector<64x128xf32>
    %35 = tpu.matmul %33, %34, %cst_17 {dimension_numbers = #tpu.dot_dimension_numbers<[1], [0], [0], [1], [0, 0, 1, 1], [], []>} : vector<64x128xbf16>, vector<128x128xbf16>, vector<64x128xf32> -> vector<64x128xf32>
    %36 = arith.addf %31, %35 : vector<64x128xf32>
    %37 = vector.extract_strided_slice %17 {offsets = [1, 1, 0], sizes = [8, 8, 128], strides = [1, 1, 1]} : vector<10x10x128xbf16> to vector<8x8x128xbf16>
    %38 = vector.shape_cast %37 : vector<8x8x128xbf16> to vector<64x128xbf16>
    %c512 = arith.constant 512 : index
    %c0_18 = arith.constant 0 : index
    %39 = vector.load %arg2[%c512, %c0_18] : memref<1152x128xbf16, #tpu.memory_space<vmem>>, vector<128x128xbf16>
    %cst_19 = arith.constant dense<0.000000e+00> : vector<64x128xf32>
    %40 = tpu.matmul %38, %39, %cst_19 {dimension_numbers = #tpu.dot_dimension_numbers<[1], [0], [0], [1], [0, 0, 1, 1], [], []>} : vector<64x128xbf16>, vector<128x128xbf16>, vector<64x128xf32> -> vector<64x128xf32>
    %41 = arith.addf %36, %40 : vector<64x128xf32>
    %42 = vector.extract_strided_slice %17 {offsets = [1, 2, 0], sizes = [8, 8, 128], strides = [1, 1, 1]} : vector<10x10x128xbf16> to vector<8x8x128xbf16>
    %43 = vector.shape_cast %42 : vector<8x8x128xbf16> to vector<64x128xbf16>
    %c640 = arith.constant 640 : index
    %c0_20 = arith.constant 0 : index
    %44 = vector.load %arg2[%c640, %c0_20] : memref<1152x128xbf16, #tpu.memory_space<vmem>>, vector<128x128xbf16>
    %cst_21 = arith.constant dense<0.000000e+00> : vector<64x128xf32>
    %45 = tpu.matmul %43, %44, %cst_21 {dimension_numbers = #tpu.dot_dimension_numbers<[1], [0], [0], [1], [0, 0, 1, 1], [], []>} : vector<64x128xbf16>, vector<128x128xbf16>, vector<64x128xf32> -> vector<64x128xf32>
    %46 = arith.addf %41, %45 : vector<64x128xf32>
    %47 = vector.extract_strided_slice %17 {offsets = [2, 0, 0], sizes = [8, 8, 128], strides = [1, 1, 1]} : vector<10x10x128xbf16> to vector<8x8x128xbf16>
    %48 = vector.shape_cast %47 : vector<8x8x128xbf16> to vector<64x128xbf16>
    %c768 = arith.constant 768 : index
    %c0_22 = arith.constant 0 : index
    %49 = vector.load %arg2[%c768, %c0_22] : memref<1152x128xbf16, #tpu.memory_space<vmem>>, vector<128x128xbf16>
    %cst_23 = arith.constant dense<0.000000e+00> : vector<64x128xf32>
    %50 = tpu.matmul %48, %49, %cst_23 {dimension_numbers = #tpu.dot_dimension_numbers<[1], [0], [0], [1], [0, 0, 1, 1], [], []>} : vector<64x128xbf16>, vector<128x128xbf16>, vector<64x128xf32> -> vector<64x128xf32>
    %51 = arith.addf %46, %50 : vector<64x128xf32>
    %52 = vector.extract_strided_slice %17 {offsets = [2, 1, 0], sizes = [8, 8, 128], strides = [1, 1, 1]} : vector<10x10x128xbf16> to vector<8x8x128xbf16>
    %53 = vector.shape_cast %52 : vector<8x8x128xbf16> to vector<64x128xbf16>
    %c896 = arith.constant 896 : index
    %c0_24 = arith.constant 0 : index
    %54 = vector.load %arg2[%c896, %c0_24] : memref<1152x128xbf16, #tpu.memory_space<vmem>>, vector<128x128xbf16>
    %cst_25 = arith.constant dense<0.000000e+00> : vector<64x128xf32>
    %55 = tpu.matmul %53, %54, %cst_25 {dimension_numbers = #tpu.dot_dimension_numbers<[1], [0], [0], [1], [0, 0, 1, 1], [], []>} : vector<64x128xbf16>, vector<128x128xbf16>, vector<64x128xf32> -> vector<64x128xf32>
    %56 = arith.addf %51, %55 : vector<64x128xf32>
    %57 = vector.extract_strided_slice %17 {offsets = [2, 2, 0], sizes = [8, 8, 128], strides = [1, 1, 1]} : vector<10x10x128xbf16> to vector<8x8x128xbf16>
    %58 = vector.shape_cast %57 : vector<8x8x128xbf16> to vector<64x128xbf16>
    %c1024 = arith.constant 1024 : index
    %c0_26 = arith.constant 0 : index
    %59 = vector.load %arg2[%c1024, %c0_26] : memref<1152x128xbf16, #tpu.memory_space<vmem>>, vector<128x128xbf16>
    %cst_27 = arith.constant dense<0.000000e+00> : vector<64x128xf32>
    %60 = tpu.matmul %58, %59, %cst_27 {dimension_numbers = #tpu.dot_dimension_numbers<[1], [0], [0], [1], [0, 0, 1, 1], [], []>} : vector<64x128xbf16>, vector<128x128xbf16>, vector<64x128xf32> -> vector<64x128xf32>
    %61 = arith.addf %56, %60 : vector<64x128xf32>
    %62 = arith.truncf %61 : vector<64x128xf32> to vector<64x128xbf16>
    %63 = vector.shape_cast %62 : vector<64x128xbf16> to vector<8x8x128xbf16>
    %c0_28 = arith.constant 0 : index
    %c0_29 = arith.constant 0 : index
    %c0_30 = arith.constant 0 : index
    %c0_31 = arith.constant 0 : index
    %64 = vector.load %arg5[%c0_28, %c0_29, %c0_30, %c0_31] : memref<1x8x8x128xbf16, #tpu.memory_space<vmem>>, vector<1x8x8x128xbf16>
    %65 = vector.shape_cast %64 : vector<1x8x8x128xbf16> to vector<8x8x128xbf16>
    %66 = vector.shape_cast %63 : vector<8x8x128xbf16> to vector<1x8x8x128xbf16>
    tpu.vector_store %arg5[%c0_28, %c0_29, %c0_30, %c0_31], %66 {strides = array<i32>} : memref<1x8x8x128xbf16, #tpu.memory_space<vmem>>, vector<1x8x8x128xbf16>,
    %67 = arith.extf %62 : vector<64x128xbf16> to vector<64x128xf32>
    %cst_32 = arith.constant dense<0.000000e+00> : vector<128xf32>
    %68 = vector.multi_reduction <add>, %67, %cst_32 [0] : vector<64x128xf32> to vector<128xf32>
    %69 = vector.shape_cast %68 : vector<128xf32> to vector<1x128xf32>
    %cst_33 = arith.constant 1.562500e-02 : f32
    %70 = vector.broadcast %cst_33 : f32 to vector<1x128xf32>
    %71 = arith.mulf %69, %70 : vector<1x128xf32>
    %72 = vector.broadcast %71 : vector<1x128xf32> to vector<64x128xf32>
    %73 = arith.subf %67, %72 : vector<64x128xf32>
    %74 = arith.mulf %73, %73 : vector<64x128xf32>
    %cst_34 = arith.constant dense<0.000000e+00> : vector<128xf32>
    %75 = vector.multi_reduction <add>, %74, %cst_34 [0] : vector<64x128xf32> to vector<128xf32>
    %76 = vector.shape_cast %75 : vector<128xf32> to vector<1x128xf32>
    %cst_35 = arith.constant 0.000000e+00 : f32
    %77 = vector.broadcast %cst_35 : f32 to vector<6x128xf32>
    %78 = tpu.concatenate %69, %76, %77 in 0 : vector<1x128xf32>, vector<1x128xf32>, vector<6x128xf32> -> vector<8x128xf32>
    %c0_36 = arith.constant 0 : index
    %c0_37 = arith.constant 0 : index
    %79 = vector.load %arg6[%c0_36, %c0_37] : memref<8x128xf32, #tpu.memory_space<vmem>>, vector<8x128xf32>
    tpu.vector_store %arg6[%c0_36, %c0_37], %78 {strides = array<i32>} : memref<8x128xf32, #tpu.memory_space<vmem>>, vector<8x128xf32>,
    return
  }
  func.func @transform_0(%arg0: i32) -> (i32, i32, i32, i32) {
    %c0_i32 = arith.constant 0 : i32
    %c0_i32_0 = arith.constant 0 : i32
    %c0_i32_1 = arith.constant 0 : i32
    %c0_i32_2 = arith.constant 0 : i32
    return %arg0, %c0_i32, %c0_i32_0, %c0_i32_1 : i32, i32, i32, i32
  }
  func.func @transform_1(%arg0: i32) -> (i32, i32) {
    %c0_i32 = arith.constant 0 : i32
    %c0_i32_0 = arith.constant 0 : i32
    %c0_i32_1 = arith.constant 0 : i32
    return %c0_i32, %c0_i32_0 : i32, i32
  }
  func.func @transform_2(%arg0: i32) -> (i32, i32) {
    %c0_i32 = arith.constant 0 : i32
    %c0_i32_0 = arith.constant 0 : i32
    %c0_i32_1 = arith.constant 0 : i32
    return %c0_i32, %c0_i32_0 : i32, i32
  }
  func.func @transform_3(%arg0: i32) -> (i32, i32) {
    %c0_i32 = arith.constant 0 : i32
    %c0_i32_0 = arith.constant 0 : i32
    %c0_i32_1 = arith.constant 0 : i32
    return %c0_i32, %c0_i32_0 : i32, i32
  }
  func.func @transform_4(%arg0: i32) -> (i32, i32, i32, i32) {
    %c0_i32 = arith.constant 0 : i32
    %c0_i32_0 = arith.constant 0 : i32
    %c0_i32_1 = arith.constant 0 : i32
    %c0_i32_2 = arith.constant 0 : i32
    return %arg0, %c0_i32, %c0_i32_0, %c0_i32_1 : i32, i32, i32, i32
  }
  func.func @transform_5(%arg0: i32) -> (i32, i32) {
    %c0_i32 = arith.constant 0 : i32
    %c0_i32_0 = arith.constant 0 : i32
    return %arg0, %c0_i32 : i32, i32
  }
}

module attributes {stable_mosaic.version = 11 : i64} {
  func.func @_epi_proj_kernel(%arg0: i32, %arg1: memref<1x8x8x128xbf16, #tpu.memory_space<vmem>>, %arg2: memref<1x8x8x128xbf16, #tpu.memory_space<vmem>>, %arg3: memref<1x128xf32, #tpu.memory_space<vmem>>, %arg4: memref<1x128xf32, #tpu.memory_space<vmem>>, %arg5: memref<1x128xf32, #tpu.memory_space<vmem>>, %arg6: memref<1x128xf32, #tpu.memory_space<vmem>>, %arg7: memref<1x8x8x128xbf16, #tpu.memory_space<vmem>>) attributes {dimension_semantics = [#tpu.dimension_semantics<parallel>], iteration_bounds = array<i64: 2>, scalar_prefetch = 0 : i64, scratch_operands = 0 : i64, tpu.core_type = #tpu.core_type<tc>, window_params = [{transform_indices = @transform_0, window_bounds = array<i64: 1, 8, 8, 128>}, {transform_indices = @transform_1, window_bounds = array<i64: 1, 8, 8, 128>}, {pipeline_mode = #tpu.pipeline_mode<synchronous>, transform_indices = @transform_2, window_bounds = array<i64: 1, 128>}, {pipeline_mode = #tpu.pipeline_mode<synchronous>, transform_indices = @transform_3, window_bounds = array<i64: 1, 128>}, {pipeline_mode = #tpu.pipeline_mode<synchronous>, transform_indices = @transform_4, window_bounds = array<i64: 1, 128>}, {pipeline_mode = #tpu.pipeline_mode<synchronous>, transform_indices = @transform_5, window_bounds = array<i64: 1, 128>}, {transform_indices = @transform_6, window_bounds = array<i64: 1, 8, 8, 128>}]} {
    %c0 = arith.constant 0 : index
    %c0_0 = arith.constant 0 : index
    %c0_1 = arith.constant 0 : index
    %c0_2 = arith.constant 0 : index
    %0 = vector.load %arg1[%c0, %c0_0, %c0_1, %c0_2] : memref<1x8x8x128xbf16, #tpu.memory_space<vmem>>, vector<1x8x8x128xbf16>
    %1 = vector.shape_cast %0 : vector<1x8x8x128xbf16> to vector<8x8x128xbf16>
    %2 = arith.extf %1 : vector<8x8x128xbf16> to vector<8x8x128xf32>
    %c0_3 = arith.constant 0 : index
    %c0_4 = arith.constant 0 : index
    %c0_5 = arith.constant 0 : index
    %c0_6 = arith.constant 0 : index
    %3 = vector.load %arg2[%c0_3, %c0_4, %c0_5, %c0_6] : memref<1x8x8x128xbf16, #tpu.memory_space<vmem>>, vector<1x8x8x128xbf16>
    %4 = vector.shape_cast %3 : vector<1x8x8x128xbf16> to vector<8x8x128xbf16>
    %5 = arith.extf %4 : vector<8x8x128xbf16> to vector<8x8x128xf32>
    %c0_7 = arith.constant 0 : index
    %c0_8 = arith.constant 0 : index
    %6 = vector.load %arg5[%c0_7, %c0_8] : memref<1x128xf32, #tpu.memory_space<vmem>>, vector<1x128xf32>
    %7 = vector.shape_cast %6 : vector<1x128xf32> to vector<1x1x128xf32>
    %8 = vector.broadcast %7 : vector<1x1x128xf32> to vector<8x8x128xf32>
    %9 = arith.mulf %5, %8 : vector<8x8x128xf32>
    %c0_9 = arith.constant 0 : index
    %c0_10 = arith.constant 0 : index
    %10 = vector.load %arg6[%c0_9, %c0_10] : memref<1x128xf32, #tpu.memory_space<vmem>>, vector<1x128xf32>
    %11 = vector.shape_cast %10 : vector<1x128xf32> to vector<1x1x128xf32>
    %12 = vector.broadcast %11 : vector<1x1x128xf32> to vector<8x8x128xf32>
    %13 = arith.addf %9, %12 : vector<8x8x128xf32>
    %c0_11 = arith.constant 0 : index
    %c0_12 = arith.constant 0 : index
    %14 = vector.load %arg3[%c0_11, %c0_12] : memref<1x128xf32, #tpu.memory_space<vmem>>, vector<1x128xf32>
    %15 = vector.shape_cast %14 : vector<1x128xf32> to vector<1x1x128xf32>
    %16 = vector.broadcast %15 : vector<1x1x128xf32> to vector<8x8x128xf32>
    %17 = arith.mulf %2, %16 : vector<8x8x128xf32>
    %c0_13 = arith.constant 0 : index
    %c0_14 = arith.constant 0 : index
    %18 = vector.load %arg4[%c0_13, %c0_14] : memref<1x128xf32, #tpu.memory_space<vmem>>, vector<1x128xf32>
    %19 = vector.shape_cast %18 : vector<1x128xf32> to vector<1x1x128xf32>
    %20 = vector.broadcast %19 : vector<1x1x128xf32> to vector<8x8x128xf32>
    %21 = arith.addf %17, %20 : vector<8x8x128xf32>
    %22 = arith.addf %21, %13 : vector<8x8x128xf32>
    %cst = arith.constant 0.000000e+00 : f32
    %23 = vector.broadcast %cst : f32 to vector<8x8x128xf32>
    %24 = arith.maximumf %22, %23 : vector<8x8x128xf32>
    %25 = arith.truncf %24 : vector<8x8x128xf32> to vector<8x8x128xbf16>
    %c0_15 = arith.constant 0 : index
    %c0_16 = arith.constant 0 : index
    %c0_17 = arith.constant 0 : index
    %c0_18 = arith.constant 0 : index
    %26 = vector.load %arg7[%c0_15, %c0_16, %c0_17, %c0_18] : memref<1x8x8x128xbf16, #tpu.memory_space<vmem>>, vector<1x8x8x128xbf16>
    %27 = vector.shape_cast %26 : vector<1x8x8x128xbf16> to vector<8x8x128xbf16>
    %28 = vector.shape_cast %25 : vector<8x8x128xbf16> to vector<1x8x8x128xbf16>
    tpu.vector_store %arg7[%c0_15, %c0_16, %c0_17, %c0_18], %28 {strides = array<i32>} : memref<1x8x8x128xbf16, #tpu.memory_space<vmem>>, vector<1x8x8x128xbf16>,
    return
  }
  func.func @transform_0(%arg0: i32) -> (i32, i32, i32, i32) {
    %c0_i32 = arith.constant 0 : i32
    %c0_i32_0 = arith.constant 0 : i32
    %c0_i32_1 = arith.constant 0 : i32
    %c0_i32_2 = arith.constant 0 : i32
    return %arg0, %c0_i32, %c0_i32_0, %c0_i32_1 : i32, i32, i32, i32
  }
  func.func @transform_1(%arg0: i32) -> (i32, i32, i32, i32) {
    %c0_i32 = arith.constant 0 : i32
    %c0_i32_0 = arith.constant 0 : i32
    %c0_i32_1 = arith.constant 0 : i32
    %c0_i32_2 = arith.constant 0 : i32
    return %arg0, %c0_i32, %c0_i32_0, %c0_i32_1 : i32, i32, i32, i32
  }
  func.func @transform_2(%arg0: i32) -> (i32, i32) {
    %c0_i32 = arith.constant 0 : i32
    %c0_i32_0 = arith.constant 0 : i32
    %c0_i32_1 = arith.constant 0 : i32
    return %c0_i32, %c0_i32_0 : i32, i32
  }
  func.func @transform_3(%arg0: i32) -> (i32, i32) {
    %c0_i32 = arith.constant 0 : i32
    %c0_i32_0 = arith.constant 0 : i32
    %c0_i32_1 = arith.constant 0 : i32
    return %c0_i32, %c0_i32_0 : i32, i32
  }
  func.func @transform_4(%arg0: i32) -> (i32, i32) {
    %c0_i32 = arith.constant 0 : i32
    %c0_i32_0 = arith.constant 0 : i32
    %c0_i32_1 = arith.constant 0 : i32
    return %c0_i32, %c0_i32_0 : i32, i32
  }
  func.func @transform_5(%arg0: i32) -> (i32, i32) {
    %c0_i32 = arith.constant 0 : i32
    %c0_i32_0 = arith.constant 0 : i32
    %c0_i32_1 = arith.constant 0 : i32
    return %c0_i32, %c0_i32_0 : i32, i32
  }
  func.func @transform_6(%arg0: i32) -> (i32, i32, i32, i32) {
    %c0_i32 = arith.constant 0 : i32
    %c0_i32_0 = arith.constant 0 : i32
    %c0_i32_1 = arith.constant 0 : i32
    %c0_i32_2 = arith.constant 0 : i32
    return %arg0, %c0_i32, %c0_i32_0, %c0_i32_1 : i32, i32, i32, i32
  }
}

</mosaic_0001>

<llo_original>
// kernel: basic_block_forward.3
$region0: #{basic_block_forward.3}
  #allocation0 [shape = 'u32[]', space=smem, size = 0x4, offset = 0x4, fixed_abs, tag = 'smem constant byte address 0x4 - core index']
  #allocation1 [shape = 'u32[144,128]{1,0:T(1,128)}', space=vmem, size = 0x12000, scoped, tag = 'internal scratch']
  %s0 = inlined_call_operand.vmem [shape: bf16[2,9,9,128], index: 0, kind: input, shape index: {}]
  %s1 = inlined_call_operand.vmem [shape: bf16[512,128], index: 1, kind: input, shape index: {}]
  %s2 = inlined_call_operand.vmem [shape: bf16[128,128], index: 2, kind: input, shape index: {}]
  %s3 = inlined_call_operand.vmem [shape: bf16[2,8,8,128], index: 3, kind: output, shape index: {0}]
  %s4 = inlined_call_operand.vmem [shape: bf16[2,8,8,128], index: 4, kind: output, shape index: {1}]
  %s5 = inlined_call_operand.vmem [shape: f32[16,128], index: 5, kind: output, shape index: {2}]
  %s6 = inlined_call_operand.vmem [shape: f32[16,128], index: 6, kind: output, shape index: {3}]
  %7 = xla_tuple %s3, %s4, %s5, %s6
  %s8 = sld [smem:[#allocation0]]
  $region69: #{basic_block_forward.3} parent=0
    _
  %s10 = ssub.s32 1, %s8
  %s11 = scalar_select 0, %s10, %s8
  loop: start=0, step=1, limit=4
  $region2: #{basic_block_forward.3} parent=0 // loop_pre_header
    _
  $region3: #{basic_block_forward.3} parent=0 // loop_header
    %s13 = sphi 0, %s17
    %p14 = scmp.ge.s32.totalorder %s13, 4
    %s23 = sphi 0, %s25
    %s26 = sphi 0, %s23
    %s27 = sphi 0, %s26
    %s43 = sphi 0, %s27
    %s47 = sphi 0, %s47
    %s49 = sphi 0, %s47
    %s50 = sphi 0, %s49
    %s64 = sphi 0, %s50
    %s68 = sphi 0, %s68
    %s70 = sphi 0, %s68
    %s71 = sphi 0, %s70
    %s85 = sphi 0, %s71
    %s91 = sphi 0, %s93
    %s94 = sphi 0, %s91
    %s95 = sphi 0, %s94
    %s111 = sphi 0, %s95
    %s117 = sphi 0, %s119
    %s120 = sphi 0, %s117
    %s121 = sphi 0, %s120
    %s137 = sphi 0, %s121
    %s143 = sphi 0, %s145
    %s146 = sphi 0, %s143
    %s147 = sphi 0, %s146
    %s163 = sphi 0, %s147
    %s169 = sphi 0, %s171
    %s172 = sphi 0, %s169
    %s173 = sphi 0, %s172
    %s189 = sphi 0, %s173
  $region4: #{basic_block_forward.3} parent=0 // loop_header_branch
    %16 = sbr.rel (%p14) target = $region8
  $region5: #{basic_block_forward.3} parent=0 // loop_body
    %s18 = ssub.s32 %s13, 1
    %s19 = ssub.s32 %s13, 2
    %s20 = sadd.s32 %s13, 1
    %s21 = ssub.s32 %s13, %s20
    %p22 = scmp.eq.s32.totalorder %s21, 0
    %s24 = sadd.s32 %s23, 1
    %s25 = scalar_select %p22, %s23, %s24
    %p28 = pneg %p22
    %p29 = scmp.eq.s32.totalorder %s13, 1
    %p30 = por %p28, %p29
    %p31 = scmp.ne.s32.totalorder %s23, %s26
    %p32 = scmp.eq.s32.totalorder %s13, 0
    %p33 = por %p31, %p32
    %p34 = scmp.ne.s32.totalorder %s23, %s26
    %p35 = scmp.eq.s32.totalorder %s18, 1
    %p36 = por %p34, %p35
    %p37 = scmp.ne.s32.totalorder %s26, %s27
    %p38 = scmp.eq.s32.totalorder %s18, 0
    %p39 = por %p37, %p38
    %p40 = scmp.ne.s32.totalorder %s26, %s27
    %p41 = scmp.eq.s32.totalorder %s19, 1
    %p42 = por %p40, %p41
    %p44 = scmp.ne.s32.totalorder %s27, %s43
    %p45 = scmp.eq.s32.totalorder %s19, 0
    %p46 = por %p44, %p45
    %s48 = sadd.s32 %s47, 1
    %p51 = scmp.eq.s32.totalorder %s13, 1
    %p52 = scmp.ne.s32.totalorder %s47, %s49
    %p53 = scmp.eq.s32.totalorder %s13, 0
    %p54 = por %p52, %p53
    %p55 = scmp.ne.s32.totalorder %s47, %s49
    %p56 = scmp.eq.s32.totalorder %s18, 1
    %p57 = por %p55, %p56
    %p58 = scmp.ne.s32.totalorder %s49, %s50
    %p59 = scmp.eq.s32.totalorder %s18, 0
    %p60 = por %p58, %p59
    %p61 = scmp.ne.s32.totalorder %s49, %s50
    %p62 = scmp.eq.s32.totalorder %s19, 1
    %p63 = por %p61, %p62
    %p65 = scmp.ne.s32.totalorder %s50, %s64
    %p66 = scmp.eq.s32.totalorder %s19, 0
    %p67 = por %p65, %p66
    %s69 = sadd.s32 %s68, 1
    %p72 = scmp.eq.s32.totalorder %s13, 1
    %p73 = scmp.ne.s32.totalorder %s68, %s70
    %p74 = scmp.eq.s32.totalorder %s13, 0
    %p75 = por %p73, %p74
    %p76 = scmp.ne.s32.totalorder %s68, %s70
    %p77 = scmp.eq.s32.totalorder %s18, 1
    %p78 = por %p76, %p77
    %p79 = scmp.ne.s32.totalorder %s70, %s71
    %p80 = scmp.eq.s32.totalorder %s18, 0
    %p81 = por %p79, %p80
    %p82 = scmp.ne.s32.totalorder %s70, %s71
    %p83 = scmp.eq.s32.totalorder %s19, 1
    %p84 = por %p82, %p83
    %p86 = scmp.ne.s32.totalorder %s71, %s85
    %p87 = scmp.eq.s32.totalorder %s19, 0
    %p88 = por %p86, %p87
    %s89 = ssub.s32 %s13, %s20
    %p90 = scmp.eq.s32.totalorder %s89, 0
    %s92 = sadd.s32 %s91, 1
    %s93 = scalar_select %p90, %s91, %s92
    %p96 = pneg %p90
    %p97 = scmp.eq.s32.totalorder %s13, 1
    %p98 = por %p96, %p97
    %p99 = scmp.ne.s32.totalorder %s91, %s94
    %p100 = scmp.eq.s32.totalorder %s13, 0
    %p101 = por %p99, %p100
    %p102 = scmp.ne.s32.totalorder %s91, %s94
    %p103 = scmp.eq.s32.totalorder %s18, 1
    %p104 = por %p102, %p103
    %p105 = scmp.ne.s32.totalorder %s94, %s95
    %p106 = scmp.eq.s32.totalorder %s18, 0
    %p107 = por %p105, %p106
    %p108 = scmp.ne.s32.totalorder %s94, %s95
    %p109 = scmp.eq.s32.totalorder %s19, 1
    %p110 = por %p108, %p109
    %p112 = scmp.ne.s32.totalorder %s95, %s111
    %p113 = scmp.eq.s32.totalorder %s19, 0
    %p114 = por %p112, %p113
    %s115 = ssub.s32 %s13, %s20
    %p116 = scmp.eq.s32.totalorder %s115, 0
    %s118 = sadd.s32 %s117, 1
    %s119 = scalar_select %p116, %s117, %s118
    %p122 = pneg %p116
    %p123 = scmp.eq.s32.totalorder %s13, 1
    %p124 = por %p122, %p123
    %p125 = scmp.ne.s32.totalorder %s117, %s120
    %p126 = scmp.eq.s32.totalorder %s13, 0
    %p127 = por %p125, %p126
    %p128 = scmp.ne.s32.totalorder %s117, %s120
    %p129 = scmp.eq.s32.totalorder %s18, 1
    %p130 = por %p128, %p129
    %p131 = scmp.ne.s32.totalorder %s120, %s121
    %p132 = scmp.eq.s32.totalorder %s18, 0
    %p133 = por %p131, %p132
    %p134 = scmp.ne.s32.totalorder %s120, %s121
    %p135 = scmp.eq.s32.totalorder %s19, 1
    %p136 = por %p134, %p135
    %p138 = scmp.ne.s32.totalorder %s121, %s137
    %p139 = scmp.eq.s32.totalorder %s19, 0
    %p140 = por %p138, %p139
    %s141 = ssub.s32 %s13, %s20
    %p142 = scmp.eq.s32.totalorder %s141, 0
    %s144 = sadd.s32 %s143, 1
    %s145 = scalar_select %p142, %s143, %s144
    %p148 = pneg %p142
    %p149 = scmp.eq.s32.totalorder %s13, 1
    %p150 = por %p148, %p149
    %p151 = scmp.ne.s32.totalorder %s143, %s146
    %p152 = scmp.eq.s32.totalorder %s13, 0
    %p153 = por %p151, %p152
    %p154 = scmp.ne.s32.totalorder %s143, %s146
    %p155 = scmp.eq.s32.totalorder %s18, 1
    %p156 = por %p154, %p155
    %p157 = scmp.ne.s32.totalorder %s146, %s147
    %p158 = scmp.eq.s32.totalorder %s18, 0
    %p159 = por %p157, %p158
    %p160 = scmp.ne.s32.totalorder %s146, %s147
    %p161 = scmp.eq.s32.totalorder %s19, 1
    %p162 = por %p160, %p161
    %p164 = scmp.ne.s32.totalorder %s147, %s163
    %p165 = scmp.eq.s32.totalorder %s19, 0
    %p166 = por %p164, %p165
    %s167 = ssub.s32 %s13, %s20
    %p168 = scmp.eq.s32.totalorder %s167, 0
    %s170 = sadd.s32 %s169, 1
    %s171 = scalar_select %p168, %s169, %s170
    %p174 = pneg %p168
    %p175 = scmp.eq.s32.totalorder %s13, 1
    %p176 = por %p174, %p175
    %p177 = scmp.ne.s32.totalorder %s169, %s172
    %p178 = scmp.eq.s32.totalorder %s13, 0
    %p179 = por %p177, %p178
    %p180 = scmp.ne.s32.totalorder %s169, %s172
    %p181 = scmp.eq.s32.totalorder %s18, 1
    %p182 = por %p180, %p181
    %p183 = scmp.ne.s32.totalorder %s172, %s173
    %p184 = scmp.eq.s32.totalorder %s18, 0
    %p185 = por %p183, %p184
    %p186 = scmp.ne.s32.totalorder %s172, %s173
    %p187 = scmp.eq.s32.totalorder %s19, 1
    %p188 = por %p186, %p187
    %p190 = scmp.ne.s32.totalorder %s173, %s189
    %p191 = scmp.eq.s32.totalorder %s19, 0
    %p192 = por %p190, %p191
    %p193 = scmp.le.s32.totalorder 1, %s13
    %p194 = scmp.lt.s32.totalorder %s13, 3
    %p195 = pnand %p193, %p194
    %p196 = pneg %p195
    // Predicated region
    $region9: #{basic_block_forward.3} parent=5 // pred_check
      _
    $region10: #{basic_block_forward.3} parent=5 // pred_check_branch
      %198 = sbr.rel (%p195) target = $region12
    $region11: #{basic_block_forward.3} parent=5 // pred_region
      %s199 = ssub.s32 %s13, 1
      // Predicated region
      $region13: #{basic_block_forward.3} parent=11 // pred_check
        %p200 = pneg %p60
      $region14: #{basic_block_forward.3} parent=11 // pred_check_branch
        %202 = sbr.rel (%p200) target = $region16
      $region15: #{basic_block_forward.3} parent=11 // pred_region
        _
      $region16: #{basic_block_forward.3} parent=11 // pred_fallthru
        _
      // Predicated region
      $region17: #{basic_block_forward.3} parent=11 // pred_check
        %p203 = pneg %p81
      $region18: #{basic_block_forward.3} parent=11 // pred_check_branch
        %205 = sbr.rel (%p203) target = $region20
      $region19: #{basic_block_forward.3} parent=11 // pred_region
        _
      $region20: #{basic_block_forward.3} parent=11 // pred_fallthru
        _
    $region12: #{basic_block_forward.3} parent=5 // pred_fallthru
      _
    %p206 = scmp.lt.s32.totalorder %s13, 2
    // Predicated region
    $region21: #{basic_block_forward.3} parent=5 // pred_check
      %p207 = pneg %p206
    $region22: #{basic_block_forward.3} parent=5 // pred_check_branch
      %209 = sbr.rel (%p207) target = $region24
    $region23: #{basic_block_forward.3} parent=5 // pred_region
      // Predicated region
      $region25: #{basic_block_forward.3} parent=23 // pred_check
        %p210 = pneg %p33
      $region26: #{basic_block_forward.3} parent=23 // pred_check_branch
        %212 = sbr.rel (%p210) target = $region28
      $region27: #{basic_block_forward.3} parent=23 // pred_region
        %p213 = scmp.lt.s32.totalorder %s13, 1
        %s214 = scalar_select %p213, %s13, 1
        %s215 = smul.addr %s214, 18
        %s216 = smul.addr %s215, 4
        %s217 = scalar_lea.vmem %s0, %s216
      $region28: #{basic_block_forward.3} parent=23 // pred_fallthru
        _
    $region24: #{basic_block_forward.3} parent=5 // pred_fallthru
      _
    %p218 = scmp.le.s32.totalorder 1, %s13
    %p219 = scmp.lt.s32.totalorder %s13, 3
    %p220 = pnand %p218, %p219
    %p221 = pneg %p220
    // Predicated region
    $region29: #{basic_block_forward.3} parent=5 // pred_check
      _
    $region30: #{basic_block_forward.3} parent=5 // pred_check_branch
      %223 = sbr.rel (%p220) target = $region32
    $region31: #{basic_block_forward.3} parent=5 // pred_region
      %s224 = ssub.s32 %s13, 1
      %p225 = scmp.lt.s32.totalorder %s18, 1
      %s226 = scalar_select %p225, %s18, 1
      %s227 = smul.addr %s226, 18
      %s228 = smul.addr %s227, 4
      %s229 = scalar_lea.vmem %s0, %s228
      %p230 = pneg %p39
      %p231 = pneg %p36
      %p232 = pneg %p60
      %p233 = pneg %p57
      %p234 = pneg %p81
      %p235 = pneg %p78
      %p236 = pneg %p107
      %p237 = pneg %p104
      %p238 = scmp.lt.s32.totalorder %s18, 1
      %s239 = scalar_select %p238, %s18, 1
      %s240 = smul.addr %s239, 8
      %s241 = smul.addr %s240, 4
      %s242 = scalar_lea.vmem %s3, %s241
      %p243 = pneg %p133
      %p244 = pneg %p130
      %p245 = scmp.lt.s32.totalorder %s18, 1
      %s246 = scalar_select %p245, %s18, 1
      %s247 = smul.addr %s246, 8
      %s248 = smul.addr %s247, 4
      %s249 = scalar_lea.vmem %s4, %s248
      %p250 = pneg %p159
      %p251 = pneg %p156
      %p252 = scmp.lt.s32.totalorder %s18, 1
      %s253 = scalar_select %p252, %s18, 1
      %s254 = smul.addr %s253, 8
      %s255 = scalar_lea.vmem %s5, %s254
      %p256 = pneg %p185
      %p257 = pneg %p182
      %p258 = scmp.lt.s32.totalorder %s18, 1
      %s259 = scalar_select %p258, %s18, 1
      %s260 = smul.addr %s259, 8
      %s261 = scalar_lea.vmem %s6, %s260
      %p262 = scmp.lt.s32.totalorder %s18, 1
      %s263 = scalar_select %p262, %s18, 1
      %s264 = smul.addr %s263, 18
      %s265 = smul.addr %s264, 4
      %s266 = scalar_lea.vmem %s0, %s265
      %p267 = scmp.lt.s32.totalorder %s18, 1
      %s268 = scalar_select %p267, %s18, 1
      %s269 = smul.addr %s268, 8
      %s270 = smul.addr %s269, 4
      %s271 = scalar_lea.vmem %s3, %s270
      %p272 = scmp.lt.s32.totalorder %s18, 1
      %s273 = scalar_select %p272, %s18, 1
      %s274 = smul.addr %s273, 8
      %s275 = smul.addr %s274, 4
      %s276 = scalar_lea.vmem %s4, %s275
      %p277 = scmp.lt.s32.totalorder %s18, 1
      %s278 = scalar_select %p277, %s18, 1
      %s279 = smul.addr %s278, 8
      %s280 = scalar_lea.vmem %s5, %s279
      %p281 = scmp.lt.s32.totalorder %s18, 1
      %s282 = scalar_select %p281, %s18, 1
      %s283 = smul.addr %s282, 8
      %s284 = scalar_lea.vmem %s6, %s283
      %v286 = vld [vmem:[%s266] sm:$0xf]
      %v287 = vld [vmem:[%s266 + $0x4] sm:$0x1]
      %v288 = vld [vmem:[%s266 + $0x8] sm:$0xf]
      %v289 = vld [vmem:[%s266 + $0xc] sm:$0x1]
      %v290 = vld [vmem:[%s266 + $0x10] sm:$0xf]
      %v291 = vld [vmem:[%s266 + $0x14] sm:$0x1]
      %v292 = vld [vmem:[%s266 + $0x18] sm:$0xf]
      %v293 = vld [vmem:[%s266 + $0x1c] sm:$0x1]
      %v294 = vld [vmem:[%s266 + $0x20] sm:$0xf]
      %v295 = vld [vmem:[%s266 + $0x24] sm:$0x1]
      %v296 = vld [vmem:[%s266 + $0x28] sm:$0xf]
      %v297 = vld [vmem:[%s266 + $0x2c] sm:$0x1]
      %v298 = vld [vmem:[%s266 + $0x30] sm:$0xf]
      %v299 = vld [vmem:[%s266 + $0x34] sm:$0x1]
      %v300 = vld [vmem:[%s266 + $0x38] sm:$0xf]
      %v301 = vld [vmem:[%s266 + $0x3c] sm:$0x1]
      %v302 = vld [vmem:[%s266 + $0x40] sm:$0xf]
      %v303 = vld [vmem:[%s266 + $0x44] sm:$0x1]
      %v304 = vld [vmem:[%s1] sm:$0xf]
      %v305 = vld [vmem:[%s1 + $0x4] sm:$0xf]
      %v306 = vld [vmem:[%s1 + $0x8] sm:$0xf]
      %v307 = vld [vmem:[%s1 + $0xc] sm:$0xf]
      %v308 = vld [vmem:[%s1 + $0x10] sm:$0xf]
      %v309 = vld [vmem:[%s1 + $0x14] sm:$0xf]
      %v310 = vld [vmem:[%s1 + $0x18] sm:$0xf]
      %v311 = vld [vmem:[%s1 + $0x1c] sm:$0xf]
      %v312 = vld [vmem:[%s1 + $0x20] sm:$0xf]
      %v313 = vld [vmem:[%s1 + $0x24] sm:$0xf]
      %v314 = vld [vmem:[%s1 + $0x28] sm:$0xf]
      %v315 = vld [vmem:[%s1 + $0x2c] sm:$0xf]
      %v316 = vld [vmem:[%s1 + $0x30] sm:$0xf]
      %v317 = vld [vmem:[%s1 + $0x34] sm:$0xf]
      %v318 = vld [vmem:[%s1 + $0x38] sm:$0xf]
      %v319 = vld [vmem:[%s1 + $0x3c] sm:$0xf]
      %vm320 = vsmask.f32 3328
      %vm321 = vsmask.f32 7440
      %vm322 = vmor %vm320, %vm321
      %v324 = vshrl.u32 %v286, 16
      %v326 = vrot.slane %v324, 4
      %v327 = vshll.u32 %v286, 16
      %v329 = vrot.slane %v327, 5
      %v330 = vor.u32 %v326, %v329
      %v331 = vrot.slane %v330, 4
      %v333 = vshll.u32 %v287, 16
      %v335 = vrot.slane %v333, 5
      %v336 = vsel %vm322, %v331, %v335
      %v338 = vshrl.u32 %v288, 16
      %v340 = vrot.slane %v338, 4
      %v341 = vshll.u32 %v288, 16
      %v343 = vrot.slane %v341, 5
      %v344 = vor.u32 %v340, %v343
      %v345 = vrot.slane %v344, 4
      %v347 = vshll.u32 %v289, 16
      %v349 = vrot.slane %v347, 5
      %v350 = vsel %vm322, %v345, %v349
      %v352 = vshrl.u32 %v290, 16
      %v354 = vrot.slane %v352, 4
      %v355 = vshll.u32 %v290, 16
      %v357 = vrot.slane %v355, 5
      %v358 = vor.u32 %v354, %v357
      %v359 = vrot.slane %v358, 4
      %v361 = vshll.u32 %v291, 16
      %v363 = vrot.slane %v361, 5
      %v364 = vsel %vm322, %v359, %v363
      %v366 = vshrl.u32 %v292, 16
      %v368 = vrot.slane %v366, 4
      %v369 = vshll.u32 %v292, 16
      %v371 = vrot.slane %v369, 5
      %v372 = vor.u32 %v368, %v371
      %v373 = vrot.slane %v372, 4
      %v375 = vshll.u32 %v293, 16
      %v377 = vrot.slane %v375, 5
      %v378 = vsel %vm322, %v373, %v377
      %v380 = vshrl.u32 %v294, 16
      %v382 = vrot.slane %v380, 4
      %v383 = vshll.u32 %v294, 16
      %v385 = vrot.slane %v383, 5
      %v386 = vor.u32 %v382, %v385
      %v387 = vrot.slane %v386, 4
      %v389 = vshll.u32 %v295, 16
      %v391 = vrot.slane %v389, 5
      %v392 = vsel %vm322, %v387, %v391
      %v394 = vshrl.u32 %v296, 16
      %v396 = vrot.slane %v394, 4
      %v397 = vshll.u32 %v296, 16
      %v399 = vrot.slane %v397, 5
      %v400 = vor.u32 %v396, %v399
      %v401 = vrot.slane %v400, 4
      %v403 = vshll.u32 %v297, 16
      %v405 = vrot.slane %v403, 5
      %v406 = vsel %vm322, %v401, %v405
      %v408 = vshrl.u32 %v298, 16
      %v410 = vrot.slane %v408, 4
      %v411 = vshll.u32 %v298, 16
      %v413 = vrot.slane %v411, 5
      %v414 = vor.u32 %v410, %v413
      %v415 = vrot.slane %v414, 4
      %v417 = vshll.u32 %v299, 16
      %v419 = vrot.slane %v417, 5
      %v420 = vsel %vm322, %v415, %v419
      %v422 = vshrl.u32 %v300, 16
      %v424 = vrot.slane %v422, 4
      %v425 = vshll.u32 %v300, 16
      %v427 = vrot.slane %v425, 5
      %v428 = vor.u32 %v424, %v427
      %v429 = vrot.slane %v428, 4
      %v431 = vshll.u32 %v301, 16
      %v433 = vrot.slane %v431, 5
      %v434 = vsel %vm322, %v429, %v433
      %v435 = vld [vmem:[%s1 + $0x40] sm:$0xf]
      %v436 = vld [vmem:[%s1 + $0x44] sm:$0xf]
      %v437 = vld [vmem:[%s1 + $0x48] sm:$0xf]
      %v438 = vld [vmem:[%s1 + $0x4c] sm:$0xf]
      %v439 = vld [vmem:[%s1 + $0x50] sm:$0xf]
      %v440 = vld [vmem:[%s1 + $0x54] sm:$0xf]
      %v441 = vld [vmem:[%s1 + $0x58] sm:$0xf]
      %v442 = vld [vmem:[%s1 + $0x5c] sm:$0xf]
      %v443 = vld [vmem:[%s1 + $0x60] sm:$0xf]
      %v444 = vld [vmem:[%s1 + $0x64] sm:$0xf]
      %v445 = vld [vmem:[%s1 + $0x68] sm:$0xf]
      %v446 = vld [vmem:[%s1 + $0x6c] sm:$0xf]
      %v447 = vld [vmem:[%s1 + $0x70] sm:$0xf]
      %v448 = vld [vmem:[%s1 + $0x74] sm:$0xf]
      %v449 = vld [vmem:[%s1 + $0x78] sm:$0xf]
      %v450 = vld [vmem:[%s1 + $0x7c] sm:$0xf]
      %v451 = vunpack.c.l.b16 %v336
      %v452 = vunpack.c.l.b16 %v350
      %v453 = vunpack.c.l.b16 %v364
      %v454 = vunpack.c.l.b16 %v378
      %v455 = vunpack.c.l.b16 %v392
      %v456 = vunpack.c.l.b16 %v406
      %v457 = vunpack.c.l.b16 %v420
      %v458 = vunpack.c.l.b16 %v434
      %v459 = vpack.c.b16 %v452, %v451
      %v460 = vpack.c.b16 %v454, %v453
      %v461 = vpack.c.b16 %v456, %v455
      %v462 = vpack.c.b16 %v458, %v457
      %v483 = vunpack.c.l.b16 %v435
      %v484 = vunpack.c.l.b16 %v436
      %v485 = vunpack.c.l.b16 %v437
      %v486 = vunpack.c.l.b16 %v438
      %v487 = vunpack.c.l.b16 %v439
      %v488 = vunpack.c.l.b16 %v440
      %v489 = vunpack.c.l.b16 %v441
      %v490 = vunpack.c.l.b16 %v442
      %v491 = vunpack.c.l.b16 %v443
      %v492 = vunpack.c.l.b16 %v444
      %v493 = vunpack.c.l.b16 %v445
      %v494 = vunpack.c.l.b16 %v446
      %v495 = vunpack.c.l.b16 %v447
      %v496 = vunpack.c.l.b16 %v448
      %v497 = vunpack.c.l.b16 %v449
      %v498 = vunpack.c.l.b16 %v450
      %v499 = vpack.c.b16 %v484, %v483
      %v500 = vpack.c.b16 %v486, %v485
      %v501 = vpack.c.b16 %v488, %v487
      %v502 = vpack.c.b16 %v490, %v489
      %v503 = vpack.c.b16 %v492, %v491
      %v504 = vpack.c.b16 %v494, %v493
      %v505 = vpack.c.b16 %v496, %v495
      %v506 = vpack.c.b16 %v498, %v497
      %515 = vmatprep.subr.bf16.mxu0 0
      %516 = vmatpush1.bf16.msra.mxu0 %v499
      %517 = vmatprep.subr.bf16.mxu0 0
      %518 = vmatpush1.bf16.msra.mxu0 %v500
      %519 = vmatprep.subr.bf16.mxu0 0
      %520 = vmatpush1.bf16.msra.mxu0 %v501
      %521 = vmatprep.subr.bf16.mxu0 0
      %522 = vmatpush1.bf16.msra.mxu0 %v502
      %523 = vmatprep.subr.bf16.mxu0 0
      %524 = vmatpush1.bf16.msra.mxu0 %v503
      %525 = vmatprep.subr.bf16.mxu0 0
      %526 = vmatpush1.bf16.msra.mxu0 %v504
      %527 = vmatprep.subr.bf16.mxu0 0
      %528 = vmatpush1.bf16.msra.mxu0 %v505
      %529 = vmatprep.subr.bf16.mxu0 0
      %530 = vmatpush1.bf16.msra.mxu0 %v506
      %531 = vmatprep.subr.bf16.mxu0 0
      %532 = vmatpush1.bf16.msra.mxu0 0
      %533 = vmatprep.subr.bf16.mxu0 0
      %534 = vmatpush1.bf16.msra.mxu0 0
      %535 = vmatprep.subr.bf16.mxu0 0
      %536 = vmatpush1.bf16.msra.mxu0 0
      %537 = vmatprep.subr.bf16.mxu0 0
      %538 = vmatpush1.bf16.msra.mxu0 0
      %539 = vmatprep.subr.bf16.mxu0 0
      %540 = vmatpush1.bf16.msra.mxu0 0
      %541 = vmatprep.subr.bf16.mxu0 0
      %542 = vmatpush1.bf16.msra.mxu0 0
      %543 = vmatprep.subr.bf16.mxu0 0
      %544 = vmatpush1.bf16.msra.mxu0 0
      %545 = vmatprep.subr.bf16.mxu0 0
      %546 = vmatpush1.bf16.msra.mxu0 0
      %547 = vmatprep.mubr.bf16.mxu0 0
      %548 = vmatmul.mubr.bf16.gmra.mrb[0].mxu0 %v459
      %v549 = vpop.f32.mrb[0].mxu0
      %v550 = vadd.f32 0.0, %v549
      %v551 = vpop.f32.mrb[0].mxu0
      %v552 = vpop.f32.mrb[0].mxu0
      %v553 = vadd.f32 0.0, %v552
      %v554 = vpop.f32.mrb[0].mxu0
      %555 = vmatprep.mubr.bf16.mxu0 0
      %556 = vmatmul.mubr.bf16.gmra.mrb[0].mxu0 %v460
      %v557 = vpop.f32.mrb[0].mxu0
      %v558 = vadd.f32 0.0, %v557
      %v559 = vpop.f32.mrb[0].mxu0
      %v560 = vpop.f32.mrb[0].mxu0
      %v561 = vadd.f32 0.0, %v560
      %v562 = vpop.f32.mrb[0].mxu0
      %563 = vmatprep.mubr.bf16.mxu0 0
      %564 = vmatmul.mubr.bf16.gmra.mrb[0].mxu0 %v461
      %v565 = vpop.f32.mrb[0].mxu0
      %v566 = vadd.f32 0.0, %v565
      %v567 = vpop.f32.mrb[0].mxu0
      %v568 = vpop.f32.mrb[0].mxu0
      %v569 = vadd.f32 0.0, %v568
      %v570 = vpop.f32.mrb[0].mxu0
      %571 = vmatprep.mubr.bf16.mxu0 0
      %572 = vmatmul.mubr.bf16.gmra.mrb[0].mxu0 %v462
      %v573 = vpop.f32.mrb[0].mxu0
      %v574 = vadd.f32 0.0, %v573
      %v575 = vpop.f32.mrb[0].mxu0
      %v576 = vpop.f32.mrb[0].mxu0
      %v577 = vadd.f32 0.0, %v576
      %v578 = vpop.f32.mrb[0].mxu0
      %579 = vdwg.mxu0
      %v588 = vunpack.c.l.b16 %v286
      %v589 = vunpack.c.l.b16 %v288
      %v590 = vunpack.c.l.b16 %v290
      %v591 = vunpack.c.l.b16 %v292
      %v592 = vunpack.c.l.b16 %v294
      %v593 = vunpack.c.l.b16 %v296
      %v594 = vunpack.c.l.b16 %v298
      %v595 = vunpack.c.l.b16 %v300
      %v596 = vpack.c.b16 %v589, %v588
      %v597 = vpack.c.b16 %v591, %v590
      %v598 = vpack.c.b16 %v593, %v592
      %v599 = vpack.c.b16 %v595, %v594
      %v620 = vunpack.c.l.b16 %v304
      %v621 = vunpack.c.l.b16 %v305
      %v622 = vunpack.c.l.b16 %v306
      %v623 = vunpack.c.l.b16 %v307
      %v624 = vunpack.c.l.b16 %v308
      %v625 = vunpack.c.l.b16 %v309
      %v626 = vunpack.c.l.b16 %v310
      %v627 = vunpack.c.l.b16 %v311
      %v628 = vunpack.c.l.b16 %v312
      %v629 = vunpack.c.l.b16 %v313
      %v630 = vunpack.c.l.b16 %v314
      %v631 = vunpack.c.l.b16 %v315
      %v632 = vunpack.c.l.b16 %v316
      %v633 = vunpack.c.l.b16 %v317
      %v634 = vunpack.c.l.b16 %v318
      %v635 = vunpack.c.l.b16 %v319
      %v636 = vpack.c.b16 %v621, %v620
      %v637 = vpack.c.b16 %v623, %v622
      %v638 = vpack.c.b16 %v625, %v624
      %v639 = vpack.c.b16 %v627, %v626
      %v640 = vpack.c.b16 %v629, %v628
      %v641 = vpack.c.b16 %v631, %v630
      %v642 = vpack.c.b16 %v633, %v632
      %v643 = vpack.c.b16 %v635, %v634
      %652 = vmatprep.subr.bf16.mxu0 0
      %653 = vmatpush1.bf16.msra.mxu0 %v636
      %654 = vmatprep.subr.bf16.mxu0 0
      %655 = vmatpush1.bf16.msra.mxu0 %v637
      %656 = vmatprep.subr.bf16.mxu0 0
      %657 = vmatpush1.bf16.msra.mxu0 %v638
      %658 = vmatprep.subr.bf16.mxu0 0
      %659 = vmatpush1.bf16.msra.mxu0 %v639
      %660 = vmatprep.subr.bf16.mxu0 0
      %661 = vmatpush1.bf16.msra.mxu0 %v640
      %662 = vmatprep.subr.bf16.mxu0 0
      %663 = vmatpush1.bf16.msra.mxu0 %v641
      %664 = vmatprep.subr.bf16.mxu0 0
      %665 = vmatpush1.bf16.msra.mxu0 %v642
      %666 = vmatprep.subr.bf16.mxu0 0
      %667 = vmatpush1.bf16.msra.mxu0 %v643
      %668 = vmatprep.subr.bf16.mxu0 0
      %669 = vmatpush1.bf16.msra.mxu0 0
      %670 = vmatprep.subr.bf16.mxu0 0
      %671 = vmatpush1.bf16.msra.mxu0 0
      %672 = vmatprep.subr.bf16.mxu0 0
      %673 = vmatpush1.bf16.msra.mxu0 0
      %674 = vmatprep.subr.bf16.mxu0 0
      %675 = vmatpush1.bf16.msra.mxu0 0
      %676 = vmatprep.subr.bf16.mxu0 0
      %677 = vmatpush1.bf16.msra.mxu0 0
      %678 = vmatprep.subr.bf16.mxu0 0
      %679 = vmatpush1.bf16.msra.mxu0 0
      %680 = vmatprep.subr.bf16.mxu0 0
      %681 = vmatpush1.bf16.msra.mxu0 0
      %682 = vmatprep.subr.bf16.mxu0 0
      %683 = vmatpush1.bf16.msra.mxu0 0
      %684 = vmatprep.mubr.bf16.mxu0 0
      %685 = vmatmul.mubr.bf16.gmra.mrb[0].mxu0 %v596
      %v686 = vpop.f32.mrb[0].mxu0
      %v687 = vadd.f32 %v550, %v686
      %v688 = vpop.f32.mrb[0].mxu0
      %v689 = vpop.f32.mrb[0].mxu0
      %v690 = vadd.f32 %v553, %v689
      %v691 = vpop.f32.mrb[0].mxu0
      %692 = vmatprep.mubr.bf16.mxu0 0
      %693 = vmatmul.mubr.bf16.gmra.mrb[0].mxu0 %v597
      %v694 = vpop.f32.mrb[0].mxu0
      %v695 = vadd.f32 %v558, %v694
      %v696 = vpop.f32.mrb[0].mxu0
      %v697 = vpop.f32.mrb[0].mxu0
      %v698 = vadd.f32 %v561, %v697
      %v699 = vpop.f32.mrb[0].mxu0
      %700 = vmatprep.mubr.bf16.mxu0 0
      %701 = vmatmul.mubr.bf16.gmra.mrb[0].mxu0 %v598
      %v702 = vpop.f32.mrb[0].mxu0
      %v703 = vadd.f32 %v566, %v702
      %v704 = vpop.f32.mrb[0].mxu0
      %v705 = vpop.f32.mrb[0].mxu0
      %v706 = vadd.f32 %v569, %v705
      %v707 = vpop.f32.mrb[0].mxu0
      %708 = vmatprep.mubr.bf16.mxu0 0
      %709 = vmatmul.mubr.bf16.gmra.mrb[0].mxu0 %v599
      %v710 = vpop.f32.mrb[0].mxu0
      %v711 = vadd.f32 %v574, %v710
      %v712 = vpop.f32.mrb[0].mxu0
      %v713 = vpop.f32.mrb[0].mxu0
      %v714 = vadd.f32 %v577, %v713
      %v715 = vpop.f32.mrb[0].mxu0
      %716 = vdwg.mxu0
      %v717 = vld [vmem:[%s1 + $0x80] sm:$0xf]
      %v718 = vld [vmem:[%s1 + $0x84] sm:$0xf]
      %v719 = vld [vmem:[%s1 + $0x88] sm:$0xf]
      %v720 = vld [vmem:[%s1 + $0x8c] sm:$0xf]
      %v721 = vld [vmem:[%s1 + $0x90] sm:$0xf]
      %v722 = vld [vmem:[%s1 + $0x94] sm:$0xf]
      %v723 = vld [vmem:[%s1 + $0x98] sm:$0xf]
      %v724 = vld [vmem:[%s1 + $0x9c] sm:$0xf]
      %v725 = vld [vmem:[%s1 + $0xa0] sm:$0xf]
      %v726 = vld [vmem:[%s1 + $0xa4] sm:$0xf]
      %v727 = vld [vmem:[%s1 + $0xa8] sm:$0xf]
      %v728 = vld [vmem:[%s1 + $0xac] sm:$0xf]
      %v729 = vld [vmem:[%s1 + $0xb0] sm:$0xf]
      %v730 = vld [vmem:[%s1 + $0xb4] sm:$0xf]
      %v731 = vld [vmem:[%s1 + $0xb8] sm:$0xf]
      %v732 = vld [vmem:[%s1 + $0xbc] sm:$0xf]
      %v734 = vunpack.c.l.b16 %v302
      %v735 = vpack.c.b16 %v590, %v589
      %v736 = vpack.c.b16 %v592, %v591
      %v737 = vpack.c.b16 %v594, %v593
      %v738 = vpack.c.b16 %v734, %v595
      %v759 = vunpack.c.l.b16 %v717
      %v760 = vunpack.c.l.b16 %v718
      %v761 = vunpack.c.l.b16 %v719
      %v762 = vunpack.c.l.b16 %v720
      %v763 = vunpack.c.l.b16 %v721
      %v764 = vunpack.c.l.b16 %v722
      %v765 = vunpack.c.l.b16 %v723
      %v766 = vunpack.c.l.b16 %v724
      %v767 = vunpack.c.l.b16 %v725
      %v768 = vunpack.c.l.b16 %v726
      %v769 = vunpack.c.l.b16 %v727
      %v770 = vunpack.c.l.b16 %v728
      %v771 = vunpack.c.l.b16 %v729
      %v772 = vunpack.c.l.b16 %v730
      %v773 = vunpack.c.l.b16 %v731
      %v774 = vunpack.c.l.b16 %v732
      %v775 = vpack.c.b16 %v760, %v759
      %v776 = vpack.c.b16 %v762, %v761
      %v777 = vpack.c.b16 %v764, %v763
      %v778 = vpack.c.b16 %v766, %v765
      %v779 = vpack.c.b16 %v768, %v767
      %v780 = vpack.c.b16 %v770, %v769
      %v781 = vpack.c.b16 %v772, %v771
      %v782 = vpack.c.b16 %v774, %v773
      %791 = vmatprep.subr.bf16.mxu0 0
      %792 = vmatpush1.bf16.msra.mxu0 %v775
      %793 = vmatprep.subr.bf16.mxu0 0
      %794 = vmatpush1.bf16.msra.mxu0 %v776
      %795 = vmatprep.subr.bf16.mxu0 0
      %796 = vmatpush1.bf16.msra.mxu0 %v777
      %797 = vmatprep.subr.bf16.mxu0 0
      %798 = vmatpush1.bf16.msra.mxu0 %v778
      %799 = vmatprep.subr.bf16.mxu0 0
      %800 = vmatpush1.bf16.msra.mxu0 %v779
      %801 = vmatprep.subr.bf16.mxu0 0
      %802 = vmatpush1.bf16.msra.mxu0 %v780
      %803 = vmatprep.subr.bf16.mxu0 0
      %804 = vmatpush1.bf16.msra.mxu0 %v781
      %805 = vmatprep.subr.bf16.mxu0 0
      %806 = vmatpush1.bf16.msra.mxu0 %v782
      %807 = vmatprep.subr.bf16.mxu0 0
      %808 = vmatpush1.bf16.msra.mxu0 0
      %809 = vmatprep.subr.bf16.mxu0 0
      %810 = vmatpush1.bf16.msra.mxu0 0
      %811 = vmatprep.subr.bf16.mxu0 0
      %812 = vmatpush1.bf16.msra.mxu0 0
      %813 = vmatprep.subr.bf16.mxu0 0
      %814 = vmatpush1.bf16.msra.mxu0 0
      %815 = vmatprep.subr.bf16.mxu0 0
      %816 = vmatpush1.bf16.msra.mxu0 0
      %817 = vmatprep.subr.bf16.mxu0 0
      %818 = vmatpush1.bf16.msra.mxu0 0
      %819 = vmatprep.subr.bf16.mxu0 0
      %820 = vmatpush1.bf16.msra.mxu0 0
      %821 = vmatprep.subr.bf16.mxu0 0
      %822 = vmatpush1.bf16.msra.mxu0 0
      %823 = vmatprep.mubr.bf16.mxu0 0
      %824 = vmatmul.mubr.bf16.gmra.mrb[0].mxu0 %v735
      %v825 = vpop.f32.mrb[0].mxu0
      %v826 = vadd.f32 0.0, %v825
      %v827 = vpop.f32.mrb[0].mxu0
      %v828 = vpop.f32.mrb[0].mxu0
      %v829 = vadd.f32 0.0, %v828
      %v830 = vpop.f32.mrb[0].mxu0
      %831 = vmatprep.mubr.bf16.mxu0 0
      %832 = vmatmul.mubr.bf16.gmra.mrb[0].mxu0 %v736
      %v833 = vpop.f32.mrb[0].mxu0
      %v834 = vadd.f32 0.0, %v833
      %v835 = vpop.f32.mrb[0].mxu0
      %v836 = vpop.f32.mrb[0].mxu0
      %v837 = vadd.f32 0.0, %v836
      %v838 = vpop.f32.mrb[0].mxu0
      %839 = vmatprep.mubr.bf16.mxu0 0
      %840 = vmatmul.mubr.bf16.gmra.mrb[0].mxu0 %v737
      %v841 = vpop.f32.mrb[0].mxu0
      %v842 = vadd.f32 0.0, %v841
      %v843 = vpop.f32.mrb[0].mxu0
      %v844 = vpop.f32.mrb[0].mxu0
      %v845 = vadd.f32 0.0, %v844
      %v846 = vpop.f32.mrb[0].mxu0
      %847 = vmatprep.mubr.bf16.mxu0 0
      %848 = vmatmul.mubr.bf16.gmra.mrb[0].mxu0 %v738
      %v849 = vpop.f32.mrb[0].mxu0
      %v850 = vadd.f32 0.0, %v849
      %v851 = vpop.f32.mrb[0].mxu0
      %v852 = vpop.f32.mrb[0].mxu0
      %v853 = vadd.f32 0.0, %v852
      %v854 = vpop.f32.mrb[0].mxu0
      %855 = vdwg.mxu0
      %v856 = vadd.f32 %v687, %v826
      %v857 = vadd.f32 %v690, %v829
      %v858 = vadd.f32 %v695, %v834
      %v859 = vadd.f32 %v698, %v837
      %v860 = vadd.f32 %v703, %v842
      %v861 = vadd.f32 %v706, %v845
      %v862 = vadd.f32 %v711, %v850
      %v863 = vadd.f32 %v714, %v853
      %v865 = vshrl.u32 %v302, 16
      %v867 = vrot.slane %v865, 4
      %v868 = vshll.u32 %v302, 16
      %v870 = vrot.slane %v868, 5
      %v871 = vor.u32 %v867, %v870
      %v872 = vrot.slane %v871, 4
      %v874 = vshll.u32 %v303, 16
      %v876 = vrot.slane %v874, 5
      %v877 = vsel %vm322, %v872, %v876
      %v878 = vld [vmem:[%s1 + $0xc0] sm:$0xf]
      %v879 = vld [vmem:[%s1 + $0xc4] sm:$0xf]
      %v880 = vld [vmem:[%s1 + $0xc8] sm:$0xf]
      %v881 = vld [vmem:[%s1 + $0xcc] sm:$0xf]
      %v882 = vld [vmem:[%s1 + $0xd0] sm:$0xf]
      %v883 = vld [vmem:[%s1 + $0xd4] sm:$0xf]
      %v884 = vld [vmem:[%s1 + $0xd8] sm:$0xf]
      %v885 = vld [vmem:[%s1 + $0xdc] sm:$0xf]
      %v886 = vld [vmem:[%s1 + $0xe0] sm:$0xf]
      %v887 = vld [vmem:[%s1 + $0xe4] sm:$0xf]
      %v888 = vld [vmem:[%s1 + $0xe8] sm:$0xf]
      %v889 = vld [vmem:[%s1 + $0xec] sm:$0xf]
      %v890 = vld [vmem:[%s1 + $0xf0] sm:$0xf]
      %v891 = vld [vmem:[%s1 + $0xf4] sm:$0xf]
      %v892 = vld [vmem:[%s1 + $0xf8] sm:$0xf]
      %v893 = vld [vmem:[%s1 + $0xfc] sm:$0xf]
      %v894 = vunpack.c.l.b16 %v877
      %v895 = vpack.c.b16 %v453, %v452
      %v896 = vpack.c.b16 %v455, %v454
      %v897 = vpack.c.b16 %v457, %v456
      %v898 = vpack.c.b16 %v894, %v458
      %v919 = vunpack.c.l.b16 %v878
      %v920 = vunpack.c.l.b16 %v879
      %v921 = vunpack.c.l.b16 %v880
      %v922 = vunpack.c.l.b16 %v881
      %v923 = vunpack.c.l.b16 %v882
      %v924 = vunpack.c.l.b16 %v883
      %v925 = vunpack.c.l.b16 %v884
      %v926 = vunpack.c.l.b16 %v885
      %v927 = vunpack.c.l.b16 %v886
      %v928 = vunpack.c.l.b16 %v887
      %v929 = vunpack.c.l.b16 %v888
      %v930 = vunpack.c.l.b16 %v889
      %v931 = vunpack.c.l.b16 %v890
      %v932 = vunpack.c.l.b16 %v891
      %v933 = vunpack.c.l.b16 %v892
      %v934 = vunpack.c.l.b16 %v893
      %v935 = vpack.c.b16 %v920, %v919
      %v936 = vpack.c.b16 %v922, %v921
      %v937 = vpack.c.b16 %v924, %v923
      %v938 = vpack.c.b16 %v926, %v925
      %v939 = vpack.c.b16 %v928, %v927
      %v940 = vpack.c.b16 %v930, %v929
      %v941 = vpack.c.b16 %v932, %v931
      %v942 = vpack.c.b16 %v934, %v933
      %951 = vmatprep.subr.bf16.mxu0 0
      %952 = vmatpush1.bf16.msra.mxu0 %v935
      %953 = vmatprep.subr.bf16.mxu0 0
      %954 = vmatpush1.bf16.msra.mxu0 %v936
      %955 = vmatprep.subr.bf16.mxu0 0
      %956 = vmatpush1.bf16.msra.mxu0 %v937
      %957 = vmatprep.subr.bf16.mxu0 0
      %958 = vmatpush1.bf16.msra.mxu0 %v938
      %959 = vmatprep.subr.bf16.mxu0 0
      %960 = vmatpush1.bf16.msra.mxu0 %v939
      %961 = vmatprep.subr.bf16.mxu0 0
      %962 = vmatpush1.bf16.msra.mxu0 %v940
      %963 = vmatprep.subr.bf16.mxu0 0
      %964 = vmatpush1.bf16.msra.mxu0 %v941
      %965 = vmatprep.subr.bf16.mxu0 0
      %966 = vmatpush1.bf16.msra.mxu0 %v942
      %967 = vmatprep.subr.bf16.mxu0 0
      %968 = vmatpush1.bf16.msra.mxu0 0
      %969 = vmatprep.subr.bf16.mxu0 0
      %970 = vmatpush1.bf16.msra.mxu0 0
      %971 = vmatprep.subr.bf16.mxu0 0
      %972 = vmatpush1.bf16.msra.mxu0 0
      %973 = vmatprep.subr.bf16.mxu0 0
      %974 = vmatpush1.bf16.msra.mxu0 0
      %975 = vmatprep.subr.bf16.mxu0 0
      %976 = vmatpush1.bf16.msra.mxu0 0
      %977 = vmatprep.subr.bf16.mxu0 0
      %978 = vmatpush1.bf16.msra.mxu0 0
      %979 = vmatprep.subr.bf16.mxu0 0
      %980 = vmatpush1.bf16.msra.mxu0 0
      %981 = vmatprep.subr.bf16.mxu0 0
      %982 = vmatpush1.bf16.msra.mxu0 0
      %983 = vmatprep.mubr.bf16.mxu0 0
      %984 = vmatmul.mubr.bf16.gmra.mrb[0].mxu0 %v895
      %v985 = vpop.f32.mrb[0].mxu0
      %v986 = vadd.f32 0.0, %v985
      %v987 = vpop.f32.mrb[0].mxu0
      %v988 = vpop.f32.mrb[0].mxu0
      %v989 = vadd.f32 0.0, %v988
      %v990 = vpop.f32.mrb[0].mxu0
      %991 = vmatprep.mubr.bf16.mxu0 0
      %992 = vmatmul.mubr.bf16.gmra.mrb[0].mxu0 %v896
      %v993 = vpop.f32.mrb[0].mxu0
      %v994 = vadd.f32 0.0, %v993
      %v995 = vpop.f32.mrb[0].mxu0
      %v996 = vpop.f32.mrb[0].mxu0
      %v997 = vadd.f32 0.0, %v996
      %v998 = vpop.f32.mrb[0].mxu0
      %999 = vmatprep.mubr.bf16.mxu0 0
      %1000 = vmatmul.mubr.bf16.gmra.mrb[0].mxu0 %v897
      %v1001 = vpop.f32.mrb[0].mxu0
      %v1002 = vadd.f32 0.0, %v1001
      %v1003 = vpop.f32.mrb[0].mxu0
      %v1004 = vpop.f32.mrb[0].mxu0
      %v1005 = vadd.f32 0.0, %v1004
      %v1006 = vpop.f32.mrb[0].mxu0
      %1007 = vmatprep.mubr.bf16.mxu0 0
      %1008 = vmatmul.mubr.bf16.gmra.mrb[0].mxu0 %v898
      %v1009 = vpop.f32.mrb[0].mxu0
      %v1010 = vadd.f32 0.0, %v1009
      %v1011 = vpop.f32.mrb[0].mxu0
      %v1012 = vpop.f32.mrb[0].mxu0
      %v1013 = vadd.f32 0.0, %v1012
      %v1014 = vpop.f32.mrb[0].mxu0
      %1015 = vdwg.mxu0
      %v1016 = vadd.f32 %v856, %v986
      %v1017 = vadd.f32 %v857, %v989
      %v1018 = vadd.f32 %v858, %v994
      %v1019 = vadd.f32 %v859, %v997
      %v1020 = vadd.f32 %v860, %v1002
      %v1021 = vadd.f32 %v861, %v1005
      %v1022 = vadd.f32 %v862, %v1010
      %v1023 = vadd.f32 %v863, %v1013
      %v1024 = vpack.c.bf16 %v1017, %v1016
      %v1025 = vpack.c.bf16 %v1019, %v1018
      %v1026 = vpack.c.bf16 %v1021, %v1020
      %v1027 = vpack.c.bf16 %v1023, %v1022
      %v1032 = vunpack.c.l.b16 %v1024
      %v1033 = vunpack.c.h.b16 %v1024
      %v1034 = vunpack.c.l.b16 %v1025
      %v1035 = vunpack.c.h.b16 %v1025
      %v1036 = vunpack.c.l.b16 %v1026
      %v1037 = vunpack.c.h.b16 %v1026
      %v1038 = vunpack.c.l.b16 %v1027
      %v1039 = vunpack.c.h.b16 %v1027
      %v1040 = vpack.c.b16 %v1032, %v1032
      %v1041 = vpack.c.b16 %v1033, %v1033
      %v1042 = vpack.c.b16 %v1034, %v1034
      %v1043 = vpack.c.b16 %v1035, %v1035
      %v1044 = vpack.c.b16 %v1036, %v1036
      %v1045 = vpack.c.b16 %v1037, %v1037
      %v1046 = vpack.c.b16 %v1038, %v1038
      %v1047 = vpack.c.b16 %v1039, %v1039
      %1056 = vst [vmem:[%s271] sm:$0xf] %v1040
      %1057 = vst [vmem:[%s271 + $0x4] sm:$0xf] %v1041
      %1058 = vst [vmem:[%s271 + $0x8] sm:$0xf] %v1042
      %1059 = vst [vmem:[%s271 + $0xc] sm:$0xf] %v1043
      %1060 = vst [vmem:[%s271 + $0x10] sm:$0xf] %v1044
      %1061 = vst [vmem:[%s271 + $0x14] sm:$0xf] %v1045
      %1062 = vst [vmem:[%s271 + $0x18] sm:$0xf] %v1046
      %1063 = vst [vmem:[%s271 + $0x1c] sm:$0xf] %v1047
      %v1064 = vunpack.c.l.bf16 %v1024
      %v1065 = vunpack.c.h.bf16 %v1024
      %v1066 = vunpack.c.l.bf16 %v1025
      %v1067 = vunpack.c.h.bf16 %v1025
      %v1068 = vunpack.c.l.bf16 %v1026
      %v1069 = vunpack.c.h.bf16 %v1026
      %v1070 = vunpack.c.l.bf16 %v1027
      %v1071 = vunpack.c.h.bf16 %v1027
      %v1072 = vadd.f32 %v1064, %v1065
      %v1073 = vadd.f32 %v1072, %v1066
      %v1074 = vadd.f32 %v1073, %v1067
      %v1075 = vadd.f32 %v1074, %v1068
      %v1076 = vadd.f32 %v1075, %v1069
      %v1077 = vadd.f32 %v1076, %v1070
      %v1078 = vadd.f32 %v1077, %v1071
      %v1079 = vrot.slane %v1078, 4
      %v1080 = vadd.f32 %v1078, %v1079
      %v1081 = vrot.slane %v1080, 2
      %v1082 = vadd.f32 %v1080, %v1081
      %v1083 = vrot.slane %v1082, 1
      %v1084 = vadd.f32 %v1082, %v1083
      %v1085 = vmul.f32 %v1084, 0.015625
      %v1086 = vsub.f32 %v1064, %v1085
      %v1087 = vsub.f32 %v1065, %v1085
      %v1088 = vsub.f32 %v1066, %v1085
      %v1089 = vsub.f32 %v1067, %v1085
      %v1090 = vsub.f32 %v1068, %v1085
      %v1091 = vsub.f32 %v1069, %v1085
      %v1092 = vsub.f32 %v1070, %v1085
      %v1093 = vsub.f32 %v1071, %v1085
      %v1094 = vmul.f32 %v1086, %v1086
      %v1095 = vmul.f32 %v1087, %v1087
      %v1096 = vmul.f32 %v1088, %v1088
      %v1097 = vmul.f32 %v1089, %v1089
      %v1098 = vmul.f32 %v1090, %v1090
      %v1099 = vmul.f32 %v1091, %v1091
      %v1100 = vmul.f32 %v1092, %v1092
      %v1101 = vmul.f32 %v1093, %v1093
      %v1102 = vadd.f32 %v1094, %v1095
      %v1103 = vadd.f32 %v1102, %v1096
      %v1104 = vadd.f32 %v1103, %v1097
      %v1105 = vadd.f32 %v1104, %v1098
      %v1106 = vadd.f32 %v1105, %v1099
      %v1107 = vadd.f32 %v1106, %v1100
      %v1108 = vadd.f32 %v1107, %v1101
      %v1109 = vrot.slane %v1108, 4
      %v1110 = vadd.f32 %v1108, %v1109
      %v1111 = vrot.slane %v1110, 2
      %v1112 = vadd.f32 %v1110, %v1111
      %v1113 = vrot.slane %v1112, 1
      %v1114 = vadd.f32 %v1112, %v1113
      %vm1115 = vcmask 1040384
      %v1116 = vsel %vm1115, %v1084, %v1114
      %vm1117 = vcmask 1041408
      %v1118 = vsel %vm1117, %v1116, 0.0
      %1119 = vst [vmem:[%s280] sm:$0xff] %v1118
      %v1120 = vld [vmem:[%s2] sm:$0xf]
      %v1121 = vld [vmem:[%s2 + $0x4] sm:$0xf]
      %v1122 = vld [vmem:[%s2 + $0x8] sm:$0xf]
      %v1123 = vld [vmem:[%s2 + $0xc] sm:$0xf]
      %v1124 = vld [vmem:[%s2 + $0x10] sm:$0xf]
      %v1125 = vld [vmem:[%s2 + $0x14] sm:$0xf]
      %v1126 = vld [vmem:[%s2 + $0x18] sm:$0xf]
      %v1127 = vld [vmem:[%s2 + $0x1c] sm:$0xf]
      %v1128 = vld [vmem:[%s2 + $0x20] sm:$0xf]
      %v1129 = vld [vmem:[%s2 + $0x24] sm:$0xf]
      %v1130 = vld [vmem:[%s2 + $0x28] sm:$0xf]
      %v1131 = vld [vmem:[%s2 + $0x2c] sm:$0xf]
      %v1132 = vld [vmem:[%s2 + $0x30] sm:$0xf]
      %v1133 = vld [vmem:[%s2 + $0x34] sm:$0xf]
      %v1134 = vld [vmem:[%s2 + $0x38] sm:$0xf]
      %v1135 = vld [vmem:[%s2 + $0x3c] sm:$0xf]
      %v1152 = vunpack.c.l.b16 %v1120
      %v1153 = vunpack.c.l.b16 %v1121
      %v1154 = vunpack.c.l.b16 %v1122
      %v1155 = vunpack.c.l.b16 %v1123
      %v1156 = vunpack.c.l.b16 %v1124
      %v1157 = vunpack.c.l.b16 %v1125
      %v1158 = vunpack.c.l.b16 %v1126
      %v1159 = vunpack.c.l.b16 %v1127
      %v1160 = vunpack.c.l.b16 %v1128
      %v1161 = vunpack.c.l.b16 %v1129
      %v1162 = vunpack.c.l.b16 %v1130
      %v1163 = vunpack.c.l.b16 %v1131
      %v1164 = vunpack.c.l.b16 %v1132
      %v1165 = vunpack.c.l.b16 %v1133
      %v1166 = vunpack.c.l.b16 %v1134
      %v1167 = vunpack.c.l.b16 %v1135
      %v1168 = vpack.c.b16 %v1153, %v1152
      %v1169 = vpack.c.b16 %v1155, %v1154
      %v1170 = vpack.c.b16 %v1157, %v1156
      %v1171 = vpack.c.b16 %v1159, %v1158
      %v1172 = vpack.c.b16 %v1161, %v1160
      %v1173 = vpack.c.b16 %v1163, %v1162
      %v1174 = vpack.c.b16 %v1165, %v1164
      %v1175 = vpack.c.b16 %v1167, %v1166
      %1184 = vmatprep.subr.bf16.mxu0 0
      %1185 = vmatpush1.bf16.msra.mxu0 %v1168
      %1186 = vmatprep.subr.bf16.mxu0 0
      %1187 = vmatpush1.bf16.msra.mxu0 %v1169
      %1188 = vmatprep.subr.bf16.mxu0 0
      %1189 = vmatpush1.bf16.msra.mxu0 %v1170
      %1190 = vmatprep.subr.bf16.mxu0 0
      %1191 = vmatpush1.bf16.msra.mxu0 %v1171
      %1192 = vmatprep.subr.bf16.mxu0 0
      %1193 = vmatpush1.bf16.msra.mxu0 %v1172
      %1194 = vmatprep.subr.bf16.mxu0 0
      %1195 = vmatpush1.bf16.msra.mxu0 %v1173
      %1196 = vmatprep.subr.bf16.mxu0 0
      %1197 = vmatpush1.bf16.msra.mxu0 %v1174
      %1198 = vmatprep.subr.bf16.mxu0 0
      %1199 = vmatpush1.bf16.msra.mxu0 %v1175
      %1200 = vmatprep.subr.bf16.mxu0 0
      %1201 = vmatpush1.bf16.msra.mxu0 0
      %1202 = vmatprep.subr.bf16.mxu0 0
      %1203 = vmatpush1.bf16.msra.mxu0 0
      %1204 = vmatprep.subr.bf16.mxu0 0
      %1205 = vmatpush1.bf16.msra.mxu0 0
      %1206 = vmatprep.subr.bf16.mxu0 0
      %1207 = vmatpush1.bf16.msra.mxu0 0
      %1208 = vmatprep.subr.bf16.mxu0 0
      %1209 = vmatpush1.bf16.msra.mxu0 0
      %1210 = vmatprep.subr.bf16.mxu0 0
      %1211 = vmatpush1.bf16.msra.mxu0 0
      %1212 = vmatprep.subr.bf16.mxu0 0
      %1213 = vmatpush1.bf16.msra.mxu0 0
      %1214 = vmatprep.subr.bf16.mxu0 0
      %1215 = vmatpush1.bf16.msra.mxu0 0
      %1216 = vmatprep.mubr.bf16.mxu0 0
      %1217 = vmatmul.mubr.bf16.gmra.mrb[0].mxu0 %v596
      %v1218 = vpop.f32.mrb[0].mxu0
      %v1219 = vadd.f32 0.0, %v1218
      %v1220 = vpop.f32.mrb[0].mxu0
      %v1221 = vpop.f32.mrb[0].mxu0
      %v1222 = vadd.f32 0.0, %v1221
      %v1223 = vpop.f32.mrb[0].mxu0
      %1224 = vmatprep.mubr.bf16.mxu0 0
      %1225 = vmatmul.mubr.bf16.gmra.mrb[0].mxu0 %v597
      %v1226 = vpop.f32.mrb[0].mxu0
      %v1227 = vadd.f32 0.0, %v1226
      %v1228 = vpop.f32.mrb[0].mxu0
      %v1229 = vpop.f32.mrb[0].mxu0
      %v1230 = vadd.f32 0.0, %v1229
      %v1231 = vpop.f32.mrb[0].mxu0
      %1232 = vmatprep.mubr.bf16.mxu0 0
      %1233 = vmatmul.mubr.bf16.gmra.mrb[0].mxu0 %v598
      %v1234 = vpop.f32.mrb[0].mxu0
      %v1235 = vadd.f32 0.0, %v1234
      %v1236 = vpop.f32.mrb[0].mxu0
      %v1237 = vpop.f32.mrb[0].mxu0
      %v1238 = vadd.f32 0.0, %v1237
      %v1239 = vpop.f32.mrb[0].mxu0
      %1240 = vmatprep.mubr.bf16.mxu0 0
      %1241 = vmatmul.mubr.bf16.gmra.mrb[0].mxu0 %v599
      %v1242 = vpop.f32.mrb[0].mxu0
      %v1243 = vadd.f32 0.0, %v1242
      %v1244 = vpop.f32.mrb[0].mxu0
      %v1245 = vpop.f32.mrb[0].mxu0
      %v1246 = vadd.f32 0.0, %v1245
      %v1247 = vpop.f32.mrb[0].mxu0
      %1248 = vdwg.mxu0
      %v1249 = vpack.c.bf16 %v1222, %v1219
      %v1250 = vpack.c.bf16 %v1230, %v1227
      %v1251 = vpack.c.bf16 %v1238, %v1235
      %v1252 = vpack.c.bf16 %v1246, %v1243
      %v1257 = vunpack.c.l.b16 %v1249
      %v1258 = vunpack.c.h.b16 %v1249
      %v1259 = vunpack.c.l.b16 %v1250
      %v1260 = vunpack.c.h.b16 %v1250
      %v1261 = vunpack.c.l.b16 %v1251
      %v1262 = vunpack.c.h.b16 %v1251
      %v1263 = vunpack.c.l.b16 %v1252
      %v1264 = vunpack.c.h.b16 %v1252
      %v1265 = vpack.c.b16 %v1257, %v1257
      %v1266 = vpack.c.b16 %v1258, %v1258
      %v1267 = vpack.c.b16 %v1259, %v1259
      %v1268 = vpack.c.b16 %v1260, %v1260
      %v1269 = vpack.c.b16 %v1261, %v1261
      %v1270 = vpack.c.b16 %v1262, %v1262
      %v1271 = vpack.c.b16 %v1263, %v1263
      %v1272 = vpack.c.b16 %v1264, %v1264
      %1281 = vst [vmem:[%s276] sm:$0xf] %v1265
      %1282 = vst [vmem:[%s276 + $0x4] sm:$0xf] %v1266
      %1283 = vst [vmem:[%s276 + $0x8] sm:$0xf] %v1267
      %1284 = vst [vmem:[%s276 + $0xc] sm:$0xf] %v1268
      %1285 = vst [vmem:[%s276 + $0x10] sm:$0xf] %v1269
      %1286 = vst [vmem:[%s276 + $0x14] sm:$0xf] %v1270
      %1287 = vst [vmem:[%s276 + $0x18] sm:$0xf] %v1271
      %1288 = vst [vmem:[%s276 + $0x1c] sm:$0xf] %v1272
      %v1289 = vunpack.c.l.bf16 %v1249
      %v1290 = vunpack.c.h.bf16 %v1249
      %v1291 = vunpack.c.l.bf16 %v1250
      %v1292 = vunpack.c.h.bf16 %v1250
      %v1293 = vunpack.c.l.bf16 %v1251
      %v1294 = vunpack.c.h.bf16 %v1251
      %v1295 = vunpack.c.l.bf16 %v1252
      %v1296 = vunpack.c.h.bf16 %v1252
      %v1297 = vadd.f32 %v1289, %v1290
      %v1298 = vadd.f32 %v1297, %v1291
      %v1299 = vadd.f32 %v1298, %v1292
      %v1300 = vadd.f32 %v1299, %v1293
      %v1301 = vadd.f32 %v1300, %v1294
      %v1302 = vadd.f32 %v1301, %v1295
      %v1303 = vadd.f32 %v1302, %v1296
      %v1304 = vrot.slane %v1303, 4
      %v1305 = vadd.f32 %v1303, %v1304
      %v1306 = vrot.slane %v1305, 2
      %v1307 = vadd.f32 %v1305, %v1306
      %v1308 = vrot.slane %v1307, 1
      %v1309 = vadd.f32 %v1307, %v1308
      %v1310 = vmul.f32 %v1309, 0.015625
      %v1311 = vsub.f32 %v1289, %v1310
      %v1312 = vsub.f32 %v1290, %v1310
      %v1313 = vsub.f32 %v1291, %v1310
      %v1314 = vsub.f32 %v1292, %v1310
      %v1315 = vsub.f32 %v1293, %v1310
      %v1316 = vsub.f32 %v1294, %v1310
      %v1317 = vsub.f32 %v1295, %v1310
      %v1318 = vsub.f32 %v1296, %v1310
      %v1319 = vmul.f32 %v1311, %v1311
      %v1320 = vmul.f32 %v1312, %v1312
      %v1321 = vmul.f32 %v1313, %v1313
      %v1322 = vmul.f32 %v1314, %v1314
      %v1323 = vmul.f32 %v1315, %v1315
      %v1324 = vmul.f32 %v1316, %v1316
      %v1325 = vmul.f32 %v1317, %v1317
      %v1326 = vmul.f32 %v1318, %v1318
      %v1327 = vadd.f32 %v1319, %v1320
      %v1328 = vadd.f32 %v1327, %v1321
      %v1329 = vadd.f32 %v1328, %v1322
      %v1330 = vadd.f32 %v1329, %v1323
      %v1331 = vadd.f32 %v1330, %v1324
      %v1332 = vadd.f32 %v1331, %v1325
      %v1333 = vadd.f32 %v1332, %v1326
      %v1334 = vrot.slane %v1333, 4
      %v1335 = vadd.f32 %v1333, %v1334
      %v1336 = vrot.slane %v1335, 2
      %v1337 = vadd.f32 %v1335, %v1336
      %v1338 = vrot.slane %v1337, 1
      %v1339 = vadd.f32 %v1337, %v1338
      %v1340 = vsel %vm1115, %v1309, %v1339
      %v1341 = vsel %vm1117, %v1340, 0.0
      %1342 = vst [vmem:[%s284] sm:$0xff] %v1341
      %p1343 = scmp.lt.s32.totalorder %s18, 1
      %s1344 = scalar_select %p1343, %s18, 1
      %s1345 = smul.addr %s1344, 8
      %s1346 = smul.addr %s1345, 4
      %s1347 = scalar_lea.vmem %s3, %s1346
      %p1348 = scmp.lt.s32.totalorder %s18, 1
      %s1349 = scalar_select %p1348, %s18, 1
      %s1350 = smul.addr %s1349, 8
      %s1351 = smul.addr %s1350, 4
      %s1352 = scalar_lea.vmem %s4, %s1351
      %p1353 = scmp.lt.s32.totalorder %s18, 1
      %s1354 = scalar_select %p1353, %s18, 1
      %s1355 = smul.addr %s1354, 8
      %s1356 = scalar_lea.vmem %s5, %s1355
      %p1357 = scmp.lt.s32.totalorder %s18, 1
      %s1358 = scalar_select %p1357, %s18, 1
      %s1359 = smul.addr %s1358, 8
      %s1360 = scalar_lea.vmem %s6, %s1359
      // Predicated region
      $region33: #{basic_block_forward.3} parent=31 // pred_check
        %p1361 = pneg %p104
      $region34: #{basic_block_forward.3} parent=31 // pred_check_branch
        %1363 = sbr.rel (%p1361) target = $region36
      $region35: #{basic_block_forward.3} parent=31 // pred_region
        _
      $region36: #{basic_block_forward.3} parent=31 // pred_fallthru
        _
      // Predicated region
      $region37: #{basic_block_forward.3} parent=31 // pred_check
        %p1364 = pneg %p130
      $region38: #{basic_block_forward.3} parent=31 // pred_check_branch
        %1366 = sbr.rel (%p1364) target = $region40
      $region39: #{basic_block_forward.3} parent=31 // pred_region
        _
      $region40: #{basic_block_forward.3} parent=31 // pred_fallthru
        _
      // Predicated region
      $region41: #{basic_block_forward.3} parent=31 // pred_check
        %p1367 = pneg %p156
      $region42: #{basic_block_forward.3} parent=31 // pred_check_branch
        %1369 = sbr.rel (%p1367) target = $region44
      $region43: #{basic_block_forward.3} parent=31 // pred_region
        _
      $region44: #{basic_block_forward.3} parent=31 // pred_fallthru
        _
      // Predicated region
      $region45: #{basic_block_forward.3} parent=31 // pred_check
        %p1370 = pneg %p182
      $region46: #{basic_block_forward.3} parent=31 // pred_check_branch
        %1372 = sbr.rel (%p1370) target = $region48
      $region47: #{basic_block_forward.3} parent=31 // pred_region
        _
      $region48: #{basic_block_forward.3} parent=31 // pred_fallthru
        _
    $region32: #{basic_block_forward.3} parent=5 // pred_fallthru
      _
    %p1373 = scmp.le.s32.totalorder 2, %s13
    // Predicated region
    $region49: #{basic_block_forward.3} parent=5 // pred_check
      %p1374 = pneg %p1373
    $region50: #{basic_block_forward.3} parent=5 // pred_check_branch
      %1376 = sbr.rel (%p1374) target = $region52
    $region51: #{basic_block_forward.3} parent=5 // pred_region
      %s1377 = ssub.s32 %s13, 2
      // Predicated region
      $region53: #{basic_block_forward.3} parent=51 // pred_check
        %p1378 = pneg %p110
      $region54: #{basic_block_forward.3} parent=51 // pred_check_branch
        %1380 = sbr.rel (%p1378) target = $region56
      $region55: #{basic_block_forward.3} parent=51 // pred_region
        %p1381 = scmp.lt.s32.totalorder %s19, 1
        %s1382 = scalar_select %p1381, %s19, 1
        %s1383 = smul.addr %s1382, 8
        %s1384 = smul.addr %s1383, 4
        %s1385 = scalar_lea.vmem %s3, %s1384
      $region56: #{basic_block_forward.3} parent=51 // pred_fallthru
        _
      // Predicated region
      $region57: #{basic_block_forward.3} parent=51 // pred_check
        %p1386 = pneg %p136
      $region58: #{basic_block_forward.3} parent=51 // pred_check_branch
        %1388 = sbr.rel (%p1386) target = $region60
      $region59: #{basic_block_forward.3} parent=51 // pred_region
        %p1389 = scmp.lt.s32.totalorder %s19, 1
        %s1390 = scalar_select %p1389, %s19, 1
        %s1391 = smul.addr %s1390, 8
        %s1392 = smul.addr %s1391, 4
        %s1393 = scalar_lea.vmem %s4, %s1392
      $region60: #{basic_block_forward.3} parent=51 // pred_fallthru
        _
      // Predicated region
      $region61: #{basic_block_forward.3} parent=51 // pred_check
        %p1394 = pneg %p162
      $region62: #{basic_block_forward.3} parent=51 // pred_check_branch
        %1396 = sbr.rel (%p1394) target = $region64
      $region63: #{basic_block_forward.3} parent=51 // pred_region
        %p1397 = scmp.lt.s32.totalorder %s19, 1
        %s1398 = scalar_select %p1397, %s19, 1
        %s1399 = smul.addr %s1398, 8
        %s1400 = scalar_lea.vmem %s5, %s1399
      $region64: #{basic_block_forward.3} parent=51 // pred_fallthru
        _
      // Predicated region
      $region65: #{basic_block_forward.3} parent=51 // pred_check
        %p1401 = pneg %p188
      $region66: #{basic_block_forward.3} parent=51 // pred_check_branch
        %1403 = sbr.rel (%p1401) target = $region68
      $region67: #{basic_block_forward.3} parent=51 // pred_region
        %p1404 = scmp.lt.s32.totalorder %s19, 1
        %s1405 = scalar_select %p1404, %s19, 1
        %s1406 = smul.addr %s1405, 8
        %s1407 = scalar_lea.vmem %s6, %s1406
      $region68: #{basic_block_forward.3} parent=51 // pred_fallthru
        _
    $region52: #{basic_block_forward.3} parent=5 // pred_fallthru
      _
  $region6: #{basic_block_forward.3} parent=0 // loop_footer
    %s17 = sadd.s32 1, %s13
  $region7: #{basic_block_forward.3} parent=0 // loop_footer_branch
    %12 = sbr.rel target = $region3
  $region8: #{basic_block_forward.3} parent=0 // loop_exit
    _

// kernel: basic_block_forward.5
$region0: #{basic_block_forward.5}
  #allocation0 [shape = 'u32[]', space=smem, size = 0x4, offset = 0x4, fixed_abs, tag = 'smem constant byte address 0x4 - core index']
  #allocation1 [shape = 'u32[144,128]{1,0:T(1,128)}', space=vmem, size = 0x12000, scoped, tag = 'internal scratch']
  %s0 = inlined_call_operand.vmem [shape: bf16[2,8,8,128], index: 0, kind: input, shape index: {}]
  %s1 = inlined_call_operand.vmem [shape: bf16[2,8,8,128], index: 1, kind: input, shape index: {}]
  %s2 = inlined_call_operand.vmem [shape: f32[1,128], index: 2, kind: input, shape index: {}]
  %s3 = inlined_call_operand.vmem [shape: f32[1,128], index: 3, kind: input, shape index: {}]
  %s4 = inlined_call_operand.vmem [shape: f32[1,128], index: 4, kind: input, shape index: {}]
  %s5 = inlined_call_operand.vmem [shape: f32[1,128], index: 5, kind: input, shape index: {}]
  %s6 = inlined_call_operand.vmem [shape: bf16[2,8,8,128], index: 6, kind: output, shape index: {}]
  %s7 = sld [smem:[#allocation0]]
  $region57: #{basic_block_forward.5} parent=0
    _
  %s9 = ssub.s32 1, %s7
  %s10 = scalar_select 0, %s9, %s7
  loop: start=0, step=1, limit=4
  $region2: #{basic_block_forward.5} parent=0 // loop_pre_header
    _
  $region3: #{basic_block_forward.5} parent=0 // loop_header
    %s12 = sphi 0, %s16
    %p13 = scmp.ge.s32.totalorder %s12, 4
    %s22 = sphi 0, %s24
    %s25 = sphi 0, %s22
    %s26 = sphi 0, %s25
    %s42 = sphi 0, %s26
    %s48 = sphi 0, %s50
    %s51 = sphi 0, %s48
    %s52 = sphi 0, %s51
    %s68 = sphi 0, %s52
    %s72 = sphi 0, %s72
    %s74 = sphi 0, %s72
    %s75 = sphi 0, %s74
    %s89 = sphi 0, %s75
    %s93 = sphi 0, %s93
    %s95 = sphi 0, %s93
    %s96 = sphi 0, %s95
    %s110 = sphi 0, %s96
    %s114 = sphi 0, %s114
    %s116 = sphi 0, %s114
    %s117 = sphi 0, %s116
    %s131 = sphi 0, %s117
    %s135 = sphi 0, %s135
    %s137 = sphi 0, %s135
    %s138 = sphi 0, %s137
    %s152 = sphi 0, %s138
    %s158 = sphi 0, %s160
    %s161 = sphi 0, %s158
    %s162 = sphi 0, %s161
    %s178 = sphi 0, %s162
  $region4: #{basic_block_forward.5} parent=0 // loop_header_branch
    %15 = sbr.rel (%p13) target = $region8
  $region5: #{basic_block_forward.5} parent=0 // loop_body
    %s17 = ssub.s32 %s12, 1
    %s18 = ssub.s32 %s12, 2
    %s19 = sadd.s32 %s12, 1
    %s20 = ssub.s32 %s12, %s19
    %p21 = scmp.eq.s32.totalorder %s20, 0
    %s23 = sadd.s32 %s22, 1
    %s24 = scalar_select %p21, %s22, %s23
    %p27 = pneg %p21
    %p28 = scmp.eq.s32.totalorder %s12, 1
    %p29 = por %p27, %p28
    %p30 = scmp.ne.s32.totalorder %s22, %s25
    %p31 = scmp.eq.s32.totalorder %s12, 0
    %p32 = por %p30, %p31
    %p33 = scmp.ne.s32.totalorder %s22, %s25
    %p34 = scmp.eq.s32.totalorder %s17, 1
    %p35 = por %p33, %p34
    %p36 = scmp.ne.s32.totalorder %s25, %s26
    %p37 = scmp.eq.s32.totalorder %s17, 0
    %p38 = por %p36, %p37
    %p39 = scmp.ne.s32.totalorder %s25, %s26
    %p40 = scmp.eq.s32.totalorder %s18, 1
    %p41 = por %p39, %p40
    %p43 = scmp.ne.s32.totalorder %s26, %s42
    %p44 = scmp.eq.s32.totalorder %s18, 0
    %p45 = por %p43, %p44
    %s46 = ssub.s32 %s12, %s19
    %p47 = scmp.eq.s32.totalorder %s46, 0
    %s49 = sadd.s32 %s48, 1
    %s50 = scalar_select %p47, %s48, %s49
    %p53 = pneg %p47
    %p54 = scmp.eq.s32.totalorder %s12, 1
    %p55 = por %p53, %p54
    %p56 = scmp.ne.s32.totalorder %s48, %s51
    %p57 = scmp.eq.s32.totalorder %s12, 0
    %p58 = por %p56, %p57
    %p59 = scmp.ne.s32.totalorder %s48, %s51
    %p60 = scmp.eq.s32.totalorder %s17, 1
    %p61 = por %p59, %p60
    %p62 = scmp.ne.s32.totalorder %s51, %s52
    %p63 = scmp.eq.s32.totalorder %s17, 0
    %p64 = por %p62, %p63
    %p65 = scmp.ne.s32.totalorder %s51, %s52
    %p66 = scmp.eq.s32.totalorder %s18, 1
    %p67 = por %p65, %p66
    %p69 = scmp.ne.s32.totalorder %s52, %s68
    %p70 = scmp.eq.s32.totalorder %s18, 0
    %p71 = por %p69, %p70
    %s73 = sadd.s32 %s72, 1
    %p76 = scmp.eq.s32.totalorder %s12, 1
    %p77 = scmp.ne.s32.totalorder %s72, %s74
    %p78 = scmp.eq.s32.totalorder %s12, 0
    %p79 = por %p77, %p78
    %p80 = scmp.ne.s32.totalorder %s72, %s74
    %p81 = scmp.eq.s32.totalorder %s17, 1
    %p82 = por %p80, %p81
    %p83 = scmp.ne.s32.totalorder %s74, %s75
    %p84 = scmp.eq.s32.totalorder %s17, 0
    %p85 = por %p83, %p84
    %p86 = scmp.ne.s32.totalorder %s74, %s75
    %p87 = scmp.eq.s32.totalorder %s18, 1
    %p88 = por %p86, %p87
    %p90 = scmp.ne.s32.totalorder %s75, %s89
    %p91 = scmp.eq.s32.totalorder %s18, 0
    %p92 = por %p90, %p91
    %s94 = sadd.s32 %s93, 1
    %p97 = scmp.eq.s32.totalorder %s12, 1
    %p98 = scmp.ne.s32.totalorder %s93, %s95
    %p99 = scmp.eq.s32.totalorder %s12, 0
    %p100 = por %p98, %p99
    %p101 = scmp.ne.s32.totalorder %s93, %s95
    %p102 = scmp.eq.s32.totalorder %s17, 1
    %p103 = por %p101, %p102
    %p104 = scmp.ne.s32.totalorder %s95, %s96
    %p105 = scmp.eq.s32.totalorder %s17, 0
    %p106 = por %p104, %p105
    %p107 = scmp.ne.s32.totalorder %s95, %s96
    %p108 = scmp.eq.s32.totalorder %s18, 1
    %p109 = por %p107, %p108
    %p111 = scmp.ne.s32.totalorder %s96, %s110
    %p112 = scmp.eq.s32.totalorder %s18, 0
    %p113 = por %p111, %p112
    %s115 = sadd.s32 %s114, 1
    %p118 = scmp.eq.s32.totalorder %s12, 1
    %p119 = scmp.ne.s32.totalorder %s114, %s116
    %p120 = scmp.eq.s32.totalorder %s12, 0
    %p121 = por %p119, %p120
    %p122 = scmp.ne.s32.totalorder %s114, %s116
    %p123 = scmp.eq.s32.totalorder %s17, 1
    %p124 = por %p122, %p123
    %p125 = scmp.ne.s32.totalorder %s116, %s117
    %p126 = scmp.eq.s32.totalorder %s17, 0
    %p127 = por %p125, %p126
    %p128 = scmp.ne.s32.totalorder %s116, %s117
    %p129 = scmp.eq.s32.totalorder %s18, 1
    %p130 = por %p128, %p129
    %p132 = scmp.ne.s32.totalorder %s117, %s131
    %p133 = scmp.eq.s32.totalorder %s18, 0
    %p134 = por %p132, %p133
    %s136 = sadd.s32 %s135, 1
    %p139 = scmp.eq.s32.totalorder %s12, 1
    %p140 = scmp.ne.s32.totalorder %s135, %s137
    %p141 = scmp.eq.s32.totalorder %s12, 0
    %p142 = por %p140, %p141
    %p143 = scmp.ne.s32.totalorder %s135, %s137
    %p144 = scmp.eq.s32.totalorder %s17, 1
    %p145 = por %p143, %p144
    %p146 = scmp.ne.s32.totalorder %s137, %s138
    %p147 = scmp.eq.s32.totalorder %s17, 0
    %p148 = por %p146, %p147
    %p149 = scmp.ne.s32.totalorder %s137, %s138
    %p150 = scmp.eq.s32.totalorder %s18, 1
    %p151 = por %p149, %p150
    %p153 = scmp.ne.s32.totalorder %s138, %s152
    %p154 = scmp.eq.s32.totalorder %s18, 0
    %p155 = por %p153, %p154
    %s156 = ssub.s32 %s12, %s19
    %p157 = scmp.eq.s32.totalorder %s156, 0
    %s159 = sadd.s32 %s158, 1
    %s160 = scalar_select %p157, %s158, %s159
    %p163 = pneg %p157
    %p164 = scmp.eq.s32.totalorder %s12, 1
    %p165 = por %p163, %p164
    %p166 = scmp.ne.s32.totalorder %s158, %s161
    %p167 = scmp.eq.s32.totalorder %s12, 0
    %p168 = por %p166, %p167
    %p169 = scmp.ne.s32.totalorder %s158, %s161
    %p170 = scmp.eq.s32.totalorder %s17, 1
    %p171 = por %p169, %p170
    %p172 = scmp.ne.s32.totalorder %s161, %s162
    %p173 = scmp.eq.s32.totalorder %s17, 0
    %p174 = por %p172, %p173
    %p175 = scmp.ne.s32.totalorder %s161, %s162
    %p176 = scmp.eq.s32.totalorder %s18, 1
    %p177 = por %p175, %p176
    %p179 = scmp.ne.s32.totalorder %s162, %s178
    %p180 = scmp.eq.s32.totalorder %s18, 0
    %p181 = por %p179, %p180
    %p182 = scmp.le.s32.totalorder 1, %s12
    %p183 = scmp.lt.s32.totalorder %s12, 3
    %p184 = pnand %p182, %p183
    %p185 = pneg %p184
    // Predicated region
    $region9: #{basic_block_forward.5} parent=5 // pred_check
      _
    $region10: #{basic_block_forward.5} parent=5 // pred_check_branch
      %187 = sbr.rel (%p184) target = $region12
    $region11: #{basic_block_forward.5} parent=5 // pred_region
      %s188 = ssub.s32 %s12, 1
      // Predicated region
      $region13: #{basic_block_forward.5} parent=11 // pred_check
        %p189 = pneg %p85
      $region14: #{basic_block_forward.5} parent=11 // pred_check_branch
        %191 = sbr.rel (%p189) target = $region16
      $region15: #{basic_block_forward.5} parent=11 // pred_region
        _
      $region16: #{basic_block_forward.5} parent=11 // pred_fallthru
        _
      // Predicated region
      $region17: #{basic_block_forward.5} parent=11 // pred_check
        %p192 = pneg %p106
      $region18: #{basic_block_forward.5} parent=11 // pred_check_branch
        %194 = sbr.rel (%p192) target = $region20
      $region19: #{basic_block_forward.5} parent=11 // pred_region
        _
      $region20: #{basic_block_forward.5} parent=11 // pred_fallthru
        _
      // Predicated region
      $region21: #{basic_block_forward.5} parent=11 // pred_check
        %p195 = pneg %p127
      $region22: #{basic_block_forward.5} parent=11 // pred_check_branch
        %197 = sbr.rel (%p195) target = $region24
      $region23: #{basic_block_forward.5} parent=11 // pred_region
        _
      $region24: #{basic_block_forward.5} parent=11 // pred_fallthru
        _
      // Predicated region
      $region25: #{basic_block_forward.5} parent=11 // pred_check
        %p198 = pneg %p148
      $region26: #{basic_block_forward.5} parent=11 // pred_check_branch
        %200 = sbr.rel (%p198) target = $region28
      $region27: #{basic_block_forward.5} parent=11 // pred_region
        _
      $region28: #{basic_block_forward.5} parent=11 // pred_fallthru
        _
    $region12: #{basic_block_forward.5} parent=5 // pred_fallthru
      _
    %p201 = scmp.lt.s32.totalorder %s12, 2
    // Predicated region
    $region29: #{basic_block_forward.5} parent=5 // pred_check
      %p202 = pneg %p201
    $region30: #{basic_block_forward.5} parent=5 // pred_check_branch
      %204 = sbr.rel (%p202) target = $region32
    $region31: #{basic_block_forward.5} parent=5 // pred_region
      // Predicated region
      $region33: #{basic_block_forward.5} parent=31 // pred_check
        %p205 = pneg %p32
      $region34: #{basic_block_forward.5} parent=31 // pred_check_branch
        %207 = sbr.rel (%p205) target = $region36
      $region35: #{basic_block_forward.5} parent=31 // pred_region
        %p208 = scmp.lt.s32.totalorder %s12, 1
        %s209 = scalar_select %p208, %s12, 1
        %s210 = smul.addr %s209, 8
        %s211 = smul.addr %s210, 4
        %s212 = scalar_lea.vmem %s0, %s211
      $region36: #{basic_block_forward.5} parent=31 // pred_fallthru
        _
      // Predicated region
      $region37: #{basic_block_forward.5} parent=31 // pred_check
        %p213 = pneg %p58
      $region38: #{basic_block_forward.5} parent=31 // pred_check_branch
        %215 = sbr.rel (%p213) target = $region40
      $region39: #{basic_block_forward.5} parent=31 // pred_region
        %p216 = scmp.lt.s32.totalorder %s12, 1
        %s217 = scalar_select %p216, %s12, 1
        %s218 = smul.addr %s217, 8
        %s219 = smul.addr %s218, 4
        %s220 = scalar_lea.vmem %s1, %s219
      $region40: #{basic_block_forward.5} parent=31 // pred_fallthru
        _
    $region32: #{basic_block_forward.5} parent=5 // pred_fallthru
      _
    %p221 = scmp.le.s32.totalorder 1, %s12
    %p222 = scmp.lt.s32.totalorder %s12, 3
    %p223 = pnand %p221, %p222
    %p224 = pneg %p223
    // Predicated region
    $region41: #{basic_block_forward.5} parent=5 // pred_check
      _
    $region42: #{basic_block_forward.5} parent=5 // pred_check_branch
      %226 = sbr.rel (%p223) target = $region44
    $region43: #{basic_block_forward.5} parent=5 // pred_region
      %s227 = ssub.s32 %s12, 1
      %p228 = scmp.lt.s32.totalorder %s17, 1
      %s229 = scalar_select %p228, %s17, 1
      %s230 = smul.addr %s229, 8
      %s231 = smul.addr %s230, 4
      %s232 = scalar_lea.vmem %s0, %s231
      %p233 = pneg %p38
      %p234 = pneg %p35
      %p235 = scmp.lt.s32.totalorder %s17, 1
      %s236 = scalar_select %p235, %s17, 1
      %s237 = smul.addr %s236, 8
      %s238 = smul.addr %s237, 4
      %s239 = scalar_lea.vmem %s1, %s238
      %p240 = pneg %p64
      %p241 = pneg %p61
      %p242 = pneg %p85
      %p243 = pneg %p82
      %p244 = pneg %p106
      %p245 = pneg %p103
      %p246 = pneg %p127
      %p247 = pneg %p124
      %p248 = pneg %p148
      %p249 = pneg %p145
      %p250 = pneg %p174
      %p251 = pneg %p171
      %p252 = scmp.lt.s32.totalorder %s17, 1
      %s253 = scalar_select %p252, %s17, 1
      %s254 = smul.addr %s253, 8
      %s255 = smul.addr %s254, 4
      %s256 = scalar_lea.vmem %s6, %s255
      %p257 = scmp.lt.s32.totalorder %s17, 1
      %s258 = scalar_select %p257, %s17, 1
      %s259 = smul.addr %s258, 8
      %s260 = smul.addr %s259, 4
      %s261 = scalar_lea.vmem %s0, %s260
      %p262 = scmp.lt.s32.totalorder %s17, 1
      %s263 = scalar_select %p262, %s17, 1
      %s264 = smul.addr %s263, 8
      %s265 = smul.addr %s264, 4
      %s266 = scalar_lea.vmem %s1, %s265
      %p267 = scmp.lt.s32.totalorder %s17, 1
      %s268 = scalar_select %p267, %s17, 1
      %s269 = smul.addr %s268, 8
      %s270 = smul.addr %s269, 4
      %s271 = scalar_lea.vmem %s6, %s270
      %v272 = vld [vmem:[%s261] sm:$0xf]
      %v273 = vld [vmem:[%s261 + $0x4] sm:$0xf]
      %v274 = vld [vmem:[%s261 + $0x8] sm:$0xf]
      %v275 = vld [vmem:[%s261 + $0xc] sm:$0xf]
      %v276 = vld [vmem:[%s261 + $0x10] sm:$0xf]
      %v277 = vld [vmem:[%s261 + $0x14] sm:$0xf]
      %v278 = vld [vmem:[%s261 + $0x18] sm:$0xf]
      %v279 = vld [vmem:[%s261 + $0x1c] sm:$0xf]
      %v280 = vunpack.c.l.bf16 %v272
      %v281 = vunpack.c.l.bf16 %v273
      %v282 = vunpack.c.l.bf16 %v274
      %v283 = vunpack.c.l.bf16 %v275
      %v284 = vunpack.c.l.bf16 %v276
      %v285 = vunpack.c.l.bf16 %v277
      %v286 = vunpack.c.l.bf16 %v278
      %v287 = vunpack.c.l.bf16 %v279
      %v288 = vld [vmem:[%s266] sm:$0xf]
      %v289 = vld [vmem:[%s266 + $0x4] sm:$0xf]
      %v290 = vld [vmem:[%s266 + $0x8] sm:$0xf]
      %v291 = vld [vmem:[%s266 + $0xc] sm:$0xf]
      %v292 = vld [vmem:[%s266 + $0x10] sm:$0xf]
      %v293 = vld [vmem:[%s266 + $0x14] sm:$0xf]
      %v294 = vld [vmem:[%s266 + $0x18] sm:$0xf]
      %v295 = vld [vmem:[%s266 + $0x1c] sm:$0xf]
      %v296 = vunpack.c.l.bf16 %v288
      %v297 = vunpack.c.l.bf16 %v289
      %v298 = vunpack.c.l.bf16 %v290
      %v299 = vunpack.c.l.bf16 %v291
      %v300 = vunpack.c.l.bf16 %v292
      %v301 = vunpack.c.l.bf16 %v293
      %v302 = vunpack.c.l.bf16 %v294
      %v303 = vunpack.c.l.bf16 %v295
      %v304 = vld [vmem:[%s4] sm:$0x1]
      %v306 = vlaneseq
      %v307 = vshrl.u32 %v306, 7
      %v308 = vsub.s32 0, %v307
      %v309 = vrot.slane %v304, %v308
      %v311 = vmul.f32 %v296, %v309
      %v312 = vmul.f32 %v297, %v309
      %v313 = vmul.f32 %v298, %v309
      %v314 = vmul.f32 %v299, %v309
      %v315 = vmul.f32 %v300, %v309
      %v316 = vmul.f32 %v301, %v309
      %v317 = vmul.f32 %v302, %v309
      %v318 = vmul.f32 %v303, %v309
      %v319 = vld [vmem:[%s5] sm:$0x1]
      %v321 = vlaneseq
      %v322 = vshrl.u32 %v321, 7
      %v323 = vsub.s32 0, %v322
      %v324 = vrot.slane %v319, %v323
      %v326 = vadd.f32 %v311, %v324
      %v327 = vadd.f32 %v312, %v324
      %v328 = vadd.f32 %v313, %v324
      %v329 = vadd.f32 %v314, %v324
      %v330 = vadd.f32 %v315, %v324
      %v331 = vadd.f32 %v316, %v324
      %v332 = vadd.f32 %v317, %v324
      %v333 = vadd.f32 %v318, %v324
      %v334 = vld [vmem:[%s2] sm:$0x1]
      %v336 = vlaneseq
      %v337 = vshrl.u32 %v336, 7
      %v338 = vsub.s32 0, %v337
      %v339 = vrot.slane %v334, %v338
      %v341 = vmul.f32 %v280, %v339
      %v342 = vmul.f32 %v281, %v339
      %v343 = vmul.f32 %v282, %v339
      %v344 = vmul.f32 %v283, %v339
      %v345 = vmul.f32 %v284, %v339
      %v346 = vmul.f32 %v285, %v339
      %v347 = vmul.f32 %v286, %v339
      %v348 = vmul.f32 %v287, %v339
      %v349 = vld [vmem:[%s3] sm:$0x1]
      %v351 = vlaneseq
      %v352 = vshrl.u32 %v351, 7
      %v353 = vsub.s32 0, %v352
      %v354 = vrot.slane %v349, %v353
      %v356 = vadd.f32 %v341, %v354
      %v357 = vadd.f32 %v342, %v354
      %v358 = vadd.f32 %v343, %v354
      %v359 = vadd.f32 %v344, %v354
      %v360 = vadd.f32 %v345, %v354
      %v361 = vadd.f32 %v346, %v354
      %v362 = vadd.f32 %v347, %v354
      %v363 = vadd.f32 %v348, %v354
      %v364 = vadd.f32 %v356, %v326
      %v365 = vadd.f32 %v357, %v327
      %v366 = vadd.f32 %v358, %v328
      %v367 = vadd.f32 %v359, %v329
      %v368 = vadd.f32 %v360, %v330
      %v369 = vadd.f32 %v361, %v331
      %v370 = vadd.f32 %v362, %v332
      %v371 = vadd.f32 %v363, %v333
      %v372 = vmax.f32 %v364, 0.0
      %v373 = vmax.f32 %v365, 0.0
      %v374 = vmax.f32 %v366, 0.0
      %v375 = vmax.f32 %v367, 0.0
      %v376 = vmax.f32 %v368, 0.0
      %v377 = vmax.f32 %v369, 0.0
      %v378 = vmax.f32 %v370, 0.0
      %v379 = vmax.f32 %v371, 0.0
      %v380 = vpack.c.bf16 %v372, %v372
      %v381 = vpack.c.bf16 %v373, %v373
      %v382 = vpack.c.bf16 %v374, %v374
      %v383 = vpack.c.bf16 %v375, %v375
      %v384 = vpack.c.bf16 %v376, %v376
      %v385 = vpack.c.bf16 %v377, %v377
      %v386 = vpack.c.bf16 %v378, %v378
      %v387 = vpack.c.bf16 %v379, %v379
      %388 = vst [vmem:[%s271] sm:$0xf] %v380
      %389 = vst [vmem:[%s271 + $0x4] sm:$0xf] %v381
      %390 = vst [vmem:[%s271 + $0x8] sm:$0xf] %v382
      %391 = vst [vmem:[%s271 + $0xc] sm:$0xf] %v383
      %392 = vst [vmem:[%s271 + $0x10] sm:$0xf] %v384
      %393 = vst [vmem:[%s271 + $0x14] sm:$0xf] %v385
      %394 = vst [vmem:[%s271 + $0x18] sm:$0xf] %v386
      %395 = vst [vmem:[%s271 + $0x1c] sm:$0xf] %v387
      %p396 = scmp.lt.s32.totalorder %s17, 1
      %s397 = scalar_select %p396, %s17, 1
      %s398 = smul.addr %s397, 8
      %s399 = smul.addr %s398, 4
      %s400 = scalar_lea.vmem %s6, %s399
      // Predicated region
      $region45: #{basic_block_forward.5} parent=43 // pred_check
        %p401 = pneg %p171
      $region46: #{basic_block_forward.5} parent=43 // pred_check_branch
        %403 = sbr.rel (%p401) target = $region48
      $region47: #{basic_block_forward.5} parent=43 // pred_region
        _
      $region48: #{basic_block_forward.5} parent=43 // pred_fallthru
        _
    $region44: #{basic_block_forward.5} parent=5 // pred_fallthru
      _
    %p404 = scmp.le.s32.totalorder 2, %s12
    // Predicated region
    $region49: #{basic_block_forward.5} parent=5 // pred_check
      %p405 = pneg %p404
    $region50: #{basic_block_forward.5} parent=5 // pred_check_branch
      %407 = sbr.rel (%p405) target = $region52
    $region51: #{basic_block_forward.5} parent=5 // pred_region
      %s408 = ssub.s32 %s12, 2
      // Predicated region
      $region53: #{basic_block_forward.5} parent=51 // pred_check
        %p409 = pneg %p177
      $region54: #{basic_block_forward.5} parent=51 // pred_check_branch
        %411 = sbr.rel (%p409) target = $region56
      $region55: #{basic_block_forward.5} parent=51 // pred_region
        %p412 = scmp.lt.s32.totalorder %s18, 1
        %s413 = scalar_select %p412, %s18, 1
        %s414 = smul.addr %s413, 8
        %s415 = smul.addr %s414, 4
        %s416 = scalar_lea.vmem %s6, %s415
      $region56: #{basic_block_forward.5} parent=51 // pred_fallthru
        _
    $region52: #{basic_block_forward.5} parent=5 // pred_fallthru
      _
  $region6: #{basic_block_forward.5} parent=0 // loop_footer
    %s16 = sadd.s32 1, %s12
  $region7: #{basic_block_forward.5} parent=0 // loop_footer_branch
    %11 = sbr.rel target = $region3
  $region8: #{basic_block_forward.5} parent=0 // loop_exit
    _

// kernel: basic_block_forward.4
$region0: #{basic_block_forward.4}
  #allocation0 [shape = 'u32[]', space=smem, size = 0x4, offset = 0x4, fixed_abs, tag = 'smem constant byte address 0x4 - core index']
  #allocation1 [shape = 'u32[144,128]{1,0:T(1,128)}', space=vmem, size = 0x12000, scoped, tag = 'internal scratch']
  %s0 = inlined_call_operand.vmem [shape: bf16[2,8,8,128], index: 0, kind: input, shape index: {}]
  %s1 = inlined_call_operand.vmem [shape: bf16[1152,128], index: 1, kind: input, shape index: {}]
  %s2 = inlined_call_operand.vmem [shape: f32[1,128], index: 2, kind: input, shape index: {}]
  %s3 = inlined_call_operand.vmem [shape: f32[1,128], index: 3, kind: input, shape index: {}]
  %s4 = inlined_call_operand.vmem [shape: bf16[2,8,8,128], index: 4, kind: output, shape index: {0}]
  %s5 = inlined_call_operand.vmem [shape: f32[16,128], index: 5, kind: output, shape index: {1}]
  %6 = xla_tuple %s4, %s5
  %s7 = sld [smem:[#allocation0]]
  $region57: #{basic_block_forward.4} parent=0
    _
  %s9 = ssub.s32 1, %s7
  %s10 = scalar_select 0, %s9, %s7
  loop: start=0, step=1, limit=4
  $region2: #{basic_block_forward.4} parent=0 // loop_pre_header
    _
  $region3: #{basic_block_forward.4} parent=0 // loop_header
    %s12 = sphi 0, %s16
    %p13 = scmp.ge.s32.totalorder %s12, 4
    %s22 = sphi 0, %s24
    %s25 = sphi 0, %s22
    %s26 = sphi 0, %s25
    %s42 = sphi 0, %s26
    %s46 = sphi 0, %s46
    %s48 = sphi 0, %s46
    %s49 = sphi 0, %s48
    %s63 = sphi 0, %s49
    %s67 = sphi 0, %s67
    %s69 = sphi 0, %s67
    %s70 = sphi 0, %s69
    %s84 = sphi 0, %s70
    %s88 = sphi 0, %s88
    %s90 = sphi 0, %s88
    %s91 = sphi 0, %s90
    %s105 = sphi 0, %s91
    %s111 = sphi 0, %s113
    %s114 = sphi 0, %s111
    %s115 = sphi 0, %s114
    %s131 = sphi 0, %s115
    %s137 = sphi 0, %s139
    %s140 = sphi 0, %s137
    %s141 = sphi 0, %s140
    %s157 = sphi 0, %s141
  $region4: #{basic_block_forward.4} parent=0 // loop_header_branch
    %15 = sbr.rel (%p13) target = $region8
  $region5: #{basic_block_forward.4} parent=0 // loop_body
    %s17 = ssub.s32 %s12, 1
    %s18 = ssub.s32 %s12, 2
    %s19 = sadd.s32 %s12, 1
    %s20 = ssub.s32 %s12, %s19
    %p21 = scmp.eq.s32.totalorder %s20, 0
    %s23 = sadd.s32 %s22, 1
    %s24 = scalar_select %p21, %s22, %s23
    %p27 = pneg %p21
    %p28 = scmp.eq.s32.totalorder %s12, 1
    %p29 = por %p27, %p28
    %p30 = scmp.ne.s32.totalorder %s22, %s25
    %p31 = scmp.eq.s32.totalorder %s12, 0
    %p32 = por %p30, %p31
    %p33 = scmp.ne.s32.totalorder %s22, %s25
    %p34 = scmp.eq.s32.totalorder %s17, 1
    %p35 = por %p33, %p34
    %p36 = scmp.ne.s32.totalorder %s25, %s26
    %p37 = scmp.eq.s32.totalorder %s17, 0
    %p38 = por %p36, %p37
    %p39 = scmp.ne.s32.totalorder %s25, %s26
    %p40 = scmp.eq.s32.totalorder %s18, 1
    %p41 = por %p39, %p40
    %p43 = scmp.ne.s32.totalorder %s26, %s42
    %p44 = scmp.eq.s32.totalorder %s18, 0
    %p45 = por %p43, %p44
    %s47 = sadd.s32 %s46, 1
    %p50 = scmp.eq.s32.totalorder %s12, 1
    %p51 = scmp.ne.s32.totalorder %s46, %s48
    %p52 = scmp.eq.s32.totalorder %s12, 0
    %p53 = por %p51, %p52
    %p54 = scmp.ne.s32.totalorder %s46, %s48
    %p55 = scmp.eq.s32.totalorder %s17, 1
    %p56 = por %p54, %p55
    %p57 = scmp.ne.s32.totalorder %s48, %s49
    %p58 = scmp.eq.s32.totalorder %s17, 0
    %p59 = por %p57, %p58
    %p60 = scmp.ne.s32.totalorder %s48, %s49
    %p61 = scmp.eq.s32.totalorder %s18, 1
    %p62 = por %p60, %p61
    %p64 = scmp.ne.s32.totalorder %s49, %s63
    %p65 = scmp.eq.s32.totalorder %s18, 0
    %p66 = por %p64, %p65
    %s68 = sadd.s32 %s67, 1
    %p71 = scmp.eq.s32.totalorder %s12, 1
    %p72 = scmp.ne.s32.totalorder %s67, %s69
    %p73 = scmp.eq.s32.totalorder %s12, 0
    %p74 = por %p72, %p73
    %p75 = scmp.ne.s32.totalorder %s67, %s69
    %p76 = scmp.eq.s32.totalorder %s17, 1
    %p77 = por %p75, %p76
    %p78 = scmp.ne.s32.totalorder %s69, %s70
    %p79 = scmp.eq.s32.totalorder %s17, 0
    %p80 = por %p78, %p79
    %p81 = scmp.ne.s32.totalorder %s69, %s70
    %p82 = scmp.eq.s32.totalorder %s18, 1
    %p83 = por %p81, %p82
    %p85 = scmp.ne.s32.totalorder %s70, %s84
    %p86 = scmp.eq.s32.totalorder %s18, 0
    %p87 = por %p85, %p86
    %s89 = sadd.s32 %s88, 1
    %p92 = scmp.eq.s32.totalorder %s12, 1
    %p93 = scmp.ne.s32.totalorder %s88, %s90
    %p94 = scmp.eq.s32.totalorder %s12, 0
    %p95 = por %p93, %p94
    %p96 = scmp.ne.s32.totalorder %s88, %s90
    %p97 = scmp.eq.s32.totalorder %s17, 1
    %p98 = por %p96, %p97
    %p99 = scmp.ne.s32.totalorder %s90, %s91
    %p100 = scmp.eq.s32.totalorder %s17, 0
    %p101 = por %p99, %p100
    %p102 = scmp.ne.s32.totalorder %s90, %s91
    %p103 = scmp.eq.s32.totalorder %s18, 1
    %p104 = por %p102, %p103
    %p106 = scmp.ne.s32.totalorder %s91, %s105
    %p107 = scmp.eq.s32.totalorder %s18, 0
    %p108 = por %p106, %p107
    %s109 = ssub.s32 %s12, %s19
    %p110 = scmp.eq.s32.totalorder %s109, 0
    %s112 = sadd.s32 %s111, 1
    %s113 = scalar_select %p110, %s111, %s112
    %p116 = pneg %p110
    %p117 = scmp.eq.s32.totalorder %s12, 1
    %p118 = por %p116, %p117
    %p119 = scmp.ne.s32.totalorder %s111, %s114
    %p120 = scmp.eq.s32.totalorder %s12, 0
    %p121 = por %p119, %p120
    %p122 = scmp.ne.s32.totalorder %s111, %s114
    %p123 = scmp.eq.s32.totalorder %s17, 1
    %p124 = por %p122, %p123
    %p125 = scmp.ne.s32.totalorder %s114, %s115
    %p126 = scmp.eq.s32.totalorder %s17, 0
    %p127 = por %p125, %p126
    %p128 = scmp.ne.s32.totalorder %s114, %s115
    %p129 = scmp.eq.s32.totalorder %s18, 1
    %p130 = por %p128, %p129
    %p132 = scmp.ne.s32.totalorder %s115, %s131
    %p133 = scmp.eq.s32.totalorder %s18, 0
    %p134 = por %p132, %p133
    %s135 = ssub.s32 %s12, %s19
    %p136 = scmp.eq.s32.totalorder %s135, 0
    %s138 = sadd.s32 %s137, 1
    %s139 = scalar_select %p136, %s137, %s138
    %p142 = pneg %p136
    %p143 = scmp.eq.s32.totalorder %s12, 1
    %p144 = por %p142, %p143
    %p145 = scmp.ne.s32.totalorder %s137, %s140
    %p146 = scmp.eq.s32.totalorder %s12, 0
    %p147 = por %p145, %p146
    %p148 = scmp.ne.s32.totalorder %s137, %s140
    %p149 = scmp.eq.s32.totalorder %s17, 1
    %p150 = por %p148, %p149
    %p151 = scmp.ne.s32.totalorder %s140, %s141
    %p152 = scmp.eq.s32.totalorder %s17, 0
    %p153 = por %p151, %p152
    %p154 = scmp.ne.s32.totalorder %s140, %s141
    %p155 = scmp.eq.s32.totalorder %s18, 1
    %p156 = por %p154, %p155
    %p158 = scmp.ne.s32.totalorder %s141, %s157
    %p159 = scmp.eq.s32.totalorder %s18, 0
    %p160 = por %p158, %p159
    %p161 = scmp.le.s32.totalorder 1, %s12
    %p162 = scmp.lt.s32.totalorder %s12, 3
    %p163 = pnand %p161, %p162
    %p164 = pneg %p163
    // Predicated region
    $region9: #{basic_block_forward.4} parent=5 // pred_check
      _
    $region10: #{basic_block_forward.4} parent=5 // pred_check_branch
      %166 = sbr.rel (%p163) target = $region12
    $region11: #{basic_block_forward.4} parent=5 // pred_region
      %s167 = ssub.s32 %s12, 1
      // Predicated region
      $region13: #{basic_block_forward.4} parent=11 // pred_check
        %p168 = pneg %p59
      $region14: #{basic_block_forward.4} parent=11 // pred_check_branch
        %170 = sbr.rel (%p168) target = $region16
      $region15: #{basic_block_forward.4} parent=11 // pred_region
        _
      $region16: #{basic_block_forward.4} parent=11 // pred_fallthru
        _
      // Predicated region
      $region17: #{basic_block_forward.4} parent=11 // pred_check
        %p171 = pneg %p80
      $region18: #{basic_block_forward.4} parent=11 // pred_check_branch
        %173 = sbr.rel (%p171) target = $region20
      $region19: #{basic_block_forward.4} parent=11 // pred_region
        _
      $region20: #{basic_block_forward.4} parent=11 // pred_fallthru
        _
      // Predicated region
      $region21: #{basic_block_forward.4} parent=11 // pred_check
        %p174 = pneg %p101
      $region22: #{basic_block_forward.4} parent=11 // pred_check_branch
        %176 = sbr.rel (%p174) target = $region24
      $region23: #{basic_block_forward.4} parent=11 // pred_region
        _
      $region24: #{basic_block_forward.4} parent=11 // pred_fallthru
        _
    $region12: #{basic_block_forward.4} parent=5 // pred_fallthru
      _
    %p177 = scmp.lt.s32.totalorder %s12, 2
    // Predicated region
    $region25: #{basic_block_forward.4} parent=5 // pred_check
      %p178 = pneg %p177
    $region26: #{basic_block_forward.4} parent=5 // pred_check_branch
      %180 = sbr.rel (%p178) target = $region28
    $region27: #{basic_block_forward.4} parent=5 // pred_region
      // Predicated region
      $region29: #{basic_block_forward.4} parent=27 // pred_check
        %p181 = pneg %p32
      $region30: #{basic_block_forward.4} parent=27 // pred_check_branch
        %183 = sbr.rel (%p181) target = $region32
      $region31: #{basic_block_forward.4} parent=27 // pred_region
        %p184 = scmp.lt.s32.totalorder %s12, 1
        %s185 = scalar_select %p184, %s12, 1
        %s186 = smul.addr %s185, 8
        %s187 = smul.addr %s186, 4
        %s188 = scalar_lea.vmem %s0, %s187
      $region32: #{basic_block_forward.4} parent=27 // pred_fallthru
        _
    $region28: #{basic_block_forward.4} parent=5 // pred_fallthru
      _
    %p189 = scmp.le.s32.totalorder 1, %s12
    %p190 = scmp.lt.s32.totalorder %s12, 3
    %p191 = pnand %p189, %p190
    %p192 = pneg %p191
    // Predicated region
    $region33: #{basic_block_forward.4} parent=5 // pred_check
      _
    $region34: #{basic_block_forward.4} parent=5 // pred_check_branch
      %194 = sbr.rel (%p191) target = $region36
    $region35: #{basic_block_forward.4} parent=5 // pred_region
      %s195 = ssub.s32 %s12, 1
      %p196 = scmp.lt.s32.totalorder %s17, 1
      %s197 = scalar_select %p196, %s17, 1
      %s198 = smul.addr %s197, 8
      %s199 = smul.addr %s198, 4
      %s200 = scalar_lea.vmem %s0, %s199
      %p201 = pneg %p38
      %p202 = pneg %p35
      %p203 = pneg %p59
      %p204 = pneg %p56
      %p205 = pneg %p80
      %p206 = pneg %p77
      %p207 = pneg %p101
      %p208 = pneg %p98
      %p209 = pneg %p127
      %p210 = pneg %p124
      %p211 = scmp.lt.s32.totalorder %s17, 1
      %s212 = scalar_select %p211, %s17, 1
      %s213 = smul.addr %s212, 8
      %s214 = smul.addr %s213, 4
      %s215 = scalar_lea.vmem %s4, %s214
      %p216 = pneg %p153
      %p217 = pneg %p150
      %p218 = scmp.lt.s32.totalorder %s17, 1
      %s219 = scalar_select %p218, %s17, 1
      %s220 = smul.addr %s219, 8
      %s221 = scalar_lea.vmem %s5, %s220
      %p222 = scmp.lt.s32.totalorder %s17, 1
      %s223 = scalar_select %p222, %s17, 1
      %s224 = smul.addr %s223, 8
      %s225 = smul.addr %s224, 4
      %s226 = scalar_lea.vmem %s0, %s225
      %p227 = scmp.lt.s32.totalorder %s17, 1
      %s228 = scalar_select %p227, %s17, 1
      %s229 = smul.addr %s228, 8
      %s230 = smul.addr %s229, 4
      %s231 = scalar_lea.vmem %s4, %s230
      %p232 = scmp.lt.s32.totalorder %s17, 1
      %s233 = scalar_select %p232, %s17, 1
      %s234 = smul.addr %s233, 8
      %s235 = scalar_lea.vmem %s5, %s234
      %v237 = vld [vmem:[%s226] sm:$0xf]
      %v238 = vld [vmem:[%s226 + $0x4] sm:$0xf]
      %v239 = vld [vmem:[%s226 + $0x8] sm:$0xf]
      %v240 = vld [vmem:[%s226 + $0xc] sm:$0xf]
      %v241 = vld [vmem:[%s226 + $0x10] sm:$0xf]
      %v242 = vld [vmem:[%s226 + $0x14] sm:$0xf]
      %v243 = vld [vmem:[%s226 + $0x18] sm:$0xf]
      %v244 = vld [vmem:[%s226 + $0x1c] sm:$0xf]
      %v245 = vunpack.c.l.bf16 %v237
      %v246 = vunpack.c.l.bf16 %v238
      %v247 = vunpack.c.l.bf16 %v239
      %v248 = vunpack.c.l.bf16 %v240
      %v249 = vunpack.c.l.bf16 %v241
      %v250 = vunpack.c.l.bf16 %v242
      %v251 = vunpack.c.l.bf16 %v243
      %v252 = vunpack.c.l.bf16 %v244
      %v253 = vld [vmem:[%s2] sm:$0x1]
      %v255 = vlaneseq
      %v256 = vshrl.u32 %v255, 7
      %v257 = vsub.s32 0, %v256
      %v258 = vrot.slane %v253, %v257
      %v260 = vmul.f32 %v245, %v258
      %v261 = vmul.f32 %v246, %v258
      %v262 = vmul.f32 %v247, %v258
      %v263 = vmul.f32 %v248, %v258
      %v264 = vmul.f32 %v249, %v258
      %v265 = vmul.f32 %v250, %v258
      %v266 = vmul.f32 %v251, %v258
      %v267 = vmul.f32 %v252, %v258
      %v268 = vld [vmem:[%s3] sm:$0x1]
      %v270 = vlaneseq
      %v271 = vshrl.u32 %v270, 7
      %v272 = vsub.s32 0, %v271
      %v273 = vrot.slane %v268, %v272
      %v275 = vadd.f32 %v260, %v273
      %v276 = vadd.f32 %v261, %v273
      %v277 = vadd.f32 %v262, %v273
      %v278 = vadd.f32 %v263, %v273
      %v279 = vadd.f32 %v264, %v273
      %v280 = vadd.f32 %v265, %v273
      %v281 = vadd.f32 %v266, %v273
      %v282 = vadd.f32 %v267, %v273
      %v283 = vmax.f32 %v275, 0.0
      %v284 = vmax.f32 %v276, 0.0
      %v285 = vmax.f32 %v277, 0.0
      %v286 = vmax.f32 %v278, 0.0
      %v287 = vmax.f32 %v279, 0.0
      %v288 = vmax.f32 %v280, 0.0
      %v289 = vmax.f32 %v281, 0.0
      %v290 = vmax.f32 %v282, 0.0
      %v300 = vrot.slane 0.0, 7
      %v301 = vrot.slane %v283, 7
      %v302 = vrot.slane %v284, 7
      %v303 = vrot.slane %v285, 7
      %v304 = vrot.slane %v286, 7
      %v305 = vrot.slane %v287, 7
      %v306 = vrot.slane %v288, 7
      %v307 = vrot.slane %v289, 7
      %v308 = vrot.slane %v290, 7
      %vm318 = vcmask 1040384
      %v319 = vsel %vm318, 0.0, %v300
      %v320 = vsel %vm318, 0.0, %v301
      %v321 = vsel %vm318, 0.0, %v302
      %v322 = vsel %vm318, 0.0, %v303
      %v323 = vsel %vm318, 0.0, %v304
      %v324 = vsel %vm318, 0.0, %v305
      %v325 = vsel %vm318, 0.0, %v306
      %v326 = vsel %vm318, 0.0, %v307
      %v327 = vsel %vm318, 0.0, %v308
      %v328 = vsel %vm318, %v300, 0.0
      %v329 = vsel %vm318, %v301, 0.0
      %v330 = vsel %vm318, %v302, 0.0
      %v331 = vsel %vm318, %v303, 0.0
      %v332 = vsel %vm318, %v304, 0.0
      %v333 = vsel %vm318, %v305, 0.0
      %v334 = vsel %vm318, %v306, 0.0
      %v335 = vsel %vm318, %v307, 0.0
      %v336 = vsel %vm318, %v308, 0.0
      %v337 = vpack.c.bf16 %v328, %v319
      %v338 = vpack.c.bf16 %v329, %v320
      %v339 = vpack.c.bf16 %v330, %v321
      %v340 = vpack.c.bf16 %v331, %v322
      %v341 = vpack.c.bf16 %v332, %v323
      %v342 = vpack.c.bf16 %v333, %v324
      %v343 = vpack.c.bf16 %v334, %v325
      %v344 = vpack.c.bf16 %v335, %v326
      %v345 = vpack.c.bf16 %v336, %v327
      %v346 = vld [vmem:[%s1] sm:$0xf]
      %v347 = vld [vmem:[%s1 + $0x4] sm:$0xf]
      %v348 = vld [vmem:[%s1 + $0x8] sm:$0xf]
      %v349 = vld [vmem:[%s1 + $0xc] sm:$0xf]
      %v350 = vld [vmem:[%s1 + $0x10] sm:$0xf]
      %v351 = vld [vmem:[%s1 + $0x14] sm:$0xf]
      %v352 = vld [vmem:[%s1 + $0x18] sm:$0xf]
      %v353 = vld [vmem:[%s1 + $0x1c] sm:$0xf]
      %v354 = vld [vmem:[%s1 + $0x20] sm:$0xf]
      %v355 = vld [vmem:[%s1 + $0x24] sm:$0xf]
      %v356 = vld [vmem:[%s1 + $0x28] sm:$0xf]
      %v357 = vld [vmem:[%s1 + $0x2c] sm:$0xf]
      %v358 = vld [vmem:[%s1 + $0x30] sm:$0xf]
      %v359 = vld [vmem:[%s1 + $0x34] sm:$0xf]
      %v360 = vld [vmem:[%s1 + $0x38] sm:$0xf]
      %v361 = vld [vmem:[%s1 + $0x3c] sm:$0xf]
      %v370 = vunpack.c.l.b16 %v337
      %v371 = vunpack.c.h.b16 %v337
      %v372 = vunpack.c.l.b16 %v338
      %v373 = vunpack.c.h.b16 %v338
      %v374 = vunpack.c.l.b16 %v339
      %v375 = vunpack.c.h.b16 %v339
      %v376 = vunpack.c.l.b16 %v340
      %v377 = vunpack.c.h.b16 %v340
      %v378 = vunpack.c.l.b16 %v341
      %v379 = vunpack.c.h.b16 %v341
      %v380 = vunpack.c.l.b16 %v342
      %v381 = vunpack.c.h.b16 %v342
      %v382 = vunpack.c.l.b16 %v343
      %v383 = vunpack.c.h.b16 %v343
      %v384 = vunpack.c.l.b16 %v344
      %v385 = vunpack.c.h.b16 %v344
      %v386 = vpack.c.b16 %v370, %v370
      %v387 = vpack.c.b16 %v371, %v371
      %v388 = vpack.c.b16 %v372, %v372
      %v389 = vpack.c.b16 %v373, %v373
      %v390 = vpack.c.b16 %v374, %v374
      %v391 = vpack.c.b16 %v375, %v375
      %v392 = vpack.c.b16 %v376, %v376
      %v393 = vpack.c.b16 %v377, %v377
      %v394 = vpack.c.b16 %v378, %v378
      %v395 = vpack.c.b16 %v379, %v379
      %v396 = vpack.c.b16 %v380, %v380
      %v397 = vpack.c.b16 %v381, %v381
      %v398 = vpack.c.b16 %v382, %v382
      %v399 = vpack.c.b16 %v383, %v383
      %v400 = vpack.c.b16 %v384, %v384
      %v401 = vpack.c.b16 %v385, %v385
      %vm402 = vsmask.f32 3328
      %vm403 = vsmask.f32 7440
      %vm404 = vmor %vm402, %vm403
      %v406 = vshrl.u32 %v386, 16
      %v408 = vrot.slane %v406, 4
      %v409 = vshll.u32 %v386, 16
      %v411 = vrot.slane %v409, 5
      %v412 = vor.u32 %v408, %v411
      %v413 = vrot.slane %v412, 4
      %v415 = vshll.u32 %v387, 16
      %v417 = vrot.slane %v415, 5
      %v418 = vsel %vm404, %v413, %v417
      %v420 = vshrl.u32 %v388, 16
      %v422 = vrot.slane %v420, 4
      %v423 = vshll.u32 %v388, 16
      %v425 = vrot.slane %v423, 5
      %v426 = vor.u32 %v422, %v425
      %v427 = vrot.slane %v426, 4
      %v429 = vshll.u32 %v389, 16
      %v431 = vrot.slane %v429, 5
      %v432 = vsel %vm404, %v427, %v431
      %v434 = vshrl.u32 %v390, 16
      %v436 = vrot.slane %v434, 4
      %v437 = vshll.u32 %v390, 16
      %v439 = vrot.slane %v437, 5
      %v440 = vor.u32 %v436, %v439
      %v441 = vrot.slane %v440, 4
      %v443 = vshll.u32 %v391, 16
      %v445 = vrot.slane %v443, 5
      %v446 = vsel %vm404, %v441, %v445
      %v448 = vshrl.u32 %v392, 16
      %v450 = vrot.slane %v448, 4
      %v451 = vshll.u32 %v392, 16
      %v453 = vrot.slane %v451, 5
      %v454 = vor.u32 %v450, %v453
      %v455 = vrot.slane %v454, 4
      %v457 = vshll.u32 %v393, 16
      %v459 = vrot.slane %v457, 5
      %v460 = vsel %vm404, %v455, %v459
      %v462 = vshrl.u32 %v394, 16
      %v464 = vrot.slane %v462, 4
      %v465 = vshll.u32 %v394, 16
      %v467 = vrot.slane %v465, 5
      %v468 = vor.u32 %v464, %v467
      %v469 = vrot.slane %v468, 4
      %v471 = vshll.u32 %v395, 16
      %v473 = vrot.slane %v471, 5
      %v474 = vsel %vm404, %v469, %v473
      %v476 = vshrl.u32 %v396, 16
      %v478 = vrot.slane %v476, 4
      %v479 = vshll.u32 %v396, 16
      %v481 = vrot.slane %v479, 5
      %v482 = vor.u32 %v478, %v481
      %v483 = vrot.slane %v482, 4
      %v485 = vshll.u32 %v397, 16
      %v487 = vrot.slane %v485, 5
      %v488 = vsel %vm404, %v483, %v487
      %v490 = vshrl.u32 %v398, 16
      %v492 = vrot.slane %v490, 4
      %v493 = vshll.u32 %v398, 16
      %v495 = vrot.slane %v493, 5
      %v496 = vor.u32 %v492, %v495
      %v497 = vrot.slane %v496, 4
      %v499 = vshll.u32 %v399, 16
      %v501 = vrot.slane %v499, 5
      %v502 = vsel %vm404, %v497, %v501
      %v504 = vshrl.u32 %v400, 16
      %v506 = vrot.slane %v504, 4
      %v507 = vshll.u32 %v400, 16
      %v509 = vrot.slane %v507, 5
      %v510 = vor.u32 %v506, %v509
      %v511 = vrot.slane %v510, 4
      %v513 = vshll.u32 %v401, 16
      %v515 = vrot.slane %v513, 5
      %v516 = vsel %vm404, %v511, %v515
      %v517 = vld [vmem:[%s1 + $0x40] sm:$0xf]
      %v518 = vld [vmem:[%s1 + $0x44] sm:$0xf]
      %v519 = vld [vmem:[%s1 + $0x48] sm:$0xf]
      %v520 = vld [vmem:[%s1 + $0x4c] sm:$0xf]
      %v521 = vld [vmem:[%s1 + $0x50] sm:$0xf]
      %v522 = vld [vmem:[%s1 + $0x54] sm:$0xf]
      %v523 = vld [vmem:[%s1 + $0x58] sm:$0xf]
      %v524 = vld [vmem:[%s1 + $0x5c] sm:$0xf]
      %v525 = vld [vmem:[%s1 + $0x60] sm:$0xf]
      %v526 = vld [vmem:[%s1 + $0x64] sm:$0xf]
      %v527 = vld [vmem:[%s1 + $0x68] sm:$0xf]
      %v528 = vld [vmem:[%s1 + $0x6c] sm:$0xf]
      %v529 = vld [vmem:[%s1 + $0x70] sm:$0xf]
      %v530 = vld [vmem:[%s1 + $0x74] sm:$0xf]
      %v531 = vld [vmem:[%s1 + $0x78] sm:$0xf]
      %v532 = vld [vmem:[%s1 + $0x7c] sm:$0xf]
      %v533 = vunpack.c.l.b16 %v418
      %v534 = vunpack.c.l.b16 %v432
      %v535 = vunpack.c.l.b16 %v446
      %v536 = vunpack.c.l.b16 %v460
      %v537 = vunpack.c.l.b16 %v474
      %v538 = vunpack.c.l.b16 %v488
      %v539 = vunpack.c.l.b16 %v502
      %v540 = vunpack.c.l.b16 %v516
      %v541 = vpack.c.b16 %v534, %v533
      %v542 = vpack.c.b16 %v536, %v535
      %v543 = vpack.c.b16 %v538, %v537
      %v544 = vpack.c.b16 %v540, %v539
      %v565 = vunpack.c.l.b16 %v517
      %v566 = vunpack.c.l.b16 %v518
      %v567 = vunpack.c.l.b16 %v519
      %v568 = vunpack.c.l.b16 %v520
      %v569 = vunpack.c.l.b16 %v521
      %v570 = vunpack.c.l.b16 %v522
      %v571 = vunpack.c.l.b16 %v523
      %v572 = vunpack.c.l.b16 %v524
      %v573 = vunpack.c.l.b16 %v525
      %v574 = vunpack.c.l.b16 %v526
      %v575 = vunpack.c.l.b16 %v527
      %v576 = vunpack.c.l.b16 %v528
      %v577 = vunpack.c.l.b16 %v529
      %v578 = vunpack.c.l.b16 %v530
      %v579 = vunpack.c.l.b16 %v531
      %v580 = vunpack.c.l.b16 %v532
      %v581 = vpack.c.b16 %v566, %v565
      %v582 = vpack.c.b16 %v568, %v567
      %v583 = vpack.c.b16 %v570, %v569
      %v584 = vpack.c.b16 %v572, %v571
      %v585 = vpack.c.b16 %v574, %v573
      %v586 = vpack.c.b16 %v576, %v575
      %v587 = vpack.c.b16 %v578, %v577
      %v588 = vpack.c.b16 %v580, %v579
      %597 = vmatprep.subr.bf16.mxu0 0
      %598 = vmatpush1.bf16.msra.mxu0 %v581
      %599 = vmatprep.subr.bf16.mxu0 0
      %600 = vmatpush1.bf16.msra.mxu0 %v582
      %601 = vmatprep.subr.bf16.mxu0 0
      %602 = vmatpush1.bf16.msra.mxu0 %v583
      %603 = vmatprep.subr.bf16.mxu0 0
      %604 = vmatpush1.bf16.msra.mxu0 %v584
      %605 = vmatprep.subr.bf16.mxu0 0
      %606 = vmatpush1.bf16.msra.mxu0 %v585
      %607 = vmatprep.subr.bf16.mxu0 0
      %608 = vmatpush1.bf16.msra.mxu0 %v586
      %609 = vmatprep.subr.bf16.mxu0 0
      %610 = vmatpush1.bf16.msra.mxu0 %v587
      %611 = vmatprep.subr.bf16.mxu0 0
      %612 = vmatpush1.bf16.msra.mxu0 %v588
      %613 = vmatprep.subr.bf16.mxu0 0
      %614 = vmatpush1.bf16.msra.mxu0 0
      %615 = vmatprep.subr.bf16.mxu0 0
      %616 = vmatpush1.bf16.msra.mxu0 0
      %617 = vmatprep.subr.bf16.mxu0 0
      %618 = vmatpush1.bf16.msra.mxu0 0
      %619 = vmatprep.subr.bf16.mxu0 0
      %620 = vmatpush1.bf16.msra.mxu0 0
      %621 = vmatprep.subr.bf16.mxu0 0
      %622 = vmatpush1.bf16.msra.mxu0 0
      %623 = vmatprep.subr.bf16.mxu0 0
      %624 = vmatpush1.bf16.msra.mxu0 0
      %625 = vmatprep.subr.bf16.mxu0 0
      %626 = vmatpush1.bf16.msra.mxu0 0
      %627 = vmatprep.subr.bf16.mxu0 0
      %628 = vmatpush1.bf16.msra.mxu0 0
      %629 = vmatprep.mubr.bf16.mxu0 0
      %630 = vmatmul.mubr.bf16.gmra.mrb[0].mxu0 %v541
      %v631 = vpop.f32.mrb[0].mxu0
      %v632 = vadd.f32 0.0, %v631
      %v633 = vpop.f32.mrb[0].mxu0
      %v634 = vpop.f32.mrb[0].mxu0
      %v635 = vadd.f32 0.0, %v634
      %v636 = vpop.f32.mrb[0].mxu0
      %637 = vmatprep.mubr.bf16.mxu0 0
      %638 = vmatmul.mubr.bf16.gmra.mrb[0].mxu0 %v542
      %v639 = vpop.f32.mrb[0].mxu0
      %v640 = vadd.f32 0.0, %v639
      %v641 = vpop.f32.mrb[0].mxu0
      %v642 = vpop.f32.mrb[0].mxu0
      %v643 = vadd.f32 0.0, %v642
      %v644 = vpop.f32.mrb[0].mxu0
      %645 = vmatprep.mubr.bf16.mxu0 0
      %646 = vmatmul.mubr.bf16.gmra.mrb[0].mxu0 %v543
      %v647 = vpop.f32.mrb[0].mxu0
      %v648 = vadd.f32 0.0, %v647
      %v649 = vpop.f32.mrb[0].mxu0
      %v650 = vpop.f32.mrb[0].mxu0
      %v651 = vadd.f32 0.0, %v650
      %v652 = vpop.f32.mrb[0].mxu0
      %653 = vmatprep.mubr.bf16.mxu0 0
      %654 = vmatmul.mubr.bf16.gmra.mrb[0].mxu0 %v544
      %v655 = vpop.f32.mrb[0].mxu0
      %v656 = vadd.f32 0.0, %v655
      %v657 = vpop.f32.mrb[0].mxu0
      %v658 = vpop.f32.mrb[0].mxu0
      %v659 = vadd.f32 0.0, %v658
      %v660 = vpop.f32.mrb[0].mxu0
      %661 = vdwg.mxu0
      %v662 = vpack.c.b16 %v372, %v370
      %v663 = vpack.c.b16 %v376, %v374
      %v664 = vpack.c.b16 %v380, %v378
      %v665 = vpack.c.b16 %v384, %v382
      %v686 = vunpack.c.l.b16 %v346
      %v687 = vunpack.c.l.b16 %v347
      %v688 = vunpack.c.l.b16 %v348
      %v689 = vunpack.c.l.b16 %v349
      %v690 = vunpack.c.l.b16 %v350
      %v691 = vunpack.c.l.b16 %v351
      %v692 = vunpack.c.l.b16 %v352
      %v693 = vunpack.c.l.b16 %v353
      %v694 = vunpack.c.l.b16 %v354
      %v695 = vunpack.c.l.b16 %v355
      %v696 = vunpack.c.l.b16 %v356
      %v697 = vunpack.c.l.b16 %v357
      %v698 = vunpack.c.l.b16 %v358
      %v699 = vunpack.c.l.b16 %v359
      %v700 = vunpack.c.l.b16 %v360
      %v701 = vunpack.c.l.b16 %v361
      %v702 = vpack.c.b16 %v687, %v686
      %v703 = vpack.c.b16 %v689, %v688
      %v704 = vpack.c.b16 %v691, %v690
      %v705 = vpack.c.b16 %v693, %v692
      %v706 = vpack.c.b16 %v695, %v694
      %v707 = vpack.c.b16 %v697, %v696
      %v708 = vpack.c.b16 %v699, %v698
      %v709 = vpack.c.b16 %v701, %v700
      %718 = vmatprep.subr.bf16.mxu0 0
      %719 = vmatpush1.bf16.msra.mxu0 %v702
      %720 = vmatprep.subr.bf16.mxu0 0
      %721 = vmatpush1.bf16.msra.mxu0 %v703
      %722 = vmatprep.subr.bf16.mxu0 0
      %723 = vmatpush1.bf16.msra.mxu0 %v704
      %724 = vmatprep.subr.bf16.mxu0 0
      %725 = vmatpush1.bf16.msra.mxu0 %v705
      %726 = vmatprep.subr.bf16.mxu0 0
      %727 = vmatpush1.bf16.msra.mxu0 %v706
      %728 = vmatprep.subr.bf16.mxu0 0
      %729 = vmatpush1.bf16.msra.mxu0 %v707
      %730 = vmatprep.subr.bf16.mxu0 0
      %731 = vmatpush1.bf16.msra.mxu0 %v708
      %732 = vmatprep.subr.bf16.mxu0 0
      %733 = vmatpush1.bf16.msra.mxu0 %v709
      %734 = vmatprep.subr.bf16.mxu0 0
      %735 = vmatpush1.bf16.msra.mxu0 0
      %736 = vmatprep.subr.bf16.mxu0 0
      %737 = vmatpush1.bf16.msra.mxu0 0
      %738 = vmatprep.subr.bf16.mxu0 0
      %739 = vmatpush1.bf16.msra.mxu0 0
      %740 = vmatprep.subr.bf16.mxu0 0
      %741 = vmatpush1.bf16.msra.mxu0 0
      %742 = vmatprep.subr.bf16.mxu0 0
      %743 = vmatpush1.bf16.msra.mxu0 0
      %744 = vmatprep.subr.bf16.mxu0 0
      %745 = vmatpush1.bf16.msra.mxu0 0
      %746 = vmatprep.subr.bf16.mxu0 0
      %747 = vmatpush1.bf16.msra.mxu0 0
      %748 = vmatprep.subr.bf16.mxu0 0
      %749 = vmatpush1.bf16.msra.mxu0 0
      %750 = vmatprep.mubr.bf16.mxu0 0
      %751 = vmatmul.mubr.bf16.gmra.mrb[0].mxu0 %v662
      %v752 = vpop.f32.mrb[0].mxu0
      %v753 = vadd.f32 %v632, %v752
      %v754 = vpop.f32.mrb[0].mxu0
      %v755 = vpop.f32.mrb[0].mxu0
      %v756 = vadd.f32 %v635, %v755
      %v757 = vpop.f32.mrb[0].mxu0
      %758 = vmatprep.mubr.bf16.mxu0 0
      %759 = vmatmul.mubr.bf16.gmra.mrb[0].mxu0 %v663
      %v760 = vpop.f32.mrb[0].mxu0
      %v761 = vadd.f32 %v640, %v760
      %v762 = vpop.f32.mrb[0].mxu0
      %v763 = vpop.f32.mrb[0].mxu0
      %v764 = vadd.f32 %v643, %v763
      %v765 = vpop.f32.mrb[0].mxu0
      %766 = vmatprep.mubr.bf16.mxu0 0
      %767 = vmatmul.mubr.bf16.gmra.mrb[0].mxu0 %v664
      %v768 = vpop.f32.mrb[0].mxu0
      %v769 = vadd.f32 %v648, %v768
      %v770 = vpop.f32.mrb[0].mxu0
      %v771 = vpop.f32.mrb[0].mxu0
      %v772 = vadd.f32 %v651, %v771
      %v773 = vpop.f32.mrb[0].mxu0
      %774 = vmatprep.mubr.bf16.mxu0 0
      %775 = vmatmul.mubr.bf16.gmra.mrb[0].mxu0 %v665
      %v776 = vpop.f32.mrb[0].mxu0
      %v777 = vadd.f32 %v656, %v776
      %v778 = vpop.f32.mrb[0].mxu0
      %v779 = vpop.f32.mrb[0].mxu0
      %v780 = vadd.f32 %v659, %v779
      %v781 = vpop.f32.mrb[0].mxu0
      %782 = vdwg.mxu0
      %vm783 = vcmask 1042432
      %vm784 = vcmask 1046532
      %vm785 = vmor %vm783, %vm784
      %v786 = vrot.slane %v386, 5
      %v787 = vrot.slane %v786, 4
      %v788 = vrot.slane %v387, 5
      %v789 = vsel %vm785, %v787, %v788
      %v790 = vrot.slane %v388, 5
      %v791 = vrot.slane %v790, 4
      %v792 = vrot.slane %v389, 5
      %v793 = vsel %vm785, %v791, %v792
      %v794 = vrot.slane %v390, 5
      %v795 = vrot.slane %v794, 4
      %v796 = vrot.slane %v391, 5
      %v797 = vsel %vm785, %v795, %v796
      %v798 = vrot.slane %v392, 5
      %v799 = vrot.slane %v798, 4
      %v800 = vrot.slane %v393, 5
      %v801 = vsel %vm785, %v799, %v800
      %v802 = vrot.slane %v394, 5
      %v803 = vrot.slane %v802, 4
      %v804 = vrot.slane %v395, 5
      %v805 = vsel %vm785, %v803, %v804
      %v806 = vrot.slane %v396, 5
      %v807 = vrot.slane %v806, 4
      %v808 = vrot.slane %v397, 5
      %v809 = vsel %vm785, %v807, %v808
      %v810 = vrot.slane %v398, 5
      %v811 = vrot.slane %v810, 4
      %v812 = vrot.slane %v399, 5
      %v813 = vsel %vm785, %v811, %v812
      %v814 = vrot.slane %v400, 5
      %v815 = vrot.slane %v814, 4
      %v816 = vrot.slane %v401, 5
      %v817 = vsel %vm785, %v815, %v816
      %v818 = vld [vmem:[%s1 + $0x80] sm:$0xf]
      %v819 = vld [vmem:[%s1 + $0x84] sm:$0xf]
      %v820 = vld [vmem:[%s1 + $0x88] sm:$0xf]
      %v821 = vld [vmem:[%s1 + $0x8c] sm:$0xf]
      %v822 = vld [vmem:[%s1 + $0x90] sm:$0xf]
      %v823 = vld [vmem:[%s1 + $0x94] sm:$0xf]
      %v824 = vld [vmem:[%s1 + $0x98] sm:$0xf]
      %v825 = vld [vmem:[%s1 + $0x9c] sm:$0xf]
      %v826 = vld [vmem:[%s1 + $0xa0] sm:$0xf]
      %v827 = vld [vmem:[%s1 + $0xa4] sm:$0xf]
      %v828 = vld [vmem:[%s1 + $0xa8] sm:$0xf]
      %v829 = vld [vmem:[%s1 + $0xac] sm:$0xf]
      %v830 = vld [vmem:[%s1 + $0xb0] sm:$0xf]
      %v831 = vld [vmem:[%s1 + $0xb4] sm:$0xf]
      %v832 = vld [vmem:[%s1 + $0xb8] sm:$0xf]
      %v833 = vld [vmem:[%s1 + $0xbc] sm:$0xf]
      %v834 = vunpack.c.l.b16 %v789
      %v835 = vunpack.c.l.b16 %v793
      %v836 = vunpack.c.l.b16 %v797
      %v837 = vunpack.c.l.b16 %v801
      %v838 = vunpack.c.l.b16 %v805
      %v839 = vunpack.c.l.b16 %v809
      %v840 = vunpack.c.l.b16 %v813
      %v841 = vunpack.c.l.b16 %v817
      %v842 = vpack.c.b16 %v835, %v834
      %v843 = vpack.c.b16 %v837, %v836
      %v844 = vpack.c.b16 %v839, %v838
      %v845 = vpack.c.b16 %v841, %v840
      %v866 = vunpack.c.l.b16 %v818
      %v867 = vunpack.c.l.b16 %v819
      %v868 = vunpack.c.l.b16 %v820
      %v869 = vunpack.c.l.b16 %v821
      %v870 = vunpack.c.l.b16 %v822
      %v871 = vunpack.c.l.b16 %v823
      %v872 = vunpack.c.l.b16 %v824
      %v873 = vunpack.c.l.b16 %v825
      %v874 = vunpack.c.l.b16 %v826
      %v875 = vunpack.c.l.b16 %v827
      %v876 = vunpack.c.l.b16 %v828
      %v877 = vunpack.c.l.b16 %v829
      %v878 = vunpack.c.l.b16 %v830
      %v879 = vunpack.c.l.b16 %v831
      %v880 = vunpack.c.l.b16 %v832
      %v881 = vunpack.c.l.b16 %v833
      %v882 = vpack.c.b16 %v867, %v866
      %v883 = vpack.c.b16 %v869, %v868
      %v884 = vpack.c.b16 %v871, %v870
      %v885 = vpack.c.b16 %v873, %v872
      %v886 = vpack.c.b16 %v875, %v874
      %v887 = vpack.c.b16 %v877, %v876
      %v888 = vpack.c.b16 %v879, %v878
      %v889 = vpack.c.b16 %v881, %v880
      %898 = vmatprep.subr.bf16.mxu0 0
      %899 = vmatpush1.bf16.msra.mxu0 %v882
      %900 = vmatprep.subr.bf16.mxu0 0
      %901 = vmatpush1.bf16.msra.mxu0 %v883
      %902 = vmatprep.subr.bf16.mxu0 0
      %903 = vmatpush1.bf16.msra.mxu0 %v884
      %904 = vmatprep.subr.bf16.mxu0 0
      %905 = vmatpush1.bf16.msra.mxu0 %v885
      %906 = vmatprep.subr.bf16.mxu0 0
      %907 = vmatpush1.bf16.msra.mxu0 %v886
      %908 = vmatprep.subr.bf16.mxu0 0
      %909 = vmatpush1.bf16.msra.mxu0 %v887
      %910 = vmatprep.subr.bf16.mxu0 0
      %911 = vmatpush1.bf16.msra.mxu0 %v888
      %912 = vmatprep.subr.bf16.mxu0 0
      %913 = vmatpush1.bf16.msra.mxu0 %v889
      %914 = vmatprep.subr.bf16.mxu0 0
      %915 = vmatpush1.bf16.msra.mxu0 0
      %916 = vmatprep.subr.bf16.mxu0 0
      %917 = vmatpush1.bf16.msra.mxu0 0
      %918 = vmatprep.subr.bf16.mxu0 0
      %919 = vmatpush1.bf16.msra.mxu0 0
      %920 = vmatprep.subr.bf16.mxu0 0
      %921 = vmatpush1.bf16.msra.mxu0 0
      %922 = vmatprep.subr.bf16.mxu0 0
      %923 = vmatpush1.bf16.msra.mxu0 0
      %924 = vmatprep.subr.bf16.mxu0 0
      %925 = vmatpush1.bf16.msra.mxu0 0
      %926 = vmatprep.subr.bf16.mxu0 0
      %927 = vmatpush1.bf16.msra.mxu0 0
      %928 = vmatprep.subr.bf16.mxu0 0
      %929 = vmatpush1.bf16.msra.mxu0 0
      %930 = vmatprep.mubr.bf16.mxu0 0
      %931 = vmatmul.mubr.bf16.gmra.mrb[0].mxu0 %v842
      %v932 = vpop.f32.mrb[0].mxu0
      %v933 = vadd.f32 0.0, %v932
      %v934 = vpop.f32.mrb[0].mxu0
      %v935 = vpop.f32.mrb[0].mxu0
      %v936 = vadd.f32 0.0, %v935
      %v937 = vpop.f32.mrb[0].mxu0
      %938 = vmatprep.mubr.bf16.mxu0 0
      %939 = vmatmul.mubr.bf16.gmra.mrb[0].mxu0 %v843
      %v940 = vpop.f32.mrb[0].mxu0
      %v941 = vadd.f32 0.0, %v940
      %v942 = vpop.f32.mrb[0].mxu0
      %v943 = vpop.f32.mrb[0].mxu0
      %v944 = vadd.f32 0.0, %v943
      %v945 = vpop.f32.mrb[0].mxu0
      %946 = vmatprep.mubr.bf16.mxu0 0
      %947 = vmatmul.mubr.bf16.gmra.mrb[0].mxu0 %v844
      %v948 = vpop.f32.mrb[0].mxu0
      %v949 = vadd.f32 0.0, %v948
      %v950 = vpop.f32.mrb[0].mxu0
      %v951 = vpop.f32.mrb[0].mxu0
      %v952 = vadd.f32 0.0, %v951
      %v953 = vpop.f32.mrb[0].mxu0
      %954 = vmatprep.mubr.bf16.mxu0 0
      %955 = vmatmul.mubr.bf16.gmra.mrb[0].mxu0 %v845
      %v956 = vpop.f32.mrb[0].mxu0
      %v957 = vadd.f32 0.0, %v956
      %v958 = vpop.f32.mrb[0].mxu0
      %v959 = vpop.f32.mrb[0].mxu0
      %v960 = vadd.f32 0.0, %v959
      %v961 = vpop.f32.mrb[0].mxu0
      %962 = vdwg.mxu0
      %v963 = vadd.f32 %v753, %v933
      %v964 = vadd.f32 %v756, %v936
      %v965 = vadd.f32 %v761, %v941
      %v966 = vadd.f32 %v764, %v944
      %v967 = vadd.f32 %v769, %v949
      %v968 = vadd.f32 %v772, %v952
      %v969 = vadd.f32 %v777, %v957
      %v970 = vadd.f32 %v780, %v960
      %v971 = vld [vmem:[%s1 + $0xc0] sm:$0xf]
      %v972 = vld [vmem:[%s1 + $0xc4] sm:$0xf]
      %v973 = vld [vmem:[%s1 + $0xc8] sm:$0xf]
      %v974 = vld [vmem:[%s1 + $0xcc] sm:$0xf]
      %v975 = vld [vmem:[%s1 + $0xd0] sm:$0xf]
      %v976 = vld [vmem:[%s1 + $0xd4] sm:$0xf]
      %v977 = vld [vmem:[%s1 + $0xd8] sm:$0xf]
      %v978 = vld [vmem:[%s1 + $0xdc] sm:$0xf]
      %v979 = vld [vmem:[%s1 + $0xe0] sm:$0xf]
      %v980 = vld [vmem:[%s1 + $0xe4] sm:$0xf]
      %v981 = vld [vmem:[%s1 + $0xe8] sm:$0xf]
      %v982 = vld [vmem:[%s1 + $0xec] sm:$0xf]
      %v983 = vld [vmem:[%s1 + $0xf0] sm:$0xf]
      %v984 = vld [vmem:[%s1 + $0xf4] sm:$0xf]
      %v985 = vld [vmem:[%s1 + $0xf8] sm:$0xf]
      %v986 = vld [vmem:[%s1 + $0xfc] sm:$0xf]
      %v988 = vunpack.c.l.b16 %v345
      %v989 = vpack.c.b16 %v374, %v372
      %v990 = vpack.c.b16 %v378, %v376
      %v991 = vpack.c.b16 %v382, %v380
      %v992 = vpack.c.b16 %v988, %v384
      %v1013 = vunpack.c.l.b16 %v971
      %v1014 = vunpack.c.l.b16 %v972
      %v1015 = vunpack.c.l.b16 %v973
      %v1016 = vunpack.c.l.b16 %v974
      %v1017 = vunpack.c.l.b16 %v975
      %v1018 = vunpack.c.l.b16 %v976
      %v1019 = vunpack.c.l.b16 %v977
      %v1020 = vunpack.c.l.b16 %v978
      %v1021 = vunpack.c.l.b16 %v979
      %v1022 = vunpack.c.l.b16 %v980
      %v1023 = vunpack.c.l.b16 %v981
      %v1024 = vunpack.c.l.b16 %v982
      %v1025 = vunpack.c.l.b16 %v983
      %v1026 = vunpack.c.l.b16 %v984
      %v1027 = vunpack.c.l.b16 %v985
      %v1028 = vunpack.c.l.b16 %v986
      %v1029 = vpack.c.b16 %v1014, %v1013
      %v1030 = vpack.c.b16 %v1016, %v1015
      %v1031 = vpack.c.b16 %v1018, %v1017
      %v1032 = vpack.c.b16 %v1020, %v1019
      %v1033 = vpack.c.b16 %v1022, %v1021
      %v1034 = vpack.c.b16 %v1024, %v1023
      %v1035 = vpack.c.b16 %v1026, %v1025
      %v1036 = vpack.c.b16 %v1028, %v1027
      %1045 = vmatprep.subr.bf16.mxu0 0
      %1046 = vmatpush1.bf16.msra.mxu0 %v1029
      %1047 = vmatprep.subr.bf16.mxu0 0
      %1048 = vmatpush1.bf16.msra.mxu0 %v1030
      %1049 = vmatprep.subr.bf16.mxu0 0
      %1050 = vmatpush1.bf16.msra.mxu0 %v1031
      %1051 = vmatprep.subr.bf16.mxu0 0
      %1052 = vmatpush1.bf16.msra.mxu0 %v1032
      %1053 = vmatprep.subr.bf16.mxu0 0
      %1054 = vmatpush1.bf16.msra.mxu0 %v1033
      %1055 = vmatprep.subr.bf16.mxu0 0
      %1056 = vmatpush1.bf16.msra.mxu0 %v1034
      %1057 = vmatprep.subr.bf16.mxu0 0
      %1058 = vmatpush1.bf16.msra.mxu0 %v1035
      %1059 = vmatprep.subr.bf16.mxu0 0
      %1060 = vmatpush1.bf16.msra.mxu0 %v1036
      %1061 = vmatprep.subr.bf16.mxu0 0
      %1062 = vmatpush1.bf16.msra.mxu0 0
      %1063 = vmatprep.subr.bf16.mxu0 0
      %1064 = vmatpush1.bf16.msra.mxu0 0
      %1065 = vmatprep.subr.bf16.mxu0 0
      %1066 = vmatpush1.bf16.msra.mxu0 0
      %1067 = vmatprep.subr.bf16.mxu0 0
      %1068 = vmatpush1.bf16.msra.mxu0 0
      %1069 = vmatprep.subr.bf16.mxu0 0
      %1070 = vmatpush1.bf16.msra.mxu0 0
      %1071 = vmatprep.subr.bf16.mxu0 0
      %1072 = vmatpush1.bf16.msra.mxu0 0
      %1073 = vmatprep.subr.bf16.mxu0 0
      %1074 = vmatpush1.bf16.msra.mxu0 0
      %1075 = vmatprep.subr.bf16.mxu0 0
      %1076 = vmatpush1.bf16.msra.mxu0 0
      %1077 = vmatprep.mubr.bf16.mxu0 0
      %1078 = vmatmul.mubr.bf16.gmra.mrb[0].mxu0 %v989
      %v1079 = vpop.f32.mrb[0].mxu0
      %v1080 = vadd.f32 0.0, %v1079
      %v1081 = vpop.f32.mrb[0].mxu0
      %v1082 = vpop.f32.mrb[0].mxu0
      %v1083 = vadd.f32 0.0, %v1082
      %v1084 = vpop.f32.mrb[0].mxu0
      %1085 = vmatprep.mubr.bf16.mxu0 0
      %1086 = vmatmul.mubr.bf16.gmra.mrb[0].mxu0 %v990
      %v1087 = vpop.f32.mrb[0].mxu0
      %v1088 = vadd.f32 0.0, %v1087
      %v1089 = vpop.f32.mrb[0].mxu0
      %v1090 = vpop.f32.mrb[0].mxu0
      %v1091 = vadd.f32 0.0, %v1090
      %v1092 = vpop.f32.mrb[0].mxu0
      %1093 = vmatprep.mubr.bf16.mxu0 0
      %1094 = vmatmul.mubr.bf16.gmra.mrb[0].mxu0 %v991
      %v1095 = vpop.f32.mrb[0].mxu0
      %v1096 = vadd.f32 0.0, %v1095
      %v1097 = vpop.f32.mrb[0].mxu0
      %v1098 = vpop.f32.mrb[0].mxu0
      %v1099 = vadd.f32 0.0, %v1098
      %v1100 = vpop.f32.mrb[0].mxu0
      %1101 = vmatprep.mubr.bf16.mxu0 0
      %1102 = vmatmul.mubr.bf16.gmra.mrb[0].mxu0 %v992
      %v1103 = vpop.f32.mrb[0].mxu0
      %v1104 = vadd.f32 0.0, %v1103
      %v1105 = vpop.f32.mrb[0].mxu0
      %v1106 = vpop.f32.mrb[0].mxu0
      %v1107 = vadd.f32 0.0, %v1106
      %v1108 = vpop.f32.mrb[0].mxu0
      %1109 = vdwg.mxu0
      %v1110 = vadd.f32 %v963, %v1080
      %v1111 = vadd.f32 %v964, %v1083
      %v1112 = vadd.f32 %v965, %v1088
      %v1113 = vadd.f32 %v966, %v1091
      %v1114 = vadd.f32 %v967, %v1096
      %v1115 = vadd.f32 %v968, %v1099
      %v1116 = vadd.f32 %v969, %v1104
      %v1117 = vadd.f32 %v970, %v1107
      %v1118 = vunpack.c.h.b16 %v345
      %v1119 = vpack.c.b16 %v988, %v988
      %v1120 = vpack.c.b16 %v1118, %v1118
      %v1122 = vshrl.u32 %v1119, 16
      %v1124 = vrot.slane %v1122, 4
      %v1125 = vshll.u32 %v1119, 16
      %v1127 = vrot.slane %v1125, 5
      %v1128 = vor.u32 %v1124, %v1127
      %v1129 = vrot.slane %v1128, 4
      %v1131 = vshll.u32 %v1120, 16
      %v1133 = vrot.slane %v1131, 5
      %v1134 = vsel %vm404, %v1129, %v1133
      %v1135 = vld [vmem:[%s1 + $0x100] sm:$0xf]
      %v1136 = vld [vmem:[%s1 + $0x104] sm:$0xf]
      %v1137 = vld [vmem:[%s1 + $0x108] sm:$0xf]
      %v1138 = vld [vmem:[%s1 + $0x10c] sm:$0xf]
      %v1139 = vld [vmem:[%s1 + $0x110] sm:$0xf]
      %v1140 = vld [vmem:[%s1 + $0x114] sm:$0xf]
      %v1141 = vld [vmem:[%s1 + $0x118] sm:$0xf]
      %v1142 = vld [vmem:[%s1 + $0x11c] sm:$0xf]
      %v1143 = vld [vmem:[%s1 + $0x120] sm:$0xf]
      %v1144 = vld [vmem:[%s1 + $0x124] sm:$0xf]
      %v1145 = vld [vmem:[%s1 + $0x128] sm:$0xf]
      %v1146 = vld [vmem:[%s1 + $0x12c] sm:$0xf]
      %v1147 = vld [vmem:[%s1 + $0x130] sm:$0xf]
      %v1148 = vld [vmem:[%s1 + $0x134] sm:$0xf]
      %v1149 = vld [vmem:[%s1 + $0x138] sm:$0xf]
      %v1150 = vld [vmem:[%s1 + $0x13c] sm:$0xf]
      %v1151 = vunpack.c.l.b16 %v1134
      %v1152 = vpack.c.b16 %v535, %v534
      %v1153 = vpack.c.b16 %v537, %v536
      %v1154 = vpack.c.b16 %v539, %v538
      %v1155 = vpack.c.b16 %v1151, %v540
      %v1176 = vunpack.c.l.b16 %v1135
      %v1177 = vunpack.c.l.b16 %v1136
      %v1178 = vunpack.c.l.b16 %v1137
      %v1179 = vunpack.c.l.b16 %v1138
      %v1180 = vunpack.c.l.b16 %v1139
      %v1181 = vunpack.c.l.b16 %v1140
      %v1182 = vunpack.c.l.b16 %v1141
      %v1183 = vunpack.c.l.b16 %v1142
      %v1184 = vunpack.c.l.b16 %v1143
      %v1185 = vunpack.c.l.b16 %v1144
      %v1186 = vunpack.c.l.b16 %v1145
      %v1187 = vunpack.c.l.b16 %v1146
      %v1188 = vunpack.c.l.b16 %v1147
      %v1189 = vunpack.c.l.b16 %v1148
      %v1190 = vunpack.c.l.b16 %v1149
      %v1191 = vunpack.c.l.b16 %v1150
      %v1192 = vpack.c.b16 %v1177, %v1176
      %v1193 = vpack.c.b16 %v1179, %v1178
      %v1194 = vpack.c.b16 %v1181, %v1180
      %v1195 = vpack.c.b16 %v1183, %v1182
      %v1196 = vpack.c.b16 %v1185, %v1184
      %v1197 = vpack.c.b16 %v1187, %v1186
      %v1198 = vpack.c.b16 %v1189, %v1188
      %v1199 = vpack.c.b16 %v1191, %v1190
      %1208 = vmatprep.subr.bf16.mxu0 0
      %1209 = vmatpush1.bf16.msra.mxu0 %v1192
      %1210 = vmatprep.subr.bf16.mxu0 0
      %1211 = vmatpush1.bf16.msra.mxu0 %v1193
      %1212 = vmatprep.subr.bf16.mxu0 0
      %1213 = vmatpush1.bf16.msra.mxu0 %v1194
      %1214 = vmatprep.subr.bf16.mxu0 0
      %1215 = vmatpush1.bf16.msra.mxu0 %v1195
      %1216 = vmatprep.subr.bf16.mxu0 0
      %1217 = vmatpush1.bf16.msra.mxu0 %v1196
      %1218 = vmatprep.subr.bf16.mxu0 0
      %1219 = vmatpush1.bf16.msra.mxu0 %v1197
      %1220 = vmatprep.subr.bf16.mxu0 0
      %1221 = vmatpush1.bf16.msra.mxu0 %v1198
      %1222 = vmatprep.subr.bf16.mxu0 0
      %1223 = vmatpush1.bf16.msra.mxu0 %v1199
      %1224 = vmatprep.subr.bf16.mxu0 0
      %1225 = vmatpush1.bf16.msra.mxu0 0
      %1226 = vmatprep.subr.bf16.mxu0 0
      %1227 = vmatpush1.bf16.msra.mxu0 0
      %1228 = vmatprep.subr.bf16.mxu0 0
      %1229 = vmatpush1.bf16.msra.mxu0 0
      %1230 = vmatprep.subr.bf16.mxu0 0
      %1231 = vmatpush1.bf16.msra.mxu0 0
      %1232 = vmatprep.subr.bf16.mxu0 0
      %1233 = vmatpush1.bf16.msra.mxu0 0
      %1234 = vmatprep.subr.bf16.mxu0 0
      %1235 = vmatpush1.bf16.msra.mxu0 0
      %1236 = vmatprep.subr.bf16.mxu0 0
      %1237 = vmatpush1.bf16.msra.mxu0 0
      %1238 = vmatprep.subr.bf16.mxu0 0
      %1239 = vmatpush1.bf16.msra.mxu0 0
      %1240 = vmatprep.mubr.bf16.mxu0 0
      %1241 = vmatmul.mubr.bf16.gmra.mrb[0].mxu0 %v1152
      %v1242 = vpop.f32.mrb[0].mxu0
      %v1243 = vadd.f32 0.0, %v1242
      %v1244 = vpop.f32.mrb[0].mxu0
      %v1245 = vpop.f32.mrb[0].mxu0
      %v1246 = vadd.f32 0.0, %v1245
      %v1247 = vpop.f32.mrb[0].mxu0
      %1248 = vmatprep.mubr.bf16.mxu0 0
      %1249 = vmatmul.mubr.bf16.gmra.mrb[0].mxu0 %v1153
      %v1250 = vpop.f32.mrb[0].mxu0
      %v1251 = vadd.f32 0.0, %v1250
      %v1252 = vpop.f32.mrb[0].mxu0
      %v1253 = vpop.f32.mrb[0].mxu0
      %v1254 = vadd.f32 0.0, %v1253
      %v1255 = vpop.f32.mrb[0].mxu0
      %1256 = vmatprep.mubr.bf16.mxu0 0
      %1257 = vmatmul.mubr.bf16.gmra.mrb[0].mxu0 %v1154
      %v1258 = vpop.f32.mrb[0].mxu0
      %v1259 = vadd.f32 0.0, %v1258
      %v1260 = vpop.f32.mrb[0].mxu0
      %v1261 = vpop.f32.mrb[0].mxu0
      %v1262 = vadd.f32 0.0, %v1261
      %v1263 = vpop.f32.mrb[0].mxu0
      %1264 = vmatprep.mubr.bf16.mxu0 0
      %1265 = vmatmul.mubr.bf16.gmra.mrb[0].mxu0 %v1155
      %v1266 = vpop.f32.mrb[0].mxu0
      %v1267 = vadd.f32 0.0, %v1266
      %v1268 = vpop.f32.mrb[0].mxu0
      %v1269 = vpop.f32.mrb[0].mxu0
      %v1270 = vadd.f32 0.0, %v1269
      %v1271 = vpop.f32.mrb[0].mxu0
      %1272 = vdwg.mxu0
      %v1273 = vadd.f32 %v1110, %v1243
      %v1274 = vadd.f32 %v1111, %v1246
      %v1275 = vadd.f32 %v1112, %v1251
      %v1276 = vadd.f32 %v1113, %v1254
      %v1277 = vadd.f32 %v1114, %v1259
      %v1278 = vadd.f32 %v1115, %v1262
      %v1279 = vadd.f32 %v1116, %v1267
      %v1280 = vadd.f32 %v1117, %v1270
      %v1281 = vrot.slane %v1119, 5
      %v1282 = vrot.slane %v1281, 4
      %v1283 = vrot.slane %v1120, 5
      %v1284 = vsel %vm785, %v1282, %v1283
      %v1285 = vld [vmem:[%s1 + $0x140] sm:$0xf]
      %v1286 = vld [vmem:[%s1 + $0x144] sm:$0xf]
      %v1287 = vld [vmem:[%s1 + $0x148] sm:$0xf]
      %v1288 = vld [vmem:[%s1 + $0x14c] sm:$0xf]
      %v1289 = vld [vmem:[%s1 + $0x150] sm:$0xf]
      %v1290 = vld [vmem:[%s1 + $0x154] sm:$0xf]
      %v1291 = vld [vmem:[%s1 + $0x158] sm:$0xf]
      %v1292 = vld [vmem:[%s1 + $0x15c] sm:$0xf]
      %v1293 = vld [vmem:[%s1 + $0x160] sm:$0xf]
      %v1294 = vld [vmem:[%s1 + $0x164] sm:$0xf]
      %v1295 = vld [vmem:[%s1 + $0x168] sm:$0xf]
      %v1296 = vld [vmem:[%s1 + $0x16c] sm:$0xf]
      %v1297 = vld [vmem:[%s1 + $0x170] sm:$0xf]
      %v1298 = vld [vmem:[%s1 + $0x174] sm:$0xf]
      %v1299 = vld [vmem:[%s1 + $0x178] sm:$0xf]
      %v1300 = vld [vmem:[%s1 + $0x17c] sm:$0xf]
      %v1301 = vunpack.c.l.b16 %v1284
      %v1302 = vpack.c.b16 %v836, %v835
      %v1303 = vpack.c.b16 %v838, %v837
      %v1304 = vpack.c.b16 %v840, %v839
      %v1305 = vpack.c.b16 %v1301, %v841
      %v1326 = vunpack.c.l.b16 %v1285
      %v1327 = vunpack.c.l.b16 %v1286
      %v1328 = vunpack.c.l.b16 %v1287
      %v1329 = vunpack.c.l.b16 %v1288
      %v1330 = vunpack.c.l.b16 %v1289
      %v1331 = vunpack.c.l.b16 %v1290
      %v1332 = vunpack.c.l.b16 %v1291
      %v1333 = vunpack.c.l.b16 %v1292
      %v1334 = vunpack.c.l.b16 %v1293
      %v1335 = vunpack.c.l.b16 %v1294
      %v1336 = vunpack.c.l.b16 %v1295
      %v1337 = vunpack.c.l.b16 %v1296
      %v1338 = vunpack.c.l.b16 %v1297
      %v1339 = vunpack.c.l.b16 %v1298
      %v1340 = vunpack.c.l.b16 %v1299
      %v1341 = vunpack.c.l.b16 %v1300
      %v1342 = vpack.c.b16 %v1327, %v1326
      %v1343 = vpack.c.b16 %v1329, %v1328
      %v1344 = vpack.c.b16 %v1331, %v1330
      %v1345 = vpack.c.b16 %v1333, %v1332
      %v1346 = vpack.c.b16 %v1335, %v1334
      %v1347 = vpack.c.b16 %v1337, %v1336
      %v1348 = vpack.c.b16 %v1339, %v1338
      %v1349 = vpack.c.b16 %v1341, %v1340
      %1358 = vmatprep.subr.bf16.mxu0 0
      %1359 = vmatpush1.bf16.msra.mxu0 %v1342
      %1360 = vmatprep.subr.bf16.mxu0 0
      %1361 = vmatpush1.bf16.msra.mxu0 %v1343
      %1362 = vmatprep.subr.bf16.mxu0 0
      %1363 = vmatpush1.bf16.msra.mxu0 %v1344
      %1364 = vmatprep.subr.bf16.mxu0 0
      %1365 = vmatpush1.bf16.msra.mxu0 %v1345
      %1366 = vmatprep.subr.bf16.mxu0 0
      %1367 = vmatpush1.bf16.msra.mxu0 %v1346
      %1368 = vmatprep.subr.bf16.mxu0 0
      %1369 = vmatpush1.bf16.msra.mxu0 %v1347
      %1370 = vmatprep.subr.bf16.mxu0 0
      %1371 = vmatpush1.bf16.msra.mxu0 %v1348
      %1372 = vmatprep.subr.bf16.mxu0 0
      %1373 = vmatpush1.bf16.msra.mxu0 %v1349
      %1374 = vmatprep.subr.bf16.mxu0 0
      %1375 = vmatpush1.bf16.msra.mxu0 0
      %1376 = vmatprep.subr.bf16.mxu0 0
      %1377 = vmatpush1.bf16.msra.mxu0 0
      %1378 = vmatprep.subr.bf16.mxu0 0
      %1379 = vmatpush1.bf16.msra.mxu0 0
      %1380 = vmatprep.subr.bf16.mxu0 0
      %1381 = vmatpush1.bf16.msra.mxu0 0
      %1382 = vmatprep.subr.bf16.mxu0 0
      %1383 = vmatpush1.bf16.msra.mxu0 0
      %1384 = vmatprep.subr.bf16.mxu0 0
      %1385 = vmatpush1.bf16.msra.mxu0 0
      %1386 = vmatprep.subr.bf16.mxu0 0
      %1387 = vmatpush1.bf16.msra.mxu0 0
      %1388 = vmatprep.subr.bf16.mxu0 0
      %1389 = vmatpush1.bf16.msra.mxu0 0
      %1390 = vmatprep.mubr.bf16.mxu0 0
      %1391 = vmatmul.mubr.bf16.gmra.mrb[0].mxu0 %v1302
      %v1392 = vpop.f32.mrb[0].mxu0
      %v1393 = vadd.f32 0.0, %v1392
      %v1394 = vpop.f32.mrb[0].mxu0
      %v1395 = vpop.f32.mrb[0].mxu0
      %v1396 = vadd.f32 0.0, %v1395
      %v1397 = vpop.f32.mrb[0].mxu0
      %1398 = vmatprep.mubr.bf16.mxu0 0
      %1399 = vmatmul.mubr.bf16.gmra.mrb[0].mxu0 %v1303
      %v1400 = vpop.f32.mrb[0].mxu0
      %v1401 = vadd.f32 0.0, %v1400
      %v1402 = vpop.f32.mrb[0].mxu0
      %v1403 = vpop.f32.mrb[0].mxu0
      %v1404 = vadd.f32 0.0, %v1403
      %v1405 = vpop.f32.mrb[0].mxu0
      %1406 = vmatprep.mubr.bf16.mxu0 0
      %1407 = vmatmul.mubr.bf16.gmra.mrb[0].mxu0 %v1304
      %v1408 = vpop.f32.mrb[0].mxu0
      %v1409 = vadd.f32 0.0, %v1408
      %v1410 = vpop.f32.mrb[0].mxu0
      %v1411 = vpop.f32.mrb[0].mxu0
      %v1412 = vadd.f32 0.0, %v1411
      %v1413 = vpop.f32.mrb[0].mxu0
      %1414 = vmatprep.mubr.bf16.mxu0 0
      %1415 = vmatmul.mubr.bf16.gmra.mrb[0].mxu0 %v1305
      %v1416 = vpop.f32.mrb[0].mxu0
      %v1417 = vadd.f32 0.0, %v1416
      %v1418 = vpop.f32.mrb[0].mxu0
      %v1419 = vpop.f32.mrb[0].mxu0
      %v1420 = vadd.f32 0.0, %v1419
      %v1421 = vpop.f32.mrb[0].mxu0
      %1422 = vdwg.mxu0
      %v1423 = vadd.f32 %v1273, %v1393
      %v1424 = vadd.f32 %v1274, %v1396
      %v1425 = vadd.f32 %v1275, %v1401
      %v1426 = vadd.f32 %v1276, %v1404
      %v1427 = vadd.f32 %v1277, %v1409
      %v1428 = vadd.f32 %v1278, %v1412
      %v1429 = vadd.f32 %v1279, %v1417
      %v1430 = vadd.f32 %v1280, %v1420
      %v1431 = vld [vmem:[%s1 + $0x180] sm:$0xf]
      %v1432 = vld [vmem:[%s1 + $0x184] sm:$0xf]
      %v1433 = vld [vmem:[%s1 + $0x188] sm:$0xf]
      %v1434 = vld [vmem:[%s1 + $0x18c] sm:$0xf]
      %v1435 = vld [vmem:[%s1 + $0x190] sm:$0xf]
      %v1436 = vld [vmem:[%s1 + $0x194] sm:$0xf]
      %v1437 = vld [vmem:[%s1 + $0x198] sm:$0xf]
      %v1438 = vld [vmem:[%s1 + $0x19c] sm:$0xf]
      %v1439 = vld [vmem:[%s1 + $0x1a0] sm:$0xf]
      %v1440 = vld [vmem:[%s1 + $0x1a4] sm:$0xf]
      %v1441 = vld [vmem:[%s1 + $0x1a8] sm:$0xf]
      %v1442 = vld [vmem:[%s1 + $0x1ac] sm:$0xf]
      %v1443 = vld [vmem:[%s1 + $0x1b0] sm:$0xf]
      %v1444 = vld [vmem:[%s1 + $0x1b4] sm:$0xf]
      %v1445 = vld [vmem:[%s1 + $0x1b8] sm:$0xf]
      %v1446 = vld [vmem:[%s1 + $0x1bc] sm:$0xf]
      %v1447 = vpack.c.b16 %v370, %v988
      %v1465 = vunpack.c.l.b16 %v1431
      %v1466 = vunpack.c.l.b16 %v1432
      %v1467 = vunpack.c.l.b16 %v1433
      %v1468 = vunpack.c.l.b16 %v1434
      %v1469 = vunpack.c.l.b16 %v1435
      %v1470 = vunpack.c.l.b16 %v1436
      %v1471 = vunpack.c.l.b16 %v1437
      %v1472 = vunpack.c.l.b16 %v1438
      %v1473 = vunpack.c.l.b16 %v1439
      %v1474 = vunpack.c.l.b16 %v1440
      %v1475 = vunpack.c.l.b16 %v1441
      %v1476 = vunpack.c.l.b16 %v1442
      %v1477 = vunpack.c.l.b16 %v1443
      %v1478 = vunpack.c.l.b16 %v1444
      %v1479 = vunpack.c.l.b16 %v1445
      %v1480 = vunpack.c.l.b16 %v1446
      %v1481 = vpack.c.b16 %v1466, %v1465
      %v1482 = vpack.c.b16 %v1468, %v1467
      %v1483 = vpack.c.b16 %v1470, %v1469
      %v1484 = vpack.c.b16 %v1472, %v1471
      %v1485 = vpack.c.b16 %v1474, %v1473
      %v1486 = vpack.c.b16 %v1476, %v1475
      %v1487 = vpack.c.b16 %v1478, %v1477
      %v1488 = vpack.c.b16 %v1480, %v1479
      %1497 = vmatprep.subr.bf16.mxu0 0
      %1498 = vmatpush1.bf16.msra.mxu0 %v1481
      %1499 = vmatprep.subr.bf16.mxu0 0
      %1500 = vmatpush1.bf16.msra.mxu0 %v1482
      %1501 = vmatprep.subr.bf16.mxu0 0
      %1502 = vmatpush1.bf16.msra.mxu0 %v1483
      %1503 = vmatprep.subr.bf16.mxu0 0
      %1504 = vmatpush1.bf16.msra.mxu0 %v1484
      %1505 = vmatprep.subr.bf16.mxu0 0
      %1506 = vmatpush1.bf16.msra.mxu0 %v1485
      %1507 = vmatprep.subr.bf16.mxu0 0
      %1508 = vmatpush1.bf16.msra.mxu0 %v1486
      %1509 = vmatprep.subr.bf16.mxu0 0
      %1510 = vmatpush1.bf16.msra.mxu0 %v1487
      %1511 = vmatprep.subr.bf16.mxu0 0
      %1512 = vmatpush1.bf16.msra.mxu0 %v1488
      %1513 = vmatprep.subr.bf16.mxu0 0
      %1514 = vmatpush1.bf16.msra.mxu0 0
      %1515 = vmatprep.subr.bf16.mxu0 0
      %1516 = vmatpush1.bf16.msra.mxu0 0
      %1517 = vmatprep.subr.bf16.mxu0 0
      %1518 = vmatpush1.bf16.msra.mxu0 0
      %1519 = vmatprep.subr.bf16.mxu0 0
      %1520 = vmatpush1.bf16.msra.mxu0 0
      %1521 = vmatprep.subr.bf16.mxu0 0
      %1522 = vmatpush1.bf16.msra.mxu0 0
      %1523 = vmatprep.subr.bf16.mxu0 0
      %1524 = vmatpush1.bf16.msra.mxu0 0
      %1525 = vmatprep.subr.bf16.mxu0 0
      %1526 = vmatpush1.bf16.msra.mxu0 0
      %1527 = vmatprep.subr.bf16.mxu0 0
      %1528 = vmatpush1.bf16.msra.mxu0 0
      %1529 = vmatprep.mubr.bf16.mxu0 0
      %1530 = vmatmul.mubr.bf16.gmra.mrb[0].mxu0 %v663
      %v1531 = vpop.f32.mrb[0].mxu0
      %v1532 = vadd.f32 0.0, %v1531
      %v1533 = vpop.f32.mrb[0].mxu0
      %v1534 = vpop.f32.mrb[0].mxu0
      %v1535 = vadd.f32 0.0, %v1534
      %v1536 = vpop.f32.mrb[0].mxu0
      %1537 = vmatprep.mubr.bf16.mxu0 0
      %1538 = vmatmul.mubr.bf16.gmra.mrb[0].mxu0 %v664
      %v1539 = vpop.f32.mrb[0].mxu0
      %v1540 = vadd.f32 0.0, %v1539
      %v1541 = vpop.f32.mrb[0].mxu0
      %v1542 = vpop.f32.mrb[0].mxu0
      %v1543 = vadd.f32 0.0, %v1542
      %v1544 = vpop.f32.mrb[0].mxu0
      %1545 = vmatprep.mubr.bf16.mxu0 0
      %1546 = vmatmul.mubr.bf16.gmra.mrb[0].mxu0 %v665
      %v1547 = vpop.f32.mrb[0].mxu0
      %v1548 = vadd.f32 0.0, %v1547
      %v1549 = vpop.f32.mrb[0].mxu0
      %v1550 = vpop.f32.mrb[0].mxu0
      %v1551 = vadd.f32 0.0, %v1550
      %v1552 = vpop.f32.mrb[0].mxu0
      %1553 = vmatprep.mubr.bf16.mxu0 0
      %1554 = vmatmul.mubr.bf16.gmra.mrb[0].mxu0 %v1447
      %v1555 = vpop.f32.mrb[0].mxu0
      %v1556 = vadd.f32 0.0, %v1555
      %v1557 = vpop.f32.mrb[0].mxu0
      %v1558 = vpop.f32.mrb[0].mxu0
      %v1559 = vadd.f32 0.0, %v1558
      %v1560 = vpop.f32.mrb[0].mxu0
      %1561 = vdwg.mxu0
      %v1562 = vadd.f32 %v1423, %v1532
      %v1563 = vadd.f32 %v1424, %v1535
      %v1564 = vadd.f32 %v1425, %v1540
      %v1565 = vadd.f32 %v1426, %v1543
      %v1566 = vadd.f32 %v1427, %v1548
      %v1567 = vadd.f32 %v1428, %v1551
      %v1568 = vadd.f32 %v1429, %v1556
      %v1569 = vadd.f32 %v1430, %v1559
      %v1570 = vld [vmem:[%s1 + $0x1c0] sm:$0xf]
      %v1571 = vld [vmem:[%s1 + $0x1c4] sm:$0xf]
      %v1572 = vld [vmem:[%s1 + $0x1c8] sm:$0xf]
      %v1573 = vld [vmem:[%s1 + $0x1cc] sm:$0xf]
      %v1574 = vld [vmem:[%s1 + $0x1d0] sm:$0xf]
      %v1575 = vld [vmem:[%s1 + $0x1d4] sm:$0xf]
      %v1576 = vld [vmem:[%s1 + $0x1d8] sm:$0xf]
      %v1577 = vld [vmem:[%s1 + $0x1dc] sm:$0xf]
      %v1578 = vld [vmem:[%s1 + $0x1e0] sm:$0xf]
      %v1579 = vld [vmem:[%s1 + $0x1e4] sm:$0xf]
      %v1580 = vld [vmem:[%s1 + $0x1e8] sm:$0xf]
      %v1581 = vld [vmem:[%s1 + $0x1ec] sm:$0xf]
      %v1582 = vld [vmem:[%s1 + $0x1f0] sm:$0xf]
      %v1583 = vld [vmem:[%s1 + $0x1f4] sm:$0xf]
      %v1584 = vld [vmem:[%s1 + $0x1f8] sm:$0xf]
      %v1585 = vld [vmem:[%s1 + $0x1fc] sm:$0xf]
      %v1586 = vpack.c.b16 %v533, %v1151
      %v1604 = vunpack.c.l.b16 %v1570
      %v1605 = vunpack.c.l.b16 %v1571
      %v1606 = vunpack.c.l.b16 %v1572
      %v1607 = vunpack.c.l.b16 %v1573
      %v1608 = vunpack.c.l.b16 %v1574
      %v1609 = vunpack.c.l.b16 %v1575
      %v1610 = vunpack.c.l.b16 %v1576
      %v1611 = vunpack.c.l.b16 %v1577
      %v1612 = vunpack.c.l.b16 %v1578
      %v1613 = vunpack.c.l.b16 %v1579
      %v1614 = vunpack.c.l.b16 %v1580
      %v1615 = vunpack.c.l.b16 %v1581
      %v1616 = vunpack.c.l.b16 %v1582
      %v1617 = vunpack.c.l.b16 %v1583
      %v1618 = vunpack.c.l.b16 %v1584
      %v1619 = vunpack.c.l.b16 %v1585
      %v1620 = vpack.c.b16 %v1605, %v1604
      %v1621 = vpack.c.b16 %v1607, %v1606
      %v1622 = vpack.c.b16 %v1609, %v1608
      %v1623 = vpack.c.b16 %v1611, %v1610
      %v1624 = vpack.c.b16 %v1613, %v1612
      %v1625 = vpack.c.b16 %v1615, %v1614
      %v1626 = vpack.c.b16 %v1617, %v1616
      %v1627 = vpack.c.b16 %v1619, %v1618
      %1636 = vmatprep.subr.bf16.mxu0 0
      %1637 = vmatpush1.bf16.msra.mxu0 %v1620
      %1638 = vmatprep.subr.bf16.mxu0 0
      %1639 = vmatpush1.bf16.msra.mxu0 %v1621
      %1640 = vmatprep.subr.bf16.mxu0 0
      %1641 = vmatpush1.bf16.msra.mxu0 %v1622
      %1642 = vmatprep.subr.bf16.mxu0 0
      %1643 = vmatpush1.bf16.msra.mxu0 %v1623
      %1644 = vmatprep.subr.bf16.mxu0 0
      %1645 = vmatpush1.bf16.msra.mxu0 %v1624
      %1646 = vmatprep.subr.bf16.mxu0 0
      %1647 = vmatpush1.bf16.msra.mxu0 %v1625
      %1648 = vmatprep.subr.bf16.mxu0 0
      %1649 = vmatpush1.bf16.msra.mxu0 %v1626
      %1650 = vmatprep.subr.bf16.mxu0 0
      %1651 = vmatpush1.bf16.msra.mxu0 %v1627
      %1652 = vmatprep.subr.bf16.mxu0 0
      %1653 = vmatpush1.bf16.msra.mxu0 0
      %1654 = vmatprep.subr.bf16.mxu0 0
      %1655 = vmatpush1.bf16.msra.mxu0 0
      %1656 = vmatprep.subr.bf16.mxu0 0
      %1657 = vmatpush1.bf16.msra.mxu0 0
      %1658 = vmatprep.subr.bf16.mxu0 0
      %1659 = vmatpush1.bf16.msra.mxu0 0
      %1660 = vmatprep.subr.bf16.mxu0 0
      %1661 = vmatpush1.bf16.msra.mxu0 0
      %1662 = vmatprep.subr.bf16.mxu0 0
      %1663 = vmatpush1.bf16.msra.mxu0 0
      %1664 = vmatprep.subr.bf16.mxu0 0
      %1665 = vmatpush1.bf16.msra.mxu0 0
      %1666 = vmatprep.subr.bf16.mxu0 0
      %1667 = vmatpush1.bf16.msra.mxu0 0
      %1668 = vmatprep.mubr.bf16.mxu0 0
      %1669 = vmatmul.mubr.bf16.gmra.mrb[0].mxu0 %v542
      %v1670 = vpop.f32.mrb[0].mxu0
      %v1671 = vadd.f32 0.0, %v1670
      %v1672 = vpop.f32.mrb[0].mxu0
      %v1673 = vpop.f32.mrb[0].mxu0
      %v1674 = vadd.f32 0.0, %v1673
      %v1675 = vpop.f32.mrb[0].mxu0
      %1676 = vmatprep.mubr.bf16.mxu0 0
      %1677 = vmatmul.mubr.bf16.gmra.mrb[0].mxu0 %v543
      %v1678 = vpop.f32.mrb[0].mxu0
      %v1679 = vadd.f32 0.0, %v1678
      %v1680 = vpop.f32.mrb[0].mxu0
      %v1681 = vpop.f32.mrb[0].mxu0
      %v1682 = vadd.f32 0.0, %v1681
      %v1683 = vpop.f32.mrb[0].mxu0
      %1684 = vmatprep.mubr.bf16.mxu0 0
      %1685 = vmatmul.mubr.bf16.gmra.mrb[0].mxu0 %v544
      %v1686 = vpop.f32.mrb[0].mxu0
      %v1687 = vadd.f32 0.0, %v1686
      %v1688 = vpop.f32.mrb[0].mxu0
      %v1689 = vpop.f32.mrb[0].mxu0
      %v1690 = vadd.f32 0.0, %v1689
      %v1691 = vpop.f32.mrb[0].mxu0
      %1692 = vmatprep.mubr.bf16.mxu0 0
      %1693 = vmatmul.mubr.bf16.gmra.mrb[0].mxu0 %v1586
      %v1694 = vpop.f32.mrb[0].mxu0
      %v1695 = vadd.f32 0.0, %v1694
      %v1696 = vpop.f32.mrb[0].mxu0
      %v1697 = vpop.f32.mrb[0].mxu0
      %v1698 = vadd.f32 0.0, %v1697
      %v1699 = vpop.f32.mrb[0].mxu0
      %1700 = vdwg.mxu0
      %v1701 = vadd.f32 %v1562, %v1671
      %v1702 = vadd.f32 %v1563, %v1674
      %v1703 = vadd.f32 %v1564, %v1679
      %v1704 = vadd.f32 %v1565, %v1682
      %v1705 = vadd.f32 %v1566, %v1687
      %v1706 = vadd.f32 %v1567, %v1690
      %v1707 = vadd.f32 %v1568, %v1695
      %v1708 = vadd.f32 %v1569, %v1698
      %v1709 = vld [vmem:[%s1 + $0x200] sm:$0xf]
      %v1710 = vld [vmem:[%s1 + $0x204] sm:$0xf]
      %v1711 = vld [vmem:[%s1 + $0x208] sm:$0xf]
      %v1712 = vld [vmem:[%s1 + $0x20c] sm:$0xf]
      %v1713 = vld [vmem:[%s1 + $0x210] sm:$0xf]
      %v1714 = vld [vmem:[%s1 + $0x214] sm:$0xf]
      %v1715 = vld [vmem:[%s1 + $0x218] sm:$0xf]
      %v1716 = vld [vmem:[%s1 + $0x21c] sm:$0xf]
      %v1717 = vld [vmem:[%s1 + $0x220] sm:$0xf]
      %v1718 = vld [vmem:[%s1 + $0x224] sm:$0xf]
      %v1719 = vld [vmem:[%s1 + $0x228] sm:$0xf]
      %v1720 = vld [vmem:[%s1 + $0x22c] sm:$0xf]
      %v1721 = vld [vmem:[%s1 + $0x230] sm:$0xf]
      %v1722 = vld [vmem:[%s1 + $0x234] sm:$0xf]
      %v1723 = vld [vmem:[%s1 + $0x238] sm:$0xf]
      %v1724 = vld [vmem:[%s1 + $0x23c] sm:$0xf]
      %v1725 = vpack.c.b16 %v834, %v1301
      %v1743 = vunpack.c.l.b16 %v1709
      %v1744 = vunpack.c.l.b16 %v1710
      %v1745 = vunpack.c.l.b16 %v1711
      %v1746 = vunpack.c.l.b16 %v1712
      %v1747 = vunpack.c.l.b16 %v1713
      %v1748 = vunpack.c.l.b16 %v1714
      %v1749 = vunpack.c.l.b16 %v1715
      %v1750 = vunpack.c.l.b16 %v1716
      %v1751 = vunpack.c.l.b16 %v1717
      %v1752 = vunpack.c.l.b16 %v1718
      %v1753 = vunpack.c.l.b16 %v1719
      %v1754 = vunpack.c.l.b16 %v1720
      %v1755 = vunpack.c.l.b16 %v1721
      %v1756 = vunpack.c.l.b16 %v1722
      %v1757 = vunpack.c.l.b16 %v1723
      %v1758 = vunpack.c.l.b16 %v1724
      %v1759 = vpack.c.b16 %v1744, %v1743
      %v1760 = vpack.c.b16 %v1746, %v1745
      %v1761 = vpack.c.b16 %v1748, %v1747
      %v1762 = vpack.c.b16 %v1750, %v1749
      %v1763 = vpack.c.b16 %v1752, %v1751
      %v1764 = vpack.c.b16 %v1754, %v1753
      %v1765 = vpack.c.b16 %v1756, %v1755
      %v1766 = vpack.c.b16 %v1758, %v1757
      %1775 = vmatprep.subr.bf16.mxu0 0
      %1776 = vmatpush1.bf16.msra.mxu0 %v1759
      %1777 = vmatprep.subr.bf16.mxu0 0
      %1778 = vmatpush1.bf16.msra.mxu0 %v1760
      %1779 = vmatprep.subr.bf16.mxu0 0
      %1780 = vmatpush1.bf16.msra.mxu0 %v1761
      %1781 = vmatprep.subr.bf16.mxu0 0
      %1782 = vmatpush1.bf16.msra.mxu0 %v1762
      %1783 = vmatprep.subr.bf16.mxu0 0
      %1784 = vmatpush1.bf16.msra.mxu0 %v1763
      %1785 = vmatprep.subr.bf16.mxu0 0
      %1786 = vmatpush1.bf16.msra.mxu0 %v1764
      %1787 = vmatprep.subr.bf16.mxu0 0
      %1788 = vmatpush1.bf16.msra.mxu0 %v1765
      %1789 = vmatprep.subr.bf16.mxu0 0
      %1790 = vmatpush1.bf16.msra.mxu0 %v1766
      %1791 = vmatprep.subr.bf16.mxu0 0
      %1792 = vmatpush1.bf16.msra.mxu0 0
      %1793 = vmatprep.subr.bf16.mxu0 0
      %1794 = vmatpush1.bf16.msra.mxu0 0
      %1795 = vmatprep.subr.bf16.mxu0 0
      %1796 = vmatpush1.bf16.msra.mxu0 0
      %1797 = vmatprep.subr.bf16.mxu0 0
      %1798 = vmatpush1.bf16.msra.mxu0 0
      %1799 = vmatprep.subr.bf16.mxu0 0
      %1800 = vmatpush1.bf16.msra.mxu0 0
      %1801 = vmatprep.subr.bf16.mxu0 0
      %1802 = vmatpush1.bf16.msra.mxu0 0
      %1803 = vmatprep.subr.bf16.mxu0 0
      %1804 = vmatpush1.bf16.msra.mxu0 0
      %1805 = vmatprep.subr.bf16.mxu0 0
      %1806 = vmatpush1.bf16.msra.mxu0 0
      %1807 = vmatprep.mubr.bf16.mxu0 0
      %1808 = vmatmul.mubr.bf16.gmra.mrb[0].mxu0 %v843
      %v1809 = vpop.f32.mrb[0].mxu0
      %v1810 = vadd.f32 0.0, %v1809
      %v1811 = vpop.f32.mrb[0].mxu0
      %v1812 = vpop.f32.mrb[0].mxu0
      %v1813 = vadd.f32 0.0, %v1812
      %v1814 = vpop.f32.mrb[0].mxu0
      %1815 = vmatprep.mubr.bf16.mxu0 0
      %1816 = vmatmul.mubr.bf16.gmra.mrb[0].mxu0 %v844
      %v1817 = vpop.f32.mrb[0].mxu0
      %v1818 = vadd.f32 0.0, %v1817
      %v1819 = vpop.f32.mrb[0].mxu0
      %v1820 = vpop.f32.mrb[0].mxu0
      %v1821 = vadd.f32 0.0, %v1820
      %v1822 = vpop.f32.mrb[0].mxu0
      %1823 = vmatprep.mubr.bf16.mxu0 0
      %1824 = vmatmul.mubr.bf16.gmra.mrb[0].mxu0 %v845
      %v1825 = vpop.f32.mrb[0].mxu0
      %v1826 = vadd.f32 0.0, %v1825
      %v1827 = vpop.f32.mrb[0].mxu0
      %v1828 = vpop.f32.mrb[0].mxu0
      %v1829 = vadd.f32 0.0, %v1828
      %v1830 = vpop.f32.mrb[0].mxu0
      %1831 = vmatprep.mubr.bf16.mxu0 0
      %1832 = vmatmul.mubr.bf16.gmra.mrb[0].mxu0 %v1725
      %v1833 = vpop.f32.mrb[0].mxu0
      %v1834 = vadd.f32 0.0, %v1833
      %v1835 = vpop.f32.mrb[0].mxu0
      %v1836 = vpop.f32.mrb[0].mxu0
      %v1837 = vadd.f32 0.0, %v1836
      %v1838 = vpop.f32.mrb[0].mxu0
      %1839 = vdwg.mxu0
      %v1840 = vadd.f32 %v1701, %v1810
      %v1841 = vadd.f32 %v1702, %v1813
      %v1842 = vadd.f32 %v1703, %v1818
      %v1843 = vadd.f32 %v1704, %v1821
      %v1844 = vadd.f32 %v1705, %v1826
      %v1845 = vadd.f32 %v1706, %v1829
      %v1846 = vadd.f32 %v1707, %v1834
      %v1847 = vadd.f32 %v1708, %v1837
      %v1848 = vpack.c.bf16 %v1841, %v1840
      %v1849 = vpack.c.bf16 %v1843, %v1842
      %v1850 = vpack.c.bf16 %v1845, %v1844
      %v1851 = vpack.c.bf16 %v1847, %v1846
      %v1856 = vunpack.c.l.b16 %v1848
      %v1857 = vunpack.c.h.b16 %v1848
      %v1858 = vunpack.c.l.b16 %v1849
      %v1859 = vunpack.c.h.b16 %v1849
      %v1860 = vunpack.c.l.b16 %v1850
      %v1861 = vunpack.c.h.b16 %v1850
      %v1862 = vunpack.c.l.b16 %v1851
      %v1863 = vunpack.c.h.b16 %v1851
      %v1864 = vpack.c.b16 %v1856, %v1856
      %v1865 = vpack.c.b16 %v1857, %v1857
      %v1866 = vpack.c.b16 %v1858, %v1858
      %v1867 = vpack.c.b16 %v1859, %v1859
      %v1868 = vpack.c.b16 %v1860, %v1860
      %v1869 = vpack.c.b16 %v1861, %v1861
      %v1870 = vpack.c.b16 %v1862, %v1862
      %v1871 = vpack.c.b16 %v1863, %v1863
      %1880 = vst [vmem:[%s231] sm:$0xf] %v1864
      %1881 = vst [vmem:[%s231 + $0x4] sm:$0xf] %v1865
      %1882 = vst [vmem:[%s231 + $0x8] sm:$0xf] %v1866
      %1883 = vst [vmem:[%s231 + $0xc] sm:$0xf] %v1867
      %1884 = vst [vmem:[%s231 + $0x10] sm:$0xf] %v1868
      %1885 = vst [vmem:[%s231 + $0x14] sm:$0xf] %v1869
      %1886 = vst [vmem:[%s231 + $0x18] sm:$0xf] %v1870
      %1887 = vst [vmem:[%s231 + $0x1c] sm:$0xf] %v1871
      %v1888 = vunpack.c.l.bf16 %v1848
      %v1889 = vunpack.c.h.bf16 %v1848
      %v1890 = vunpack.c.l.bf16 %v1849
      %v1891 = vunpack.c.h.bf16 %v1849
      %v1892 = vunpack.c.l.bf16 %v1850
      %v1893 = vunpack.c.h.bf16 %v1850
      %v1894 = vunpack.c.l.bf16 %v1851
      %v1895 = vunpack.c.h.bf16 %v1851
      %v1896 = vadd.f32 %v1888, %v1889
      %v1897 = vadd.f32 %v1896, %v1890
      %v1898 = vadd.f32 %v1897, %v1891
      %v1899 = vadd.f32 %v1898, %v1892
      %v1900 = vadd.f32 %v1899, %v1893
      %v1901 = vadd.f32 %v1900, %v1894
      %v1902 = vadd.f32 %v1901, %v1895
      %v1903 = vrot.slane %v1902, 4
      %v1904 = vadd.f32 %v1902, %v1903
      %v1905 = vrot.slane %v1904, 2
      %v1906 = vadd.f32 %v1904, %v1905
      %v1907 = vrot.slane %v1906, 1
      %v1908 = vadd.f32 %v1906, %v1907
      %v1909 = vmul.f32 %v1908, 0.015625
      %v1910 = vsub.f32 %v1888, %v1909
      %v1911 = vsub.f32 %v1889, %v1909
      %v1912 = vsub.f32 %v1890, %v1909
      %v1913 = vsub.f32 %v1891, %v1909
      %v1914 = vsub.f32 %v1892, %v1909
      %v1915 = vsub.f32 %v1893, %v1909
      %v1916 = vsub.f32 %v1894, %v1909
      %v1917 = vsub.f32 %v1895, %v1909
      %v1918 = vmul.f32 %v1910, %v1910
      %v1919 = vmul.f32 %v1911, %v1911
      %v1920 = vmul.f32 %v1912, %v1912
      %v1921 = vmul.f32 %v1913, %v1913
      %v1922 = vmul.f32 %v1914, %v1914
      %v1923 = vmul.f32 %v1915, %v1915
      %v1924 = vmul.f32 %v1916, %v1916
      %v1925 = vmul.f32 %v1917, %v1917
      %v1926 = vadd.f32 %v1918, %v1919
      %v1927 = vadd.f32 %v1926, %v1920
      %v1928 = vadd.f32 %v1927, %v1921
      %v1929 = vadd.f32 %v1928, %v1922
      %v1930 = vadd.f32 %v1929, %v1923
      %v1931 = vadd.f32 %v1930, %v1924
      %v1932 = vadd.f32 %v1931, %v1925
      %v1933 = vrot.slane %v1932, 4
      %v1934 = vadd.f32 %v1932, %v1933
      %v1935 = vrot.slane %v1934, 2
      %v1936 = vadd.f32 %v1934, %v1935
      %v1937 = vrot.slane %v1936, 1
      %v1938 = vadd.f32 %v1936, %v1937
      %v1939 = vsel %vm318, %v1908, %v1938
      %vm1940 = vcmask 1041408
      %v1941 = vsel %vm1940, %v1939, 0.0
      %1942 = vst [vmem:[%s235] sm:$0xff] %v1941
      %p1943 = scmp.lt.s32.totalorder %s17, 1
      %s1944 = scalar_select %p1943, %s17, 1
      %s1945 = smul.addr %s1944, 8
      %s1946 = smul.addr %s1945, 4
      %s1947 = scalar_lea.vmem %s4, %s1946
      %p1948 = scmp.lt.s32.totalorder %s17, 1
      %s1949 = scalar_select %p1948, %s17, 1
      %s1950 = smul.addr %s1949, 8
      %s1951 = scalar_lea.vmem %s5, %s1950
      // Predicated region
      $region37: #{basic_block_forward.4} parent=35 // pred_check
        %p1952 = pneg %p124
      $region38: #{basic_block_forward.4} parent=35 // pred_check_branch
        %1954 = sbr.rel (%p1952) target = $region40
      $region39: #{basic_block_forward.4} parent=35 // pred_region
        _
      $region40: #{basic_block_forward.4} parent=35 // pred_fallthru
        _
      // Predicated region
      $region41: #{basic_block_forward.4} parent=35 // pred_check
        %p1955 = pneg %p150
      $region42: #{basic_block_forward.4} parent=35 // pred_check_branch
        %1957 = sbr.rel (%p1955) target = $region44
      $region43: #{basic_block_forward.4} parent=35 // pred_region
        _
      $region44: #{basic_block_forward.4} parent=35 // pred_fallthru
        _
    $region36: #{basic_block_forward.4} parent=5 // pred_fallthru
      _
    %p1958 = scmp.le.s32.totalorder 2, %s12
    // Predicated region
    $region45: #{basic_block_forward.4} parent=5 // pred_check
      %p1959 = pneg %p1958
    $region46: #{basic_block_forward.4} parent=5 // pred_check_branch
      %1961 = sbr.rel (%p1959) target = $region48
    $region47: #{basic_block_forward.4} parent=5 // pred_region
      %s1962 = ssub.s32 %s12, 2
      // Predicated region
      $region49: #{basic_block_forward.4} parent=47 // pred_check
        %p1963 = pneg %p130
      $region50: #{basic_block_forward.4} parent=47 // pred_check_branch
        %1965 = sbr.rel (%p1963) target = $region52
      $region51: #{basic_block_forward.4} parent=47 // pred_region
        %p1966 = scmp.lt.s32.totalorder %s18, 1
        %s1967 = scalar_select %p1966, %s18, 1
        %s1968 = smul.addr %s1967, 8
        %s1969 = smul.addr %s1968, 4
        %s1970 = scalar_lea.vmem %s4, %s1969
      $region52: #{basic_block_forward.4} parent=47 // pred_fallthru
        _
      // Predicated region
      $region53: #{basic_block_forward.4} parent=47 // pred_check
        %p1971 = pneg %p156
      $region54: #{basic_block_forward.4} parent=47 // pred_check_branch
        %1973 = sbr.rel (%p1971) target = $region56
      $region55: #{basic_block_forward.4} parent=47 // pred_region
        %p1974 = scmp.lt.s32.totalorder %s18, 1
        %s1975 = scalar_select %p1974, %s18, 1
        %s1976 = smul.addr %s1975, 8
        %s1977 = scalar_lea.vmem %s5, %s1976
      $region56: #{basic_block_forward.4} parent=47 // pred_fallthru
        _
    $region48: #{basic_block_forward.4} parent=5 // pred_fallthru
      _
  $region6: #{basic_block_forward.4} parent=0 // loop_footer
    %s16 = sadd.s32 1, %s12
  $region7: #{basic_block_forward.4} parent=0 // loop_footer_branch
    %11 = sbr.rel target = $region3
  $region8: #{basic_block_forward.4} parent=0 // loop_exit
    _

</llo_original>
